<compile_context>
chip_gen: v7x
topology: tpu7x:2x2x1
jax: 0.10.0
libtpu: 0.0.40
codegen_flags: <defaults>
</compile_context>

<pallas_src>
import numpy as np

import jax
import jax.numpy as jnp
from jax import lax
from jax.experimental import pallas as pl

# ---------------- hyper-parameters (small, shape-consistent with the module) ----------
B = 2
NUM_ANCHORS = 8            # num_anchors
PART_DIM = 128             # part_latent_dim (128*mult so all GroupNorms share 128 ch)
EMBED_CH = 48              # embed_channel (divisible by 6 for the 3D sinusoidal embedding)
POINT_DIM = 3
MULT = 1
HIDDEN = 128 * MULT
NUM_GROUPS = 32
GN_EPS = 1e-6              # Normalize() sets eps=1e-06 explicitly
CA_HEADS = 8
CA_DIM_HEAD = 32
CA_INNER = CA_HEADS * CA_DIM_HEAD          # 256
NFLAT = POINT_DIM * NUM_ANCHORS            # 24

assert HIDDEN == PART_DIM  # shared GroupNorm group tables assume 128 channels

# ---------------- packed-slab layout (all column offsets 128-lane aligned) ------------
# f32 table slab WF: (128, 1536)
WF_G, WF_GT, WF_R2W, WF_SEL, WF_MKV, WF_SEG, WF_COLS = 0, 128, 256, 384, 896, 1408, 1536
# bf16 weight slab WB: (128, 1280)
WB_M1W, WB_M2W, WB_R1W, WB_OZW, WB_EMB, WB_WKV, WB_COLS = 0, 128, 256, 384, 512, 768, 1280
# row indices inside the (32, 128) f32 row-vector slab VEC
(V_M1G, V_M1B, V_M1C, V_M2G, V_M2B, V_M2C,
 V_R1G, V_R1B, V_R1C, V_R2G, V_R2B, V_R2C,
 V_OG, V_OB, V_OZB, V_BO, V_PHASE, V_EBS, V_EBH) = range(19)
V_AMASK = 24               # rows 24..31: per-anchor coordinate-selection mask
VEC_ROWS = 32


# ---------------- in-kernel helpers ----------------------------------------------------
def _row(vec_ref, i):
    return vec_ref[i:i + 1, :]                       # (1, 128) static view load


def _group_norm_hat(xb, rows, g, gt):
    """Per-batch GroupNorm normalization (no affine) of xb laid out as (nb*rows, C).

    Stats for every (batch, group) use ONE stacked (2*nb, C)@(C, G) push and ONE
    (2*nb, G)@(G, C) broadcast-back push; var = E[x^2] - mean^2 (f32, clamped)."""
    f32 = jnp.float32
    nb = xb.shape[0] // rows
    n = float(rows * (PART_DIM // NUM_GROUPS))
    xsq = xb * xb
    stat_rows = []
    for b in range(nb):
        sl = slice(b * rows, (b + 1) * rows)
        stat_rows.append(jnp.sum(xb[sl], axis=0, keepdims=True))
        stat_rows.append(jnp.sum(xsq[sl], axis=0, keepdims=True))
    st = jnp.concatenate(stat_rows, axis=0)                                    # (2nb, C)
    stg = jnp.dot(st, g, preferred_element_type=f32) * (1.0 / n)               # (2nb, Gpad)
    stc = jnp.dot(stg, gt, preferred_element_type=f32)                         # (2nb, C)
    outs = []
    for b in range(nb):
        mean = stc[2 * b:2 * b + 1]
        var = jnp.maximum(stc[2 * b + 1:2 * b + 2] - mean * mean, 0.0)
        outs.append((xb[b * rows:(b + 1) * rows] - mean) * lax.rsqrt(var + GN_EPS))
    return jnp.concatenate(outs, axis=0)


# ---------------- the fused kernel: whole forward, all batch elements ------------------
def _fused_kernel(x_ref, wb_ref, wf_ref, vec_ref, wo_ref, pl_out_ref, co_out_ref):
    f32, bf16 = jnp.float32, jnp.bfloat16
    A, C = NUM_ANCHORS, PART_DIM
    x = x_ref[...]                                        # (nb*A, C) f32
    nb = x.shape[0] // A

    g = wf_ref[:, WF_G:WF_G + C]                          # (C, C): one-hot groups in cols 0..31
    gt = wf_ref[:, WF_GT:WF_GT + C]

    # ---- GroupNorm(x) stats shared by mlp[0] and out_layers[0] (dedup) ---------------
    xhat = _group_norm_hat(x, A, g, gt)

    # ---- self.mlp -> per-batch max over anchors -> coarse_feat -----------------------
    h = jnp.maximum(xhat * _row(vec_ref, V_M1G) + _row(vec_ref, V_M1B), 0.0)
    h = jnp.dot(h.astype(bf16), wb_ref[:, WB_M1W:WB_M1W + C],
                preferred_element_type=f32) + _row(vec_ref, V_M1C)
    h = _group_norm_hat(h, A, g, gt)
    h = jnp.maximum(h * _row(vec_ref, V_M2G) + _row(vec_ref, V_M2B), 0.0)
    h = jnp.dot(h.astype(bf16), wb_ref[:, WB_M2W:WB_M2W + C],
                preferred_element_type=f32) + _row(vec_ref, V_M2C)
    feat = jnp.concatenate(
        [jnp.max(h[b * A:(b + 1) * A], axis=0, keepdims=True) for b in range(nb)],
        axis=0)                                           # (nb, C)

    # ---- self.anchor_regressor -> flat anchor coords (nb, 128) cols 0..23 real -------
    r = _group_norm_hat(feat, 1, g, gt)
    r = jnp.maximum(r * _row(vec_ref, V_R1G) + _row(vec_ref, V_R1B), 0.0)
    r = jnp.dot(r.astype(bf16), wb_ref[:, WB_R1W:WB_R1W + C],
                preferred_element_type=f32) + _row(vec_ref, V_R1C)
    r = _group_norm_hat(r, 1, g, gt)
    r = jnp.maximum(r * _row(vec_ref, V_R2G) + _row(vec_ref, V_R2B), 0.0)
    cflat = jnp.dot(r, wf_ref[:, WF_R2W:WF_R2W + C],
                    preferred_element_type=f32) + _row(vec_ref, V_R2C)         # f32 head

    # ---- per-anchor selection + fused [PE-args | to_q | coarse-pad] matmul -----------
    amask = vec_ref[V_AMASK:V_AMASK + A, :]                                    # (A, 128)
    masked = jnp.concatenate(
        [jnp.broadcast_to(cflat[b:b + 1, :], (A, C)) * amask for b in range(nb)], axis=0)
    sel = jnp.dot(masked, wf_ref[:, WF_SEL:WF_SEL + 512], preferred_element_type=f32)
    args = sel[:, 0:128]             # sinusoidal-embedding angles (cols 0..47 real)
    q_all = sel[:, 128:384]          # cross-attention queries (nb*A, 256)
    coarse_pad = sel[:, 384:512]     # lane-padded coarse coords (lanes 0..2)

    # ---- SinusoidalEmbedding3D + emb_layers (SiLU -> Linear) via sin-phase table -----
    # TODO(synk): SinusoidalEmbedding3D source not provided; per-axis [sin, cos]
    # embedding with EMBED_CH // 6 frequencies assumed (cos folded as sin(x + pi/2)).
    pe = jnp.sin(args + _row(vec_ref, V_PHASE))
    pe = pe * jax.nn.sigmoid(pe)                                               # SiLU
    emb = jnp.dot(pe.astype(bf16), wb_ref[:, WB_EMB:WB_EMB + 2 * C],
                  preferred_element_type=f32)                                  # (nb*A, 2C)
    scale = emb[:, 0:C] + _row(vec_ref, V_EBS)
    shift = emb[:, C:2 * C] + _row(vec_ref, V_EBH)

    # ---- out_layers: scale/shift GroupNorm (reuses xhat) -> SiLU -> zero conv --------
    hn = (xhat * _row(vec_ref, V_OG) + _row(vec_ref, V_OB)) * (1.0 + scale) + shift
    hn = hn * jax.nn.sigmoid(hn)                          # Dropout(0.2) identity (eval)
    hn = jnp.dot(hn.astype(bf16), wb_ref[:, WB_OZW:WB_OZW + C],
                 preferred_element_type=f32) + _row(vec_ref, V_OZB)
    pl_new = x + hn                                       # residual
    pl_out_ref[...] = pl_new

    # ---- CrossAttention(coarse, part_latent): block-diagonal multi-head form ---------
    kv = jnp.dot(pl_new.astype(bf16), wb_ref[:, WB_WKV:WB_WKV + 2 * CA_INNER],
                 preferred_element_type=f32)                                   # (nb*A, 512)
    mkv = wf_ref[0:CA_HEADS * A, WF_MKV:WF_MKV + 2 * CA_INNER]                 # (64, 512)
    seg = wf_ref[0:CA_HEADS * A, WF_SEG:WF_SEG + CA_HEADS * A]                 # (64, 64)
    sc = CA_DIM_HEAD ** (-0.5)
    outs = []
    for b in range(nb):
        kv_big = jnp.concatenate([kv[b * A:(b + 1) * A, :]] * CA_HEADS, axis=0) * mkv
        sim = lax.dot_general(q_all[b * A:(b + 1) * A, :], kv_big[:, 0:CA_INNER],
                              (((1,), (1,)), ((), ())),
                              preferred_element_type=f32) * sc                 # (A, heads*A)
        sim = sim - jnp.max(sim, axis=-1, keepdims=True)   # global row max: valid per-segment
        p = jnp.exp(sim)
        denom = jnp.dot(p, seg, preferred_element_type=f32)                    # segment sums
        attn = p * pl.reciprocal(denom, approx=True)
        outs.append(jnp.dot(attn, kv_big[:, CA_INNER:], preferred_element_type=f32))
    attn_out = jnp.concatenate(outs, axis=0)                                   # (nb*A, 256)
    corr = jnp.dot(attn_out.astype(bf16), wo_ref[...],
                   preferred_element_type=f32) + _row(vec_ref, V_BO)
    co_out_ref[...] = coarse_pad + corr                    # lanes 0..2 hold corrected coarse


# ---------------- host-side static tables / slab packing -------------------------------
def _np_group_tables():
    cpg = PART_DIM // NUM_GROUPS
    g = np.zeros((PART_DIM, PART_DIM), np.float32)
    g[np.arange(PART_DIM), np.arange(PART_DIM) // cpg] = 1.0
    return g, np.ascontiguousarray(g.T)


def _np_pe_tables():
    per_axis = EMBED_CH // POINT_DIM
    half = per_axis // 2
    freqs = np.exp(-np.log(10000.0) * np.arange(half) / half).astype(np.float32)
    fmat = np.zeros((POINT_DIM, PART_DIM), np.float32)
    phase = np.zeros((PART_DIM,), np.float32)
    for d in range(POINT_DIM):
        base = d * per_axis
        fmat[d, base:base + per_axis] = np.concatenate([freqs, freqs])
        phase[base + half:base + per_axis] = np.pi / 2.0       # cos(x) = sin(x + pi/2)
    return fmat, phase


def prepare_params(p):
    """Runs ONCE on the host: packs all weights / constants into 4 VMEM slabs."""
    np32 = lambda a: np.asarray(a, np.float32)
    np32v = lambda a: np.asarray(a, np.float32).reshape(-1)

    # f32 slab: GN one-hot tables, regressor head, fused selection table, attention masks
    wf = np.zeros((PART_DIM, WF_COLS), np.float32)
    g, gt = _np_group_tables()
    wf[:, WF_G:WF_G + PART_DIM] = g
    wf[:, WF_GT:WF_GT + PART_DIM] = gt
    wf[:, WF_R2W:WF_R2W + NFLAT] = np32(p["reg_w2"])
    fmat, phase = _np_pe_tables()
    wq = np32(p["ca_wq"])
    for j in range(NFLAT):
        ax = j % POINT_DIM
        wf[j, WF_SEL:WF_SEL + PART_DIM] = fmat[ax]                              # PE freqs
        wf[j, WF_SEL + PART_DIM:WF_SEL + PART_DIM + CA_INNER] = wq[ax]          # to_q
        wf[j, WF_SEL + PART_DIM + CA_INNER + ax] = 1.0                          # coarse pad
    for h in range(CA_HEADS):
        for j in range(NUM_ANCHORS):
            row = h * NUM_ANCHORS + j
            wf[row, WF_MKV + h * CA_DIM_HEAD:WF_MKV + (h + 1) * CA_DIM_HEAD] = 1.0
            wf[row, WF_MKV + CA_INNER + h * CA_DIM_HEAD:
                    WF_MKV + CA_INNER + (h + 1) * CA_DIM_HEAD] = 1.0
        wf[h * NUM_ANCHORS:(h + 1) * NUM_ANCHORS,
           WF_SEG + h * NUM_ANCHORS:WF_SEG + (h + 1) * NUM_ANCHORS] = 1.0

    # bf16 slab: all large 128-row weight matrices
    wb = np.zeros((PART_DIM, WB_COLS), np.float32)
    wb[:, WB_M1W:WB_M1W + HIDDEN] = np32(p["mlp_w1"])
    wb[:, WB_M2W:WB_M2W + PART_DIM] = np32(p["mlp_w2"])
    wb[:, WB_R1W:WB_R1W + HIDDEN] = np32(p["reg_w1"])
    wb[:, WB_OZW:WB_OZW + PART_DIM] = np32(p["out_wz"])
    wb[:EMBED_CH, WB_EMB:WB_EMB + 2 * PART_DIM] = np32(p["emb_w"])
    wb[:, WB_WKV:WB_WKV + CA_INNER] = np32(p["ca_wk"])
    wb[:, WB_WKV + CA_INNER:WB_WKV + 2 * CA_INNER] = np32(p["ca_wv"])

    # row-vector slab: every gamma / beta / bias / phase row + per-anchor selection mask
    vec = np.zeros((VEC_ROWS, PART_DIM), np.float32)
    vec[V_M1G] = np32v(p["mlp_gn1_g"]); vec[V_M1B] = np32v(p["mlp_gn1_b"])
    vec[V_M1C] = np32v(p["mlp_b1"])
    vec[V_M2G] = np32v(p["mlp_gn2_g"]); vec[V_M2B] = np32v(p["mlp_gn2_b"])
    vec[V_M2C] = np32v(p["mlp_b2"])
    vec[V_R1G] = np32v(p["reg_gn1_g"]); vec[V_R1B] = np32v(p["reg_gn1_b"])
    vec[V_R1C] = np32v(p["reg_b1"])
    vec[V_R2G] = np32v(p["reg_gn2_g"]); vec[V_R2B] = np32v(p["reg_gn2_b"])
    vec[V_R2C, :NFLAT] = np32v(p["reg_b2"])
    vec[V_OG] = np32v(p["out_gn_g"]); vec[V_OB] = np32v(p["out_gn_b"])
    vec[V_OZB] = np32v(p["out_bz"])
    vec[V_BO, :POINT_DIM] = np32v(p["ca_bo"])
    vec[V_PHASE] = phase
    eb = np32v(p["emb_b"])
    vec[V_EBS] = eb[:PART_DIM]; vec[V_EBH] = eb[PART_DIM:]
    for a in range(NUM_ANCHORS):
        vec[V_AMASK + a, a * POINT_DIM:(a + 1) * POINT_DIM] = 1.0

    # to_out weight, zero-padded to 128 output lanes (bf16)
    wo = np.zeros((CA_INNER, PART_DIM), np.float32)
    wo[:, :POINT_DIM] = np32(p["ca_wo"])

    return (jnp.asarray(wb, jnp.bfloat16), jnp.asarray(wf), jnp.asarray(vec),
            jnp.asarray(wo, jnp.bfloat16))


# ---------------- full forward: one fused pallas_call, no grid -------------------------
def component_mixer_v2(part_latent_in, consts):
    wb, wf, vec, wo = consts
    b = part_latent_in.shape[0]
    x = part_latent_in.reshape(b * NUM_ANCHORS, PART_DIM)         # anchors as rows
    pl_new, coarse_pad = pl.pallas_call(
        _fused_kernel,
        out_shape=(jax.ShapeDtypeStruct((b * NUM_ANCHORS, PART_DIM), jnp.float32),
                   jax.ShapeDtypeStruct((b * NUM_ANCHORS, PART_DIM), jnp.float32)),
    )(x, wb, wf, vec, wo)
    part_latent = pl_new.reshape(b, NUM_ANCHORS, PART_DIM)
    coarse = coarse_pad.reshape(b, NUM_ANCHORS, PART_DIM)[..., :POINT_DIM]
    global_feature = None      # include_global_feature=False
    # normalize_latent=False, part_dp_prob=0.0 -> identity
    return global_feature, coarse, part_latent


# ---------------- deterministic parameter init -----------------------------------------
def init_params(key):
    def dense(k, shape, scale=0.05):
        return scale * jax.random.normal(k, shape, dtype=jnp.float32)

    keys = iter(jax.random.split(key, 16))
    c, h, a, e = PART_DIM, HIDDEN, NUM_ANCHORS, EMBED_CH
    return {
        # mlp: GN(C) -> ReLU -> Conv1d(C,H,1) -> GN(H) -> ReLU -> Conv1d(H,C,1)
        "mlp_gn1_g": jnp.ones((1, c)), "mlp_gn1_b": jnp.zeros((1, c)),
        "mlp_w1": dense(next(keys), (c, h)), "mlp_b1": dense(next(keys), (1, h)),
        "mlp_gn2_g": jnp.ones((1, h)), "mlp_gn2_b": jnp.zeros((1, h)),
        "mlp_w2": dense(next(keys), (h, c)), "mlp_b2": dense(next(keys), (1, c)),
        # anchor_regressor: GN -> ReLU -> Linear(C,H) -> GN -> ReLU -> Linear(H, 3*A)
        "reg_gn1_g": jnp.ones((1, c)), "reg_gn1_b": jnp.zeros((1, c)),
        "reg_w1": dense(next(keys), (c, h)), "reg_b1": dense(next(keys), (1, h)),
        "reg_gn2_g": jnp.ones((1, h)), "reg_gn2_b": jnp.zeros((1, h)),
        "reg_w2": dense(next(keys), (h, POINT_DIM * a)),
        "reg_b2": dense(next(keys), (1, POINT_DIM * a)),
        # emb_layers: SiLU -> Linear(E, 2C)
        "emb_w": dense(next(keys), (e, 2 * c)), "emb_b": dense(next(keys), (1, 2 * c)),
        # out_layers: GN -> SiLU -> Dropout -> zero_module(Conv1d(C,C,1))
        "out_gn_g": jnp.ones((1, c)), "out_gn_b": jnp.zeros((1, c)),
        "out_wz": jnp.zeros((c, c)), "out_bz": jnp.zeros((1, c)),
        # anchor_corrector = CrossAttention(query_dim=3, context_dim=C, heads=8, dim_head=32)
        "ca_wq": dense(next(keys), (POINT_DIM, CA_INNER)),
        "ca_wk": dense(next(keys), (c, CA_INNER)),
        "ca_wv": dense(next(keys), (c, CA_INNER)),
        "ca_wo": dense(next(keys), (CA_INNER, POINT_DIM)),
        "ca_bo": dense(next(keys), (1, POINT_DIM)),
    }


if __name__ == "__main__":
    key = jax.random.PRNGKey(0)
    pkey, xkey = jax.random.split(key)
    params = init_params(pkey)
    consts = prepare_params(params)
    x = jax.random.normal(xkey, (B, NUM_ANCHORS * PART_DIM), dtype=jnp.float32)

    fwd = jax.jit(component_mixer_v2)
    global_feature, coarse, part_latent = fwd(x, consts)
    jax.block_until_ready((coarse, part_latent))

    assert global_feature is None
    assert coarse.shape == (B, NUM_ANCHORS, POINT_DIM)
    assert part_latent.shape == (B, NUM_ANCHORS, PART_DIM)
    assert bool(jnp.all(jnp.isfinite(coarse))) and bool(jnp.all(jnp.isfinite(part_latent)))
    print("KERNEL_OK")
</pallas_src>

<mosaic_0001>
module attributes {stable_mosaic.version = 11 : i64} {
  func.func @_fused_kernel(%arg0: memref<16x128xf32, #tpu.memory_space<vmem>>, %arg1: memref<128x1280xbf16, #tpu.memory_space<vmem>>, %arg2: memref<128x1536xf32, #tpu.memory_space<vmem>>, %arg3: memref<32x128xf32, #tpu.memory_space<vmem>>, %arg4: memref<256x128xbf16, #tpu.memory_space<vmem>>, %arg5: memref<16x128xf32, #tpu.memory_space<vmem>>, %arg6: memref<16x128xf32, #tpu.memory_space<vmem>>) attributes {dimension_semantics = [], scalar_prefetch = 0 : i64, scratch_operands = 0 : i64, tpu.core_type = #tpu.core_type<tc>} {
    %c0 = arith.constant 0 : index
    %c0_0 = arith.constant 0 : index
    %0 = vector.load %arg0[%c0, %c0_0] : memref<16x128xf32, #tpu.memory_space<vmem>>, vector<16x128xf32>
    %c0_1 = arith.constant 0 : index
    %c0_2 = arith.constant 0 : index
    %1 = vector.load %arg2[%c0_1, %c0_2] : memref<128x1536xf32, #tpu.memory_space<vmem>>, vector<128x128xf32>
    %c0_3 = arith.constant 0 : index
    %c128 = arith.constant 128 : index
    %2 = vector.load %arg2[%c0_3, %c128] : memref<128x1536xf32, #tpu.memory_space<vmem>>, vector<128x128xf32>
    %3 = arith.mulf %0, %0 : vector<16x128xf32>
    %4 = vector.extract_strided_slice %0 {offsets = [0, 0], sizes = [8, 128], strides = [1, 1]} : vector<16x128xf32> to vector<8x128xf32>
    %cst = arith.constant dense<0.000000e+00> : vector<128xf32>
    %5 = vector.multi_reduction <add>, %4, %cst [0] : vector<8x128xf32> to vector<128xf32>
    %6 = vector.shape_cast %5 : vector<128xf32> to vector<1x128xf32>
    %7 = vector.extract_strided_slice %3 {offsets = [0, 0], sizes = [8, 128], strides = [1, 1]} : vector<16x128xf32> to vector<8x128xf32>
    %cst_4 = arith.constant dense<0.000000e+00> : vector<128xf32>
    %8 = vector.multi_reduction <add>, %7, %cst_4 [0] : vector<8x128xf32> to vector<128xf32>
    %9 = vector.shape_cast %8 : vector<128xf32> to vector<1x128xf32>
    %10 = vector.extract_strided_slice %0 {offsets = [8, 0], sizes = [8, 128], strides = [1, 1]} : vector<16x128xf32> to vector<8x128xf32>
    %cst_5 = arith.constant dense<0.000000e+00> : vector<128xf32>
    %11 = vector.multi_reduction <add>, %10, %cst_5 [0] : vector<8x128xf32> to vector<128xf32>
    %12 = vector.shape_cast %11 : vector<128xf32> to vector<1x128xf32>
    %13 = vector.extract_strided_slice %3 {offsets = [8, 0], sizes = [8, 128], strides = [1, 1]} : vector<16x128xf32> to vector<8x128xf32>
    %cst_6 = arith.constant dense<0.000000e+00> : vector<128xf32>
    %14 = vector.multi_reduction <add>, %13, %cst_6 [0] : vector<8x128xf32> to vector<128xf32>
    %15 = vector.shape_cast %14 : vector<128xf32> to vector<1x128xf32>
    %16 = tpu.concatenate %6, %9, %12, %15 in 0 : vector<1x128xf32>, vector<1x128xf32>, vector<1x128xf32>, vector<1x128xf32> -> vector<4x128xf32>
    %cst_7 = arith.constant dense<0.000000e+00> : vector<4x128xf32>
    %17 = tpu.matmul %16, %1, %cst_7 {dimension_numbers = #tpu.dot_dimension_numbers<[1], [0], [0], [1], [0, 0, 1, 1], [], []>} : vector<4x128xf32>, vector<128x128xf32>, vector<4x128xf32> -> vector<4x128xf32>
    %cst_8 = arith.constant 3.125000e-02 : f32
    %18 = vector.broadcast %cst_8 : f32 to vector<4x128xf32>
    %19 = arith.mulf %17, %18 : vector<4x128xf32>
    %cst_9 = arith.constant dense<0.000000e+00> : vector<4x128xf32>
    %20 = tpu.matmul %19, %2, %cst_9 {dimension_numbers = #tpu.dot_dimension_numbers<[1], [0], [0], [1], [0, 0, 1, 1], [], []>} : vector<4x128xf32>, vector<128x128xf32>, vector<4x128xf32> -> vector<4x128xf32>
    %21 = vector.extract_strided_slice %20 {offsets = [0, 0], sizes = [1, 128], strides = [1, 1]} : vector<4x128xf32> to vector<1x128xf32>
    %22 = vector.extract_strided_slice %20 {offsets = [1, 0], sizes = [1, 128], strides = [1, 1]} : vector<4x128xf32> to vector<1x128xf32>
    %23 = arith.mulf %21, %21 : vector<1x128xf32>
    %24 = arith.subf %22, %23 : vector<1x128xf32>
    %cst_10 = arith.constant 0.000000e+00 : f32
    %25 = vector.broadcast %cst_10 : f32 to vector<1x128xf32>
    %26 = arith.maximumf %24, %25 : vector<1x128xf32>
    %27 = vector.extract_strided_slice %0 {offsets = [0, 0], sizes = [8, 128], strides = [1, 1]} : vector<16x128xf32> to vector<8x128xf32>
    %28 = vector.broadcast %21 : vector<1x128xf32> to vector<8x128xf32>
    %29 = arith.subf %27, %28 : vector<8x128xf32>
    %cst_11 = arith.constant 9.99999997E-7 : f32
    %30 = vector.broadcast %cst_11 : f32 to vector<1x128xf32>
    %31 = arith.addf %26, %30 : vector<1x128xf32>
    %32 = math.rsqrt %31 : vector<1x128xf32>
    %33 = vector.broadcast %32 : vector<1x128xf32> to vector<8x128xf32>
    %34 = arith.mulf %29, %33 : vector<8x128xf32>
    %35 = vector.extract_strided_slice %20 {offsets = [2, 0], sizes = [1, 128], strides = [1, 1]} : vector<4x128xf32> to vector<1x128xf32>
    %36 = vector.extract_strided_slice %20 {offsets = [3, 0], sizes = [1, 128], strides = [1, 1]} : vector<4x128xf32> to vector<1x128xf32>
    %37 = arith.mulf %35, %35 : vector<1x128xf32>
    %38 = arith.subf %36, %37 : vector<1x128xf32>
    %cst_12 = arith.constant 0.000000e+00 : f32
    %39 = vector.broadcast %cst_12 : f32 to vector<1x128xf32>
    %40 = arith.maximumf %38, %39 : vector<1x128xf32>
    %41 = vector.extract_strided_slice %0 {offsets = [8, 0], sizes = [8, 128], strides = [1, 1]} : vector<16x128xf32> to vector<8x128xf32>
    %42 = vector.broadcast %35 : vector<1x128xf32> to vector<8x128xf32>
    %43 = arith.subf %41, %42 : vector<8x128xf32>
    %cst_13 = arith.constant 9.99999997E-7 : f32
    %44 = vector.broadcast %cst_13 : f32 to vector<1x128xf32>
    %45 = arith.addf %40, %44 : vector<1x128xf32>
    %46 = math.rsqrt %45 : vector<1x128xf32>
    %47 = vector.broadcast %46 : vector<1x128xf32> to vector<8x128xf32>
    %48 = arith.mulf %43, %47 : vector<8x128xf32>
    %49 = tpu.concatenate %34, %48 in 0 : vector<8x128xf32>, vector<8x128xf32> -> vector<16x128xf32>
    %c0_14 = arith.constant 0 : index
    %c0_15 = arith.constant 0 : index
    %50 = vector.load %arg3[%c0_14, %c0_15] : memref<32x128xf32, #tpu.memory_space<vmem>>, vector<1x128xf32>
    %51 = vector.broadcast %50 : vector<1x128xf32> to vector<16x128xf32>
    %52 = arith.mulf %49, %51 : vector<16x128xf32>
    %c1 = arith.constant 1 : index
    %c0_16 = arith.constant 0 : index
    %53 = vector.load %arg3[%c1, %c0_16] : memref<32x128xf32, #tpu.memory_space<vmem>>, vector<1x128xf32>
    %54 = vector.broadcast %53 : vector<1x128xf32> to vector<16x128xf32>
    %55 = arith.addf %52, %54 : vector<16x128xf32>
    %cst_17 = arith.constant 0.000000e+00 : f32
    %56 = vector.broadcast %cst_17 : f32 to vector<16x128xf32>
    %57 = arith.maximumf %55, %56 : vector<16x128xf32>
    %58 = arith.truncf %57 : vector<16x128xf32> to vector<16x128xbf16>
    %c0_18 = arith.constant 0 : index
    %c0_19 = arith.constant 0 : index
    %59 = vector.load %arg1[%c0_18, %c0_19] : memref<128x1280xbf16, #tpu.memory_space<vmem>>, vector<128x128xbf16>
    %cst_20 = arith.constant dense<0.000000e+00> : vector<16x128xf32>
    %60 = tpu.matmul %58, %59, %cst_20 {dimension_numbers = #tpu.dot_dimension_numbers<[1], [0], [0], [1], [0, 0, 1, 1], [], []>} : vector<16x128xbf16>, vector<128x128xbf16>, vector<16x128xf32> -> vector<16x128xf32>
    %c2 = arith.constant 2 : index
    %c0_21 = arith.constant 0 : index
    %61 = vector.load %arg3[%c2, %c0_21] : memref<32x128xf32, #tpu.memory_space<vmem>>, vector<1x128xf32>
    %62 = vector.broadcast %61 : vector<1x128xf32> to vector<16x128xf32>
    %63 = arith.addf %60, %62 : vector<16x128xf32>
    %64 = arith.mulf %63, %63 : vector<16x128xf32>
    %65 = vector.extract_strided_slice %63 {offsets = [0, 0], sizes = [8, 128], strides = [1, 1]} : vector<16x128xf32> to vector<8x128xf32>
    %cst_22 = arith.constant dense<0.000000e+00> : vector<128xf32>
    %66 = vector.multi_reduction <add>, %65, %cst_22 [0] : vector<8x128xf32> to vector<128xf32>
    %67 = vector.shape_cast %66 : vector<128xf32> to vector<1x128xf32>
    %68 = vector.extract_strided_slice %64 {offsets = [0, 0], sizes = [8, 128], strides = [1, 1]} : vector<16x128xf32> to vector<8x128xf32>
    %cst_23 = arith.constant dense<0.000000e+00> : vector<128xf32>
    %69 = vector.multi_reduction <add>, %68, %cst_23 [0] : vector<8x128xf32> to vector<128xf32>
    %70 = vector.shape_cast %69 : vector<128xf32> to vector<1x128xf32>
    %71 = vector.extract_strided_slice %63 {offsets = [8, 0], sizes = [8, 128], strides = [1, 1]} : vector<16x128xf32> to vector<8x128xf32>
    %cst_24 = arith.constant dense<0.000000e+00> : vector<128xf32>
    %72 = vector.multi_reduction <add>, %71, %cst_24 [0] : vector<8x128xf32> to vector<128xf32>
    %73 = vector.shape_cast %72 : vector<128xf32> to vector<1x128xf32>
    %74 = vector.extract_strided_slice %64 {offsets = [8, 0], sizes = [8, 128], strides = [1, 1]} : vector<16x128xf32> to vector<8x128xf32>
    %cst_25 = arith.constant dense<0.000000e+00> : vector<128xf32>
    %75 = vector.multi_reduction <add>, %74, %cst_25 [0] : vector<8x128xf32> to vector<128xf32>
    %76 = vector.shape_cast %75 : vector<128xf32> to vector<1x128xf32>
    %77 = tpu.concatenate %67, %70, %73, %76 in 0 : vector<1x128xf32>, vector<1x128xf32>, vector<1x128xf32>, vector<1x128xf32> -> vector<4x128xf32>
    %cst_26 = arith.constant dense<0.000000e+00> : vector<4x128xf32>
    %78 = tpu.matmul %77, %1, %cst_26 {dimension_numbers = #tpu.dot_dimension_numbers<[1], [0], [0], [1], [0, 0, 1, 1], [], []>} : vector<4x128xf32>, vector<128x128xf32>, vector<4x128xf32> -> vector<4x128xf32>
    %cst_27 = arith.constant 3.125000e-02 : f32
    %79 = vector.broadcast %cst_27 : f32 to vector<4x128xf32>
    %80 = arith.mulf %78, %79 : vector<4x128xf32>
    %cst_28 = arith.constant dense<0.000000e+00> : vector<4x128xf32>
    %81 = tpu.matmul %80, %2, %cst_28 {dimension_numbers = #tpu.dot_dimension_numbers<[1], [0], [0], [1], [0, 0, 1, 1], [], []>} : vector<4x128xf32>, vector<128x128xf32>, vector<4x128xf32> -> vector<4x128xf32>
    %82 = vector.extract_strided_slice %81 {offsets = [0, 0], sizes = [1, 128], strides = [1, 1]} : vector<4x128xf32> to vector<1x128xf32>
    %83 = vector.extract_strided_slice %81 {offsets = [1, 0], sizes = [1, 128], strides = [1, 1]} : vector<4x128xf32> to vector<1x128xf32>
    %84 = arith.mulf %82, %82 : vector<1x128xf32>
    %85 = arith.subf %83, %84 : vector<1x128xf32>
    %cst_29 = arith.constant 0.000000e+00 : f32
    %86 = vector.broadcast %cst_29 : f32 to vector<1x128xf32>
    %87 = arith.maximumf %85, %86 : vector<1x128xf32>
    %88 = vector.extract_strided_slice %63 {offsets = [0, 0], sizes = [8, 128], strides = [1, 1]} : vector<16x128xf32> to vector<8x128xf32>
    %89 = vector.broadcast %82 : vector<1x128xf32> to vector<8x128xf32>
    %90 = arith.subf %88, %89 : vector<8x128xf32>
    %cst_30 = arith.constant 9.99999997E-7 : f32
    %91 = vector.broadcast %cst_30 : f32 to vector<1x128xf32>
    %92 = arith.addf %87, %91 : vector<1x128xf32>
    %93 = math.rsqrt %92 : vector<1x128xf32>
    %94 = vector.broadcast %93 : vector<1x128xf32> to vector<8x128xf32>
    %95 = arith.mulf %90, %94 : vector<8x128xf32>
    %96 = vector.extract_strided_slice %81 {offsets = [2, 0], sizes = [1, 128], strides = [1, 1]} : vector<4x128xf32> to vector<1x128xf32>
    %97 = vector.extract_strided_slice %81 {offsets = [3, 0], sizes = [1, 128], strides = [1, 1]} : vector<4x128xf32> to vector<1x128xf32>
    %98 = arith.mulf %96, %96 : vector<1x128xf32>
    %99 = arith.subf %97, %98 : vector<1x128xf32>
    %cst_31 = arith.constant 0.000000e+00 : f32
    %100 = vector.broadcast %cst_31 : f32 to vector<1x128xf32>
    %101 = arith.maximumf %99, %100 : vector<1x128xf32>
    %102 = vector.extract_strided_slice %63 {offsets = [8, 0], sizes = [8, 128], strides = [1, 1]} : vector<16x128xf32> to vector<8x128xf32>
    %103 = vector.broadcast %96 : vector<1x128xf32> to vector<8x128xf32>
    %104 = arith.subf %102, %103 : vector<8x128xf32>
    %cst_32 = arith.constant 9.99999997E-7 : f32
    %105 = vector.broadcast %cst_32 : f32 to vector<1x128xf32>
    %106 = arith.addf %101, %105 : vector<1x128xf32>
    %107 = math.rsqrt %106 : vector<1x128xf32>
    %108 = vector.broadcast %107 : vector<1x128xf32> to vector<8x128xf32>
    %109 = arith.mulf %104, %108 : vector<8x128xf32>
    %110 = tpu.concatenate %95, %109 in 0 : vector<8x128xf32>, vector<8x128xf32> -> vector<16x128xf32>
    %c3 = arith.constant 3 : index
    %c0_33 = arith.constant 0 : index
    %111 = vector.load %arg3[%c3, %c0_33] : memref<32x128xf32, #tpu.memory_space<vmem>>, vector<1x128xf32>
    %112 = vector.broadcast %111 : vector<1x128xf32> to vector<16x128xf32>
    %113 = arith.mulf %110, %112 : vector<16x128xf32>
    %c4 = arith.constant 4 : index
    %c0_34 = arith.constant 0 : index
    %114 = vector.load %arg3[%c4, %c0_34] : memref<32x128xf32, #tpu.memory_space<vmem>>, vector<1x128xf32>
    %115 = vector.broadcast %114 : vector<1x128xf32> to vector<16x128xf32>
    %116 = arith.addf %113, %115 : vector<16x128xf32>
    %cst_35 = arith.constant 0.000000e+00 : f32
    %117 = vector.broadcast %cst_35 : f32 to vector<16x128xf32>
    %118 = arith.maximumf %116, %117 : vector<16x128xf32>
    %119 = arith.truncf %118 : vector<16x128xf32> to vector<16x128xbf16>
    %c0_36 = arith.constant 0 : index
    %c128_37 = arith.constant 128 : index
    %120 = vector.load %arg1[%c0_36, %c128_37] : memref<128x1280xbf16, #tpu.memory_space<vmem>>, vector<128x128xbf16>
    %cst_38 = arith.constant dense<0.000000e+00> : vector<16x128xf32>
    %121 = tpu.matmul %119, %120, %cst_38 {dimension_numbers = #tpu.dot_dimension_numbers<[1], [0], [0], [1], [0, 0, 1, 1], [], []>} : vector<16x128xbf16>, vector<128x128xbf16>, vector<16x128xf32> -> vector<16x128xf32>
    %c5 = arith.constant 5 : index
    %c0_39 = arith.constant 0 : index
    %122 = vector.load %arg3[%c5, %c0_39] : memref<32x128xf32, #tpu.memory_space<vmem>>, vector<1x128xf32>
    %123 = vector.broadcast %122 : vector<1x128xf32> to vector<16x128xf32>
    %124 = arith.addf %121, %123 : vector<16x128xf32>
    %125 = vector.extract_strided_slice %124 {offsets = [0, 0], sizes = [8, 128], strides = [1, 1]} : vector<16x128xf32> to vector<8x128xf32>
    %cst_40 = arith.constant dense<0xFF800000> : vector<128xf32>
    %126 = vector.multi_reduction <maximumf>, %125, %cst_40 [0] : vector<8x128xf32> to vector<128xf32>
    %127 = vector.shape_cast %126 : vector<128xf32> to vector<1x128xf32>
    %128 = vector.extract_strided_slice %124 {offsets = [8, 0], sizes = [8, 128], strides = [1, 1]} : vector<16x128xf32> to vector<8x128xf32>
    %cst_41 = arith.constant dense<0xFF800000> : vector<128xf32>
    %129 = vector.multi_reduction <maximumf>, %128, %cst_41 [0] : vector<8x128xf32> to vector<128xf32>
    %130 = vector.shape_cast %129 : vector<128xf32> to vector<1x128xf32>
    %131 = tpu.concatenate %127, %130 in 0 : vector<1x128xf32>, vector<1x128xf32> -> vector<2x128xf32>
    %132 = arith.mulf %131, %131 : vector<2x128xf32>
    %133 = vector.extract_strided_slice %131 {offsets = [0, 0], sizes = [1, 128], strides = [1, 1]} : vector<2x128xf32> to vector<1x128xf32>
    %cst_42 = arith.constant dense<0.000000e+00> : vector<128xf32>
    %134 = vector.multi_reduction <add>, %133, %cst_42 [0] : vector<1x128xf32> to vector<128xf32>
    %135 = vector.shape_cast %134 : vector<128xf32> to vector<1x128xf32>
    %136 = vector.extract_strided_slice %132 {offsets = [0, 0], sizes = [1, 128], strides = [1, 1]} : vector<2x128xf32> to vector<1x128xf32>
    %cst_43 = arith.constant dense<0.000000e+00> : vector<128xf32>
    %137 = vector.multi_reduction <add>, %136, %cst_43 [0] : vector<1x128xf32> to vector<128xf32>
    %138 = vector.shape_cast %137 : vector<128xf32> to vector<1x128xf32>
    %139 = vector.extract_strided_slice %131 {offsets = [1, 0], sizes = [1, 128], strides = [1, 1]} : vector<2x128xf32> to vector<1x128xf32>
    %cst_44 = arith.constant dense<0.000000e+00> : vector<128xf32>
    %140 = vector.multi_reduction <add>, %139, %cst_44 [0] : vector<1x128xf32> to vector<128xf32>
    %141 = vector.shape_cast %140 : vector<128xf32> to vector<1x128xf32>
    %142 = vector.extract_strided_slice %132 {offsets = [1, 0], sizes = [1, 128], strides = [1, 1]} : vector<2x128xf32> to vector<1x128xf32>
    %cst_45 = arith.constant dense<0.000000e+00> : vector<128xf32>
    %143 = vector.multi_reduction <add>, %142, %cst_45 [0] : vector<1x128xf32> to vector<128xf32>
    %144 = vector.shape_cast %143 : vector<128xf32> to vector<1x128xf32>
    %145 = tpu.concatenate %135, %138, %141, %144 in 0 : vector<1x128xf32>, vector<1x128xf32>, vector<1x128xf32>, vector<1x128xf32> -> vector<4x128xf32>
    %cst_46 = arith.constant dense<0.000000e+00> : vector<4x128xf32>
    %146 = tpu.matmul %145, %1, %cst_46 {dimension_numbers = #tpu.dot_dimension_numbers<[1], [0], [0], [1], [0, 0, 1, 1], [], []>} : vector<4x128xf32>, vector<128x128xf32>, vector<4x128xf32> -> vector<4x128xf32>
    %cst_47 = arith.constant 2.500000e-01 : f32
    %147 = vector.broadcast %cst_47 : f32 to vector<4x128xf32>
    %148 = arith.mulf %146, %147 : vector<4x128xf32>
    %cst_48 = arith.constant dense<0.000000e+00> : vector<4x128xf32>
    %149 = tpu.matmul %148, %2, %cst_48 {dimension_numbers = #tpu.dot_dimension_numbers<[1], [0], [0], [1], [0, 0, 1, 1], [], []>} : vector<4x128xf32>, vector<128x128xf32>, vector<4x128xf32> -> vector<4x128xf32>
    %150 = vector.extract_strided_slice %149 {offsets = [0, 0], sizes = [1, 128], strides = [1, 1]} : vector<4x128xf32> to vector<1x128xf32>
    %151 = vector.extract_strided_slice %149 {offsets = [1, 0], sizes = [1, 128], strides = [1, 1]} : vector<4x128xf32> to vector<1x128xf32>
    %152 = arith.mulf %150, %150 : vector<1x128xf32>
    %153 = arith.subf %151, %152 : vector<1x128xf32>
    %cst_49 = arith.constant 0.000000e+00 : f32
    %154 = vector.broadcast %cst_49 : f32 to vector<1x128xf32>
    %155 = arith.maximumf %153, %154 : vector<1x128xf32>
    %156 = vector.extract_strided_slice %131 {offsets = [0, 0], sizes = [1, 128], strides = [1, 1]} : vector<2x128xf32> to vector<1x128xf32>
    %157 = arith.subf %156, %150 : vector<1x128xf32>
    %cst_50 = arith.constant 9.99999997E-7 : f32
    %158 = vector.broadcast %cst_50 : f32 to vector<1x128xf32>
    %159 = arith.addf %155, %158 : vector<1x128xf32>
    %160 = math.rsqrt %159 : vector<1x128xf32>
    %161 = arith.mulf %157, %160 : vector<1x128xf32>
    %162 = vector.extract_strided_slice %149 {offsets = [2, 0], sizes = [1, 128], strides = [1, 1]} : vector<4x128xf32> to vector<1x128xf32>
    %163 = vector.extract_strided_slice %149 {offsets = [3, 0], sizes = [1, 128], strides = [1, 1]} : vector<4x128xf32> to vector<1x128xf32>
    %164 = arith.mulf %162, %162 : vector<1x128xf32>
    %165 = arith.subf %163, %164 : vector<1x128xf32>
    %cst_51 = arith.constant 0.000000e+00 : f32
    %166 = vector.broadcast %cst_51 : f32 to vector<1x128xf32>
    %167 = arith.maximumf %165, %166 : vector<1x128xf32>
    %168 = vector.extract_strided_slice %131 {offsets = [1, 0], sizes = [1, 128], strides = [1, 1]} : vector<2x128xf32> to vector<1x128xf32>
    %169 = arith.subf %168, %162 : vector<1x128xf32>
    %cst_52 = arith.constant 9.99999997E-7 : f32
    %170 = vector.broadcast %cst_52 : f32 to vector<1x128xf32>
    %171 = arith.addf %167, %170 : vector<1x128xf32>
    %172 = math.rsqrt %171 : vector<1x128xf32>
    %173 = arith.mulf %169, %172 : vector<1x128xf32>
    %174 = tpu.concatenate %161, %173 in 0 : vector<1x128xf32>, vector<1x128xf32> -> vector<2x128xf32>
    %c6 = arith.constant 6 : index
    %c0_53 = arith.constant 0 : index
    %175 = vector.load %arg3[%c6, %c0_53] : memref<32x128xf32, #tpu.memory_space<vmem>>, vector<1x128xf32>
    %176 = vector.broadcast %175 : vector<1x128xf32> to vector<2x128xf32>
    %177 = arith.mulf %174, %176 : vector<2x128xf32>
    %c7 = arith.constant 7 : index
    %c0_54 = arith.constant 0 : index
    %178 = vector.load %arg3[%c7, %c0_54] : memref<32x128xf32, #tpu.memory_space<vmem>>, vector<1x128xf32>
    %179 = vector.broadcast %178 : vector<1x128xf32> to vector<2x128xf32>
    %180 = arith.addf %177, %179 : vector<2x128xf32>
    %cst_55 = arith.constant 0.000000e+00 : f32
    %181 = vector.broadcast %cst_55 : f32 to vector<2x128xf32>
    %182 = arith.maximumf %180, %181 : vector<2x128xf32>
    %183 = arith.truncf %182 : vector<2x128xf32> to vector<2x128xbf16>
    %c0_56 = arith.constant 0 : index
    %c256 = arith.constant 256 : index
    %184 = vector.load %arg1[%c0_56, %c256] : memref<128x1280xbf16, #tpu.memory_space<vmem>>, vector<128x128xbf16>
    %cst_57 = arith.constant dense<0.000000e+00> : vector<2x128xf32>
    %185 = tpu.matmul %183, %184, %cst_57 {dimension_numbers = #tpu.dot_dimension_numbers<[1], [0], [0], [1], [0, 0, 1, 1], [], []>} : vector<2x128xbf16>, vector<128x128xbf16>, vector<2x128xf32> -> vector<2x128xf32>
    %c8 = arith.constant 8 : index
    %c0_58 = arith.constant 0 : index
    %186 = vector.load %arg3[%c8, %c0_58] : memref<32x128xf32, #tpu.memory_space<vmem>>, vector<1x128xf32>
    %187 = vector.broadcast %186 : vector<1x128xf32> to vector<2x128xf32>
    %188 = arith.addf %185, %187 : vector<2x128xf32>
    %189 = arith.mulf %188, %188 : vector<2x128xf32>
    %190 = vector.extract_strided_slice %188 {offsets = [0, 0], sizes = [1, 128], strides = [1, 1]} : vector<2x128xf32> to vector<1x128xf32>
    %cst_59 = arith.constant dense<0.000000e+00> : vector<128xf32>
    %191 = vector.multi_reduction <add>, %190, %cst_59 [0] : vector<1x128xf32> to vector<128xf32>
    %192 = vector.shape_cast %191 : vector<128xf32> to vector<1x128xf32>
    %193 = vector.extract_strided_slice %189 {offsets = [0, 0], sizes = [1, 128], strides = [1, 1]} : vector<2x128xf32> to vector<1x128xf32>
    %cst_60 = arith.constant dense<0.000000e+00> : vector<128xf32>
    %194 = vector.multi_reduction <add>, %193, %cst_60 [0] : vector<1x128xf32> to vector<128xf32>
    %195 = vector.shape_cast %194 : vector<128xf32> to vector<1x128xf32>
    %196 = vector.extract_strided_slice %188 {offsets = [1, 0], sizes = [1, 128], strides = [1, 1]} : vector<2x128xf32> to vector<1x128xf32>
    %cst_61 = arith.constant dense<0.000000e+00> : vector<128xf32>
    %197 = vector.multi_reduction <add>, %196, %cst_61 [0] : vector<1x128xf32> to vector<128xf32>
    %198 = vector.shape_cast %197 : vector<128xf32> to vector<1x128xf32>
    %199 = vector.extract_strided_slice %189 {offsets = [1, 0], sizes = [1, 128], strides = [1, 1]} : vector<2x128xf32> to vector<1x128xf32>
    %cst_62 = arith.constant dense<0.000000e+00> : vector<128xf32>
    %200 = vector.multi_reduction <add>, %199, %cst_62 [0] : vector<1x128xf32> to vector<128xf32>
    %201 = vector.shape_cast %200 : vector<128xf32> to vector<1x128xf32>
    %202 = tpu.concatenate %192, %195, %198, %201 in 0 : vector<1x128xf32>, vector<1x128xf32>, vector<1x128xf32>, vector<1x128xf32> -> vector<4x128xf32>
    %cst_63 = arith.constant dense<0.000000e+00> : vector<4x128xf32>
    %203 = tpu.matmul %202, %1, %cst_63 {dimension_numbers = #tpu.dot_dimension_numbers<[1], [0], [0], [1], [0, 0, 1, 1], [], []>} : vector<4x128xf32>, vector<128x128xf32>, vector<4x128xf32> -> vector<4x128xf32>
    %cst_64 = arith.constant 2.500000e-01 : f32
    %204 = vector.broadcast %cst_64 : f32 to vector<4x128xf32>
    %205 = arith.mulf %203, %204 : vector<4x128xf32>
    %cst_65 = arith.constant dense<0.000000e+00> : vector<4x128xf32>
    %206 = tpu.matmul %205, %2, %cst_65 {dimension_numbers = #tpu.dot_dimension_numbers<[1], [0], [0], [1], [0, 0, 1, 1], [], []>} : vector<4x128xf32>, vector<128x128xf32>, vector<4x128xf32> -> vector<4x128xf32>
    %207 = vector.extract_strided_slice %206 {offsets = [0, 0], sizes = [1, 128], strides = [1, 1]} : vector<4x128xf32> to vector<1x128xf32>
    %208 = vector.extract_strided_slice %206 {offsets = [1, 0], sizes = [1, 128], strides = [1, 1]} : vector<4x128xf32> to vector<1x128xf32>
    %209 = arith.mulf %207, %207 : vector<1x128xf32>
    %210 = arith.subf %208, %209 : vector<1x128xf32>
    %cst_66 = arith.constant 0.000000e+00 : f32
    %211 = vector.broadcast %cst_66 : f32 to vector<1x128xf32>
    %212 = arith.maximumf %210, %211 : vector<1x128xf32>
    %213 = vector.extract_strided_slice %188 {offsets = [0, 0], sizes = [1, 128], strides = [1, 1]} : vector<2x128xf32> to vector<1x128xf32>
    %214 = arith.subf %213, %207 : vector<1x128xf32>
    %cst_67 = arith.constant 9.99999997E-7 : f32
    %215 = vector.broadcast %cst_67 : f32 to vector<1x128xf32>
    %216 = arith.addf %212, %215 : vector<1x128xf32>
    %217 = math.rsqrt %216 : vector<1x128xf32>
    %218 = arith.mulf %214, %217 : vector<1x128xf32>
    %219 = vector.extract_strided_slice %206 {offsets = [2, 0], sizes = [1, 128], strides = [1, 1]} : vector<4x128xf32> to vector<1x128xf32>
    %220 = vector.extract_strided_slice %206 {offsets = [3, 0], sizes = [1, 128], strides = [1, 1]} : vector<4x128xf32> to vector<1x128xf32>
    %221 = arith.mulf %219, %219 : vector<1x128xf32>
    %222 = arith.subf %220, %221 : vector<1x128xf32>
    %cst_68 = arith.constant 0.000000e+00 : f32
    %223 = vector.broadcast %cst_68 : f32 to vector<1x128xf32>
    %224 = arith.maximumf %222, %223 : vector<1x128xf32>
    %225 = vector.extract_strided_slice %188 {offsets = [1, 0], sizes = [1, 128], strides = [1, 1]} : vector<2x128xf32> to vector<1x128xf32>
    %226 = arith.subf %225, %219 : vector<1x128xf32>
    %cst_69 = arith.constant 9.99999997E-7 : f32
    %227 = vector.broadcast %cst_69 : f32 to vector<1x128xf32>
    %228 = arith.addf %224, %227 : vector<1x128xf32>
    %229 = math.rsqrt %228 : vector<1x128xf32>
    %230 = arith.mulf %226, %229 : vector<1x128xf32>
    %231 = tpu.concatenate %218, %230 in 0 : vector<1x128xf32>, vector<1x128xf32> -> vector<2x128xf32>
    %c9 = arith.constant 9 : index
    %c0_70 = arith.constant 0 : index
    %232 = vector.load %arg3[%c9, %c0_70] : memref<32x128xf32, #tpu.memory_space<vmem>>, vector<1x128xf32>
    %233 = vector.broadcast %232 : vector<1x128xf32> to vector<2x128xf32>
    %234 = arith.mulf %231, %233 : vector<2x128xf32>
    %c10 = arith.constant 10 : index
    %c0_71 = arith.constant 0 : index
    %235 = vector.load %arg3[%c10, %c0_71] : memref<32x128xf32, #tpu.memory_space<vmem>>, vector<1x128xf32>
    %236 = vector.broadcast %235 : vector<1x128xf32> to vector<2x128xf32>
    %237 = arith.addf %234, %236 : vector<2x128xf32>
    %cst_72 = arith.constant 0.000000e+00 : f32
    %238 = vector.broadcast %cst_72 : f32 to vector<2x128xf32>
    %239 = arith.maximumf %237, %238 : vector<2x128xf32>
    %c0_73 = arith.constant 0 : index
    %c256_74 = arith.constant 256 : index
    %240 = vector.load %arg2[%c0_73, %c256_74] : memref<128x1536xf32, #tpu.memory_space<vmem>>, vector<128x128xf32>
    %cst_75 = arith.constant dense<0.000000e+00> : vector<2x128xf32>
    %241 = tpu.matmul %239, %240, %cst_75 {dimension_numbers = #tpu.dot_dimension_numbers<[1], [0], [0], [1], [0, 0, 1, 1], [], []>} : vector<2x128xf32>, vector<128x128xf32>, vector<2x128xf32> -> vector<2x128xf32>
    %c11 = arith.constant 11 : index
    %c0_76 = arith.constant 0 : index
    %242 = vector.load %arg3[%c11, %c0_76] : memref<32x128xf32, #tpu.memory_space<vmem>>, vector<1x128xf32>
    %243 = vector.broadcast %242 : vector<1x128xf32> to vector<2x128xf32>
    %244 = arith.addf %241, %243 : vector<2x128xf32>
    %c24 = arith.constant 24 : index
    %c0_77 = arith.constant 0 : index
    %245 = vector.load %arg3[%c24, %c0_77] : memref<32x128xf32, #tpu.memory_space<vmem>>, vector<8x128xf32>
    %246 = vector.extract_strided_slice %244 {offsets = [0, 0], sizes = [1, 128], strides = [1, 1]} : vector<2x128xf32> to vector<1x128xf32>
    %247 = vector.shape_cast %246 : vector<1x128xf32> to vector<1x128xf32>
    %248 = vector.broadcast %247 : vector<1x128xf32> to vector<8x128xf32>
    %249 = arith.mulf %248, %245 : vector<8x128xf32>
    %250 = vector.extract_strided_slice %244 {offsets = [1, 0], sizes = [1, 128], strides = [1, 1]} : vector<2x128xf32> to vector<1x128xf32>
    %251 = vector.shape_cast %250 : vector<1x128xf32> to vector<1x128xf32>
    %252 = vector.broadcast %251 : vector<1x128xf32> to vector<8x128xf32>
    %253 = arith.mulf %252, %245 : vector<8x128xf32>
    %254 = tpu.concatenate %249, %253 in 0 : vector<8x128xf32>, vector<8x128xf32> -> vector<16x128xf32>
    %c0_78 = arith.constant 0 : index
    %c384 = arith.constant 384 : index
    %255 = vector.load %arg2[%c0_78, %c384] : memref<128x1536xf32, #tpu.memory_space<vmem>>, vector<128x512xf32>
    %cst_79 = arith.constant dense<0.000000e+00> : vector<16x512xf32>
    %256 = tpu.matmul %254, %255, %cst_79 {dimension_numbers = #tpu.dot_dimension_numbers<[1], [0], [0], [1], [0, 0, 1, 1], [], []>} : vector<16x128xf32>, vector<128x512xf32>, vector<16x512xf32> -> vector<16x512xf32>
    %257 = vector.extract_strided_slice %256 {offsets = [0, 0], sizes = [16, 128], strides = [1, 1]} : vector<16x512xf32> to vector<16x128xf32>
    %258 = vector.extract_strided_slice %256 {offsets = [0, 128], sizes = [16, 256], strides = [1, 1]} : vector<16x512xf32> to vector<16x256xf32>
    %259 = vector.extract_strided_slice %256 {offsets = [0, 384], sizes = [16, 128], strides = [1, 1]} : vector<16x512xf32> to vector<16x128xf32>
    %c16 = arith.constant 16 : index
    %c0_80 = arith.constant 0 : index
    %260 = vector.load %arg3[%c16, %c0_80] : memref<32x128xf32, #tpu.memory_space<vmem>>, vector<1x128xf32>
    %261 = vector.broadcast %260 : vector<1x128xf32> to vector<16x128xf32>
    %262 = arith.addf %257, %261 : vector<16x128xf32>
    %263 = math.sin %262 : vector<16x128xf32>
    %264 = arith.negf %263 : vector<16x128xf32>
    %265 = math.exp %264 : vector<16x128xf32>
    %cst_81 = arith.constant 1.000000e+00 : f32
    %266 = vector.broadcast %cst_81 : f32 to vector<16x128xf32>
    %267 = arith.addf %266, %265 : vector<16x128xf32>
    %268 = arith.divf %266, %267 : vector<16x128xf32>
    %269 = arith.mulf %263, %268 : vector<16x128xf32>
    %270 = arith.truncf %269 : vector<16x128xf32> to vector<16x128xbf16>
    %c0_82 = arith.constant 0 : index
    %c512 = arith.constant 512 : index
    %271 = vector.load %arg1[%c0_82, %c512] : memref<128x1280xbf16, #tpu.memory_space<vmem>>, vector<128x256xbf16>
    %cst_83 = arith.constant dense<0.000000e+00> : vector<16x256xf32>
    %272 = tpu.matmul %270, %271, %cst_83 {dimension_numbers = #tpu.dot_dimension_numbers<[1], [0], [0], [1], [0, 0, 1, 1], [], []>} : vector<16x128xbf16>, vector<128x256xbf16>, vector<16x256xf32> -> vector<16x256xf32>
    %273 = vector.extract_strided_slice %272 {offsets = [0, 0], sizes = [16, 128], strides = [1, 1]} : vector<16x256xf32> to vector<16x128xf32>
    %c17 = arith.constant 17 : index
    %c0_84 = arith.constant 0 : index
    %274 = vector.load %arg3[%c17, %c0_84] : memref<32x128xf32, #tpu.memory_space<vmem>>, vector<1x128xf32>
    %275 = vector.broadcast %274 : vector<1x128xf32> to vector<16x128xf32>
    %276 = arith.addf %273, %275 : vector<16x128xf32>
    %277 = vector.extract_strided_slice %272 {offsets = [0, 128], sizes = [16, 128], strides = [1, 1]} : vector<16x256xf32> to vector<16x128xf32>
    %c18 = arith.constant 18 : index
    %c0_85 = arith.constant 0 : index
    %278 = vector.load %arg3[%c18, %c0_85] : memref<32x128xf32, #tpu.memory_space<vmem>>, vector<1x128xf32>
    %279 = vector.broadcast %278 : vector<1x128xf32> to vector<16x128xf32>
    %280 = arith.addf %277, %279 : vector<16x128xf32>
    %c12 = arith.constant 12 : index
    %c0_86 = arith.constant 0 : index
    %281 = vector.load %arg3[%c12, %c0_86] : memref<32x128xf32, #tpu.memory_space<vmem>>, vector<1x128xf32>
    %282 = vector.broadcast %281 : vector<1x128xf32> to vector<16x128xf32>
    %283 = arith.mulf %49, %282 : vector<16x128xf32>
    %c13 = arith.constant 13 : index
    %c0_87 = arith.constant 0 : index
    %284 = vector.load %arg3[%c13, %c0_87] : memref<32x128xf32, #tpu.memory_space<vmem>>, vector<1x128xf32>
    %285 = vector.broadcast %284 : vector<1x128xf32> to vector<16x128xf32>
    %286 = arith.addf %283, %285 : vector<16x128xf32>
    %cst_88 = arith.constant 1.000000e+00 : f32
    %287 = vector.broadcast %cst_88 : f32 to vector<16x128xf32>
    %288 = arith.addf %287, %276 : vector<16x128xf32>
    %289 = arith.mulf %286, %288 : vector<16x128xf32>
    %290 = arith.addf %289, %280 : vector<16x128xf32>
    %291 = arith.negf %290 : vector<16x128xf32>
    %292 = math.exp %291 : vector<16x128xf32>
    %cst_89 = arith.constant 1.000000e+00 : f32
    %293 = vector.broadcast %cst_89 : f32 to vector<16x128xf32>
    %294 = arith.addf %293, %292 : vector<16x128xf32>
    %295 = arith.divf %293, %294 : vector<16x128xf32>
    %296 = arith.mulf %290, %295 : vector<16x128xf32>
    %297 = arith.truncf %296 : vector<16x128xf32> to vector<16x128xbf16>
    %c0_90 = arith.constant 0 : index
    %c384_91 = arith.constant 384 : index
    %298 = vector.load %arg1[%c0_90, %c384_91] : memref<128x1280xbf16, #tpu.memory_space<vmem>>, vector<128x128xbf16>
    %cst_92 = arith.constant dense<0.000000e+00> : vector<16x128xf32>
    %299 = tpu.matmul %297, %298, %cst_92 {dimension_numbers = #tpu.dot_dimension_numbers<[1], [0], [0], [1], [0, 0, 1, 1], [], []>} : vector<16x128xbf16>, vector<128x128xbf16>, vector<16x128xf32> -> vector<16x128xf32>
    %c14 = arith.constant 14 : index
    %c0_93 = arith.constant 0 : index
    %300 = vector.load %arg3[%c14, %c0_93] : memref<32x128xf32, #tpu.memory_space<vmem>>, vector<1x128xf32>
    %301 = vector.broadcast %300 : vector<1x128xf32> to vector<16x128xf32>
    %302 = arith.addf %299, %301 : vector<16x128xf32>
    %303 = arith.addf %0, %302 : vector<16x128xf32>
    %c0_94 = arith.constant 0 : index
    %c0_95 = arith.constant 0 : index
    %304 = vector.load %arg5[%c0_94, %c0_95] : memref<16x128xf32, #tpu.memory_space<vmem>>, vector<16x128xf32>
    tpu.vector_store %arg5[%c0_94, %c0_95], %303 {strides = array<i32>} : memref<16x128xf32, #tpu.memory_space<vmem>>, vector<16x128xf32>,
    %305 = arith.truncf %303 : vector<16x128xf32> to vector<16x128xbf16>
    %c0_96 = arith.constant 0 : index
    %c768 = arith.constant 768 : index
    %306 = vector.load %arg1[%c0_96, %c768] : memref<128x1280xbf16, #tpu.memory_space<vmem>>, vector<128x512xbf16>
    %cst_97 = arith.constant dense<0.000000e+00> : vector<16x512xf32>
    %307 = tpu.matmul %305, %306, %cst_97 {dimension_numbers = #tpu.dot_dimension_numbers<[1], [0], [0], [1], [0, 0, 1, 1], [], []>} : vector<16x128xbf16>, vector<128x512xbf16>, vector<16x512xf32> -> vector<16x512xf32>
    %c0_98 = arith.constant 0 : index
    %c896 = arith.constant 896 : index
    %308 = vector.load %arg2[%c0_98, %c896] : memref<128x1536xf32, #tpu.memory_space<vmem>>, vector<64x512xf32>
    %c0_99 = arith.constant 0 : index
    %c1408 = arith.constant 1408 : index
    %309 = vector.load %arg2[%c0_99, %c1408] : memref<128x1536xf32, #tpu.memory_space<vmem>>, vector<64x64xf32>
    %310 = vector.extract_strided_slice %307 {offsets = [0, 0], sizes = [8, 512], strides = [1, 1]} : vector<16x512xf32> to vector<8x512xf32>
    %311 = tpu.concatenate %310, %310, %310, %310, %310, %310, %310, %310 in 0 : vector<8x512xf32>, vector<8x512xf32>, vector<8x512xf32>, vector<8x512xf32>, vector<8x512xf32>, vector<8x512xf32>, vector<8x512xf32>, vector<8x512xf32> -> vector<64x512xf32>
    %312 = arith.mulf %311, %308 : vector<64x512xf32>
    %313 = vector.extract_strided_slice %258 {offsets = [0, 0], sizes = [8, 256], strides = [1, 1]} : vector<16x256xf32> to vector<8x256xf32>
    %314 = vector.extract_strided_slice %312 {offsets = [0, 0], sizes = [64, 256], strides = [1, 1]} : vector<64x512xf32> to vector<64x256xf32>
    %cst_100 = arith.constant dense<0.000000e+00> : vector<8x64xf32>
    %315 = tpu.matmul %313, %314, %cst_100 {dimension_numbers = #tpu.dot_dimension_numbers<[1], [1], [0], [0], [0, 0, 1, 0], [], []>} : vector<8x256xf32>, vector<64x256xf32>, vector<8x64xf32> -> vector<8x64xf32>
    %cst_101 = arith.constant 0.176776692 : f32
    %316 = vector.broadcast %cst_101 : f32 to vector<8x64xf32>
    %317 = arith.mulf %315, %316 : vector<8x64xf32>
    %cst_102 = arith.constant dense<0xFF800000> : vector<8xf32>
    %318 = vector.multi_reduction <maximumf>, %317, %cst_102 [1] : vector<8x64xf32> to vector<8xf32>
    %319 = vector.shape_cast %318 : vector<8xf32> to vector<8x1xf32>
    %320 = vector.broadcast %319 : vector<8x1xf32> to vector<8x64xf32>
    %321 = arith.subf %317, %320 : vector<8x64xf32>
    %322 = math.exp %321 : vector<8x64xf32>
    %cst_103 = arith.constant dense<0.000000e+00> : vector<8x64xf32>
    %323 = tpu.matmul %322, %309, %cst_103 {dimension_numbers = #tpu.dot_dimension_numbers<[1], [0], [0], [1], [0, 0, 1, 1], [], []>} : vector<8x64xf32>, vector<64x64xf32>, vector<8x64xf32> -> vector<8x64xf32>
    %324 = tpu.reciprocal %323 {approx = true} : vector<8x64xf32> -> vector<8x64xf32>
    %325 = arith.mulf %322, %324 : vector<8x64xf32>
    %326 = vector.extract_strided_slice %312 {offsets = [0, 256], sizes = [64, 256], strides = [1, 1]} : vector<64x512xf32> to vector<64x256xf32>
    %cst_104 = arith.constant dense<0.000000e+00> : vector<8x256xf32>
    %327 = tpu.matmul %325, %326, %cst_104 {dimension_numbers = #tpu.dot_dimension_numbers<[1], [0], [0], [1], [0, 0, 1, 1], [], []>} : vector<8x64xf32>, vector<64x256xf32>, vector<8x256xf32> -> vector<8x256xf32>
    %328 = vector.extract_strided_slice %307 {offsets = [8, 0], sizes = [8, 512], strides = [1, 1]} : vector<16x512xf32> to vector<8x512xf32>
    %329 = tpu.concatenate %328, %328, %328, %328, %328, %328, %328, %328 in 0 : vector<8x512xf32>, vector<8x512xf32>, vector<8x512xf32>, vector<8x512xf32>, vector<8x512xf32>, vector<8x512xf32>, vector<8x512xf32>, vector<8x512xf32> -> vector<64x512xf32>
    %330 = arith.mulf %329, %308 : vector<64x512xf32>
    %331 = vector.extract_strided_slice %258 {offsets = [8, 0], sizes = [8, 256], strides = [1, 1]} : vector<16x256xf32> to vector<8x256xf32>
    %332 = vector.extract_strided_slice %330 {offsets = [0, 0], sizes = [64, 256], strides = [1, 1]} : vector<64x512xf32> to vector<64x256xf32>
    %cst_105 = arith.constant dense<0.000000e+00> : vector<8x64xf32>
    %333 = tpu.matmul %331, %332, %cst_105 {dimension_numbers = #tpu.dot_dimension_numbers<[1], [1], [0], [0], [0, 0, 1, 0], [], []>} : vector<8x256xf32>, vector<64x256xf32>, vector<8x64xf32> -> vector<8x64xf32>
    %cst_106 = arith.constant 0.176776692 : f32
    %334 = vector.broadcast %cst_106 : f32 to vector<8x64xf32>
    %335 = arith.mulf %333, %334 : vector<8x64xf32>
    %cst_107 = arith.constant dense<0xFF800000> : vector<8xf32>
    %336 = vector.multi_reduction <maximumf>, %335, %cst_107 [1] : vector<8x64xf32> to vector<8xf32>
    %337 = vector.shape_cast %336 : vector<8xf32> to vector<8x1xf32>
    %338 = vector.broadcast %337 : vector<8x1xf32> to vector<8x64xf32>
    %339 = arith.subf %335, %338 : vector<8x64xf32>
    %340 = math.exp %339 : vector<8x64xf32>
    %cst_108 = arith.constant dense<0.000000e+00> : vector<8x64xf32>
    %341 = tpu.matmul %340, %309, %cst_108 {dimension_numbers = #tpu.dot_dimension_numbers<[1], [0], [0], [1], [0, 0, 1, 1], [], []>} : vector<8x64xf32>, vector<64x64xf32>, vector<8x64xf32> -> vector<8x64xf32>
    %342 = tpu.reciprocal %341 {approx = true} : vector<8x64xf32> -> vector<8x64xf32>
    %343 = arith.mulf %340, %342 : vector<8x64xf32>
    %344 = vector.extract_strided_slice %330 {offsets = [0, 256], sizes = [64, 256], strides = [1, 1]} : vector<64x512xf32> to vector<64x256xf32>
    %cst_109 = arith.constant dense<0.000000e+00> : vector<8x256xf32>
    %345 = tpu.matmul %343, %344, %cst_109 {dimension_numbers = #tpu.dot_dimension_numbers<[1], [0], [0], [1], [0, 0, 1, 1], [], []>} : vector<8x64xf32>, vector<64x256xf32>, vector<8x256xf32> -> vector<8x256xf32>
    %346 = tpu.concatenate %327, %345 in 0 : vector<8x256xf32>, vector<8x256xf32> -> vector<16x256xf32>
    %347 = arith.truncf %346 : vector<16x256xf32> to vector<16x256xbf16>
    %c0_110 = arith.constant 0 : index
    %c0_111 = arith.constant 0 : index
    %348 = vector.load %arg4[%c0_110, %c0_111] : memref<256x128xbf16, #tpu.memory_space<vmem>>, vector<256x128xbf16>
    %cst_112 = arith.constant dense<0.000000e+00> : vector<16x128xf32>
    %349 = tpu.matmul %347, %348, %cst_112 {dimension_numbers = #tpu.dot_dimension_numbers<[1], [0], [0], [1], [0, 0, 1, 1], [], []>} : vector<16x256xbf16>, vector<256x128xbf16>, vector<16x128xf32> -> vector<16x128xf32>
    %c15 = arith.constant 15 : index
    %c0_113 = arith.constant 0 : index
    %350 = vector.load %arg3[%c15, %c0_113] : memref<32x128xf32, #tpu.memory_space<vmem>>, vector<1x128xf32>
    %351 = vector.broadcast %350 : vector<1x128xf32> to vector<16x128xf32>
    %352 = arith.addf %349, %351 : vector<16x128xf32>
    %353 = arith.addf %259, %352 : vector<16x128xf32>
    %c0_114 = arith.constant 0 : index
    %c0_115 = arith.constant 0 : index
    %354 = vector.load %arg6[%c0_114, %c0_115] : memref<16x128xf32, #tpu.memory_space<vmem>>, vector<16x128xf32>
    tpu.vector_store %arg6[%c0_114, %c0_115], %353 {strides = array<i32>} : memref<16x128xf32, #tpu.memory_space<vmem>>, vector<16x128xf32>,
    return
  }
}

</mosaic_0001>

<llo_original>
// kernel: component_mixer_v2.1
$region0: #{component_mixer_v2.1}
  #allocation0 [shape = 'u32[]', space=smem, size = 0x4, offset = 0x4, fixed_abs, tag = 'smem constant byte address 0x4 - core index']
  #allocation1 [shape = 'u32[144,128]{1,0:T(1,128)}', space=vmem, size = 0x12000, scoped, tag = 'internal scratch']
  %s0 = inlined_call_operand.vmem [shape: f32[16,128], index: 0, kind: input, shape index: {}]
  %s1 = inlined_call_operand.hbm [shape: bf16[128,1280], index: 1, kind: input, shape index: {}]
  %s2 = inlined_call_operand.hbm [shape: f32[128,1536], index: 2, kind: input, shape index: {}]
  %s3 = inlined_call_operand.vmem [shape: f32[32,128], index: 3, kind: input, shape index: {}]
  %s4 = inlined_call_operand.hbm [shape: bf16[256,128], index: 4, kind: input, shape index: {}]
  %s5 = inlined_call_operand.hbm [shape: f32[16,128], index: 5, kind: output, shape index: {0}]
  %s6 = inlined_call_operand.vmem [shape: f32[16,128], index: 6, kind: output, shape index: {1}]
  %7 = xla_tuple %s5, %s6
  %s8 = sld [smem:[#allocation0]]
  $region50: #{component_mixer_v2.1} parent=0
    _
  %s10 = ssub.s32 1, %s8
  %s11 = scalar_select 0, %s10, %s8
  $region1: #{component_mixer_v2.1} parent=0
    #allocation2 [shape = 'u8[327680]{0}', space=vmem, size = 0x50000, scoped, tag = 'input window, operand 1, single buffered']
    #allocation3 [shape = 's32[1]{0}', space=sflag, size = 0x4, scoped, tag = 'scoped memory for component_mixer_v2.1']
    #allocation4 [shape = 's32[1]{0}', space=sflag, size = 0x4, scoped, tag = 'scoped memory for component_mixer_v2.1']
    #allocation5 [shape = 'u8[786432]{0}', space=vmem, size = 0xc0000, scoped, tag = 'input window, operand 2, single buffered']
    #allocation6 [shape = 's32[1]{0}', space=sflag, size = 0x4, scoped, tag = 'scoped memory for component_mixer_v2.1']
    #allocation7 [shape = 'u8[65536]{0}', space=vmem, size = 0x10000, scoped, tag = 'input window, operand 4, single buffered']
    #allocation8 [shape = 'u8[8192]{0}', space=vmem, size = 0x2000, scoped, tag = 'output window, operand 0, single buffered']
    %12 = vsyncpa [#allocation3], 0
    %13 = vsyncpa [#allocation6], 0
    %14 = vsyncpa [#allocation4], 0
    // Predicated region
    $region2: #{component_mixer_v2.1} parent=1 // pred_check
      _
    $region3: #{component_mixer_v2.1} parent=1 // pred_check_branch
      %16 = sbr.rel (0) target = $region5
    $region4: #{component_mixer_v2.1} parent=1 // pred_region
      _
    $region5: #{component_mixer_v2.1} parent=1 // pred_fallthru
      _
    // Predicated region
    $region6: #{component_mixer_v2.1} parent=1 // pred_check
      _
    $region7: #{component_mixer_v2.1} parent=1 // pred_check_branch
      %18 = sbr.rel (0) target = $region9
    $region8: #{component_mixer_v2.1} parent=1 // pred_region
      %s20 = ssub.s32 10240, 10240
      %21 = vsyncadd [#allocation3], %s20
      %s22 = sshll.u32 [#allocation2], 4
      %s23 = int_to_ptr.vmem [resolvable:$true] %s22
      %28 = dma.hbm_to_vmem [thread:$0]  %s1, 10240, %s23, [#allocation3], 640, 640, 40
    $region9: #{component_mixer_v2.1} parent=1 // pred_fallthru
      _
    // Predicated region
    $region10: #{component_mixer_v2.1} parent=1 // pred_check
      _
    $region11: #{component_mixer_v2.1} parent=1 // pred_check_branch
      %30 = sbr.rel (0) target = $region13
    $region12: #{component_mixer_v2.1} parent=1 // pred_region
      %s32 = ssub.s32 24576, 24576
      %33 = vsyncadd [#allocation6], %s32
      %s34 = sshll.u32 [#allocation5], 4
      %s35 = int_to_ptr.vmem [resolvable:$true] %s34
      %40 = dma.hbm_to_vmem [thread:$0]  %s2, 24576, %s35, [#allocation6], 1536, 1536, 96
    $region13: #{component_mixer_v2.1} parent=1 // pred_fallthru
      _
    // Predicated region
    $region14: #{component_mixer_v2.1} parent=1 // pred_check
      _
    $region15: #{component_mixer_v2.1} parent=1 // pred_check_branch
      %42 = sbr.rel (0) target = $region17
    $region16: #{component_mixer_v2.1} parent=1 // pred_region
      _
    $region17: #{component_mixer_v2.1} parent=1 // pred_fallthru
      _
    // Predicated region
    $region18: #{component_mixer_v2.1} parent=1 // pred_check
      _
    $region19: #{component_mixer_v2.1} parent=1 // pred_check_branch
      %44 = sbr.rel (0) target = $region21
    $region20: #{component_mixer_v2.1} parent=1 // pred_region
      %s46 = ssub.s32 2048, 2048
      %47 = vsyncadd [#allocation6], %s46
      %s48 = sshll.u32 [#allocation7], 4
      %s49 = int_to_ptr.vmem [resolvable:$true] %s48
      %54 = dma.hbm_to_vmem [thread:$0]  %s4, 2048, %s49, [#allocation6], 64, 64, 4
    $region21: #{component_mixer_v2.1} parent=1 // pred_fallthru
      _
    // Predicated region
    $region22: #{component_mixer_v2.1} parent=1 // pred_check
      _
    $region23: #{component_mixer_v2.1} parent=1 // pred_check_branch
      %56 = sbr.rel (0) target = $region25
    $region24: #{component_mixer_v2.1} parent=1 // pred_region
      %57 = dma.done [#allocation3], 10240
    $region25: #{component_mixer_v2.1} parent=1 // pred_fallthru
      _
    // Predicated region
    $region26: #{component_mixer_v2.1} parent=1 // pred_check
      _
    $region27: #{component_mixer_v2.1} parent=1 // pred_check_branch
      %59 = sbr.rel (0) target = $region29
    $region28: #{component_mixer_v2.1} parent=1 // pred_region
      %60 = dma.done [#allocation6], 24576
    $region29: #{component_mixer_v2.1} parent=1 // pred_fallthru
      _
    // Predicated region
    $region30: #{component_mixer_v2.1} parent=1 // pred_check
      _
    $region31: #{component_mixer_v2.1} parent=1 // pred_check_branch
      %62 = sbr.rel (0) target = $region33
    $region32: #{component_mixer_v2.1} parent=1 // pred_region
      %63 = dma.done [#allocation6], 2048
    $region33: #{component_mixer_v2.1} parent=1 // pred_fallthru
      _
    %v65 = vld [vmem:[%s0] sm:$0xff]
    %v66 = vld [vmem:[%s0 + $0x8] sm:$0xff]
    %v67 = vld [vmem:[#allocation5] sm:$0xff]
    %v68 = vld [vmem:[#allocation5 + $0x60] sm:$0xff]
    %v69 = vld [vmem:[#allocation5 + $0xc0] sm:$0xff]
    %v70 = vld [vmem:[#allocation5 + $0x120] sm:$0xff]
    %v71 = vld [vmem:[#allocation5 + $0x180] sm:$0xff]
    %v72 = vld [vmem:[#allocation5 + $0x1e0] sm:$0xff]
    %v73 = vld [vmem:[#allocation5 + $0x240] sm:$0xff]
    %v74 = vld [vmem:[#allocation5 + $0x2a0] sm:$0xff]
    %v75 = vld [vmem:[#allocation5 + $0x300] sm:$0xff]
    %v76 = vld [vmem:[#allocation5 + $0x360] sm:$0xff]
    %v77 = vld [vmem:[#allocation5 + $0x3c0] sm:$0xff]
    %v78 = vld [vmem:[#allocation5 + $0x420] sm:$0xff]
    %v79 = vld [vmem:[#allocation5 + $0x480] sm:$0xff]
    %v80 = vld [vmem:[#allocation5 + $0x4e0] sm:$0xff]
    %v81 = vld [vmem:[#allocation5 + $0x540] sm:$0xff]
    %v82 = vld [vmem:[#allocation5 + $0x5a0] sm:$0xff]
    %v83 = vld [vmem:[#allocation5 + $0x8] sm:$0xff]
    %v84 = vld [vmem:[#allocation5 + $0x68] sm:$0xff]
    %v85 = vld [vmem:[#allocation5 + $0xc8] sm:$0xff]
    %v86 = vld [vmem:[#allocation5 + $0x128] sm:$0xff]
    %v87 = vld [vmem:[#allocation5 + $0x188] sm:$0xff]
    %v88 = vld [vmem:[#allocation5 + $0x1e8] sm:$0xff]
    %v89 = vld [vmem:[#allocation5 + $0x248] sm:$0xff]
    %v90 = vld [vmem:[#allocation5 + $0x2a8] sm:$0xff]
    %v91 = vld [vmem:[#allocation5 + $0x308] sm:$0xff]
    %v92 = vld [vmem:[#allocation5 + $0x368] sm:$0xff]
    %v93 = vld [vmem:[#allocation5 + $0x3c8] sm:$0xff]
    %v94 = vld [vmem:[#allocation5 + $0x428] sm:$0xff]
    %v95 = vld [vmem:[#allocation5 + $0x488] sm:$0xff]
    %v96 = vld [vmem:[#allocation5 + $0x4e8] sm:$0xff]
    %v97 = vld [vmem:[#allocation5 + $0x548] sm:$0xff]
    %v98 = vld [vmem:[#allocation5 + $0x5a8] sm:$0xff]
    %v99 = vmul.f32 %v65, %v65
    %v100 = vmul.f32 %v66, %v66
    %v101 = vrot.slane %v65, 4
    %v102 = vadd.f32 %v65, %v101
    %v103 = vrot.slane %v102, 2
    %v104 = vadd.f32 %v102, %v103
    %v105 = vrot.slane %v104, 1
    %v106 = vadd.f32 %v104, %v105
    %v107 = vrot.slane %v99, 4
    %v108 = vadd.f32 %v99, %v107
    %v109 = vrot.slane %v108, 2
    %v110 = vadd.f32 %v108, %v109
    %v111 = vrot.slane %v110, 1
    %v112 = vadd.f32 %v110, %v111
    %v113 = vrot.slane %v66, 4
    %v114 = vadd.f32 %v66, %v113
    %v115 = vrot.slane %v114, 2
    %v116 = vadd.f32 %v114, %v115
    %v117 = vrot.slane %v116, 1
    %v118 = vadd.f32 %v116, %v117
    %v119 = vrot.slane %v100, 4
    %v120 = vadd.f32 %v100, %v119
    %v121 = vrot.slane %v120, 2
    %v122 = vadd.f32 %v120, %v121
    %v123 = vrot.slane %v122, 1
    %v124 = vadd.f32 %v122, %v123
    %vm125 = vcmask 1040384
    %v126 = vsel %vm125, %v106, %v112
    %vm127 = vcmask 1041408
    %v128 = vsel %vm127, %v126, %v118
    %vm129 = vcmask 1042432
    %v130 = vsel %vm129, %v128, %v124
    %131 = vmatprep.subr.mxu0 0.0
    %132 = vmatpush1.msra.mxu0 %v67
    %133 = vmatprep.subr.mxu0 0.0
    %134 = vmatpush1.msra.mxu0 %v68
    %135 = vmatprep.subr.mxu0 0.0
    %136 = vmatpush1.msra.mxu0 %v69
    %137 = vmatprep.subr.mxu0 0.0
    %138 = vmatpush1.msra.mxu0 %v70
    %139 = vmatprep.subr.mxu0 0.0
    %140 = vmatpush1.msra.mxu0 %v71
    %141 = vmatprep.subr.mxu0 0.0
    %142 = vmatpush1.msra.mxu0 %v72
    %143 = vmatprep.subr.mxu0 0.0
    %144 = vmatpush1.msra.mxu0 %v73
    %145 = vmatprep.subr.mxu0 0.0
    %146 = vmatpush1.msra.mxu0 %v74
    %147 = vmatprep.subr.mxu0 0.0
    %148 = vmatpush1.msra.mxu0 %v75
    %149 = vmatprep.subr.mxu0 0.0
    %150 = vmatpush1.msra.mxu0 %v76
    %151 = vmatprep.subr.mxu0 0.0
    %152 = vmatpush1.msra.mxu0 %v77
    %153 = vmatprep.subr.mxu0 0.0
    %154 = vmatpush1.msra.mxu0 %v78
    %155 = vmatprep.subr.mxu0 0.0
    %156 = vmatpush1.msra.mxu0 %v79
    %157 = vmatprep.subr.mxu0 0.0
    %158 = vmatpush1.msra.mxu0 %v80
    %159 = vmatprep.subr.mxu0 0.0
    %160 = vmatpush1.msra.mxu0 %v81
    %161 = vmatprep.subr.mxu0 0.0
    %162 = vmatpush1.msra.mxu0 %v82
    %163 = vmatprep.subr.mxu0 0.0
    %164 = vmatpush1.msra.mxu0 0.0
    %165 = vmatprep.subr.mxu0 0.0
    %166 = vmatpush1.msra.mxu0 0.0
    %167 = vmatprep.subr.mxu0 0.0
    %168 = vmatpush1.msra.mxu0 0.0
    %169 = vmatprep.subr.mxu0 0.0
    %170 = vmatpush1.msra.mxu0 0.0
    %171 = vmatprep.subr.mxu0 0.0
    %172 = vmatpush1.msra.mxu0 0.0
    %173 = vmatprep.subr.mxu0 0.0
    %174 = vmatpush1.msra.mxu0 0.0
    %175 = vmatprep.subr.mxu0 0.0
    %176 = vmatpush1.msra.mxu0 0.0
    %177 = vmatprep.subr.mxu0 0.0
    %178 = vmatpush1.msra.mxu0 0.0
    %179 = vmatprep.subr.mxu0 0.0
    %180 = vmatpush1.msra.mxu0 0.0
    %181 = vmatprep.subr.mxu0 0.0
    %182 = vmatpush1.msra.mxu0 0.0
    %183 = vmatprep.subr.mxu0 0.0
    %184 = vmatpush1.msra.mxu0 0.0
    %185 = vmatprep.subr.mxu0 0.0
    %186 = vmatpush1.msra.mxu0 0.0
    %187 = vmatprep.subr.mxu0 0.0
    %188 = vmatpush1.msra.mxu0 0.0
    %189 = vmatprep.subr.mxu0 0.0
    %190 = vmatpush1.msra.mxu0 0.0
    %191 = vmatprep.subr.mxu0 0.0
    %192 = vmatpush1.msra.mxu0 0.0
    %193 = vmatprep.subr.mxu0 0.0
    %194 = vmatpush1.msra.mxu0 0.0
    %195 = vmatprep.mubr.f32.mxu0 0.0
    %196 = vmatmul.mubr.f32.gmra.mrb[0].mxu0 %v130
    %v197 = vpop.f32.mrb[0].mxu0
    %v198 = vadd.f32 0.0, %v197
    %v199 = vpop.f32.mrb[0].mxu0
    %200 = vdwg.mxu0
    %v201 = vmul.f32 %v198, 0.03125
    %202 = vmatprep.subr.mxu0 0.0
    %203 = vmatpush1.msra.mxu0 %v83
    %204 = vmatprep.subr.mxu0 0.0
    %205 = vmatpush1.msra.mxu0 %v84
    %206 = vmatprep.subr.mxu0 0.0
    %207 = vmatpush1.msra.mxu0 %v85
    %208 = vmatprep.subr.mxu0 0.0
    %209 = vmatpush1.msra.mxu0 %v86
    %210 = vmatprep.subr.mxu0 0.0
    %211 = vmatpush1.msra.mxu0 %v87
    %212 = vmatprep.subr.mxu0 0.0
    %213 = vmatpush1.msra.mxu0 %v88
    %214 = vmatprep.subr.mxu0 0.0
    %215 = vmatpush1.msra.mxu0 %v89
    %216 = vmatprep.subr.mxu0 0.0
    %217 = vmatpush1.msra.mxu0 %v90
    %218 = vmatprep.subr.mxu0 0.0
    %219 = vmatpush1.msra.mxu0 %v91
    %220 = vmatprep.subr.mxu0 0.0
    %221 = vmatpush1.msra.mxu0 %v92
    %222 = vmatprep.subr.mxu0 0.0
    %223 = vmatpush1.msra.mxu0 %v93
    %224 = vmatprep.subr.mxu0 0.0
    %225 = vmatpush1.msra.mxu0 %v94
    %226 = vmatprep.subr.mxu0 0.0
    %227 = vmatpush1.msra.mxu0 %v95
    %228 = vmatprep.subr.mxu0 0.0
    %229 = vmatpush1.msra.mxu0 %v96
    %230 = vmatprep.subr.mxu0 0.0
    %231 = vmatpush1.msra.mxu0 %v97
    %232 = vmatprep.subr.mxu0 0.0
    %233 = vmatpush1.msra.mxu0 %v98
    %234 = vmatprep.subr.mxu0 0.0
    %235 = vmatpush1.msra.mxu0 0.0
    %236 = vmatprep.subr.mxu0 0.0
    %237 = vmatpush1.msra.mxu0 0.0
    %238 = vmatprep.subr.mxu0 0.0
    %239 = vmatpush1.msra.mxu0 0.0
    %240 = vmatprep.subr.mxu0 0.0
    %241 = vmatpush1.msra.mxu0 0.0
    %242 = vmatprep.subr.mxu0 0.0
    %243 = vmatpush1.msra.mxu0 0.0
    %244 = vmatprep.subr.mxu0 0.0
    %245 = vmatpush1.msra.mxu0 0.0
    %246 = vmatprep.subr.mxu0 0.0
    %247 = vmatpush1.msra.mxu0 0.0
    %248 = vmatprep.subr.mxu0 0.0
    %249 = vmatpush1.msra.mxu0 0.0
    %250 = vmatprep.subr.mxu0 0.0
    %251 = vmatpush1.msra.mxu0 0.0
    %252 = vmatprep.subr.mxu0 0.0
    %253 = vmatpush1.msra.mxu0 0.0
    %254 = vmatprep.subr.mxu0 0.0
    %255 = vmatpush1.msra.mxu0 0.0
    %256 = vmatprep.subr.mxu0 0.0
    %257 = vmatpush1.msra.mxu0 0.0
    %258 = vmatprep.subr.mxu0 0.0
    %259 = vmatpush1.msra.mxu0 0.0
    %260 = vmatprep.subr.mxu0 0.0
    %261 = vmatpush1.msra.mxu0 0.0
    %262 = vmatprep.subr.mxu0 0.0
    %263 = vmatpush1.msra.mxu0 0.0
    %264 = vmatprep.subr.mxu0 0.0
    %265 = vmatpush1.msra.mxu0 0.0
    %266 = vmatprep.mubr.f32.mxu0 0.0
    %267 = vmatmul.mubr.f32.gmra.mrb[0].mxu0 %v201
    %v268 = vpop.f32.mrb[0].mxu0
    %v269 = vadd.f32 0.0, %v268
    %v270 = vpop.f32.mrb[0].mxu0
    %271 = vdwg.mxu0
    %v272 = vmul.f32 %v269, %v269
    %v274 = vrot.slane %v272, 7
    %v276 = vsub.f32 %v269, %v274
    %v277 = vmax.f32 %v276, 0.0
    %v278 = vlaneseq
    %v279 = vshrl.u32 %v278, 7
    %v280 = vsub.s32 0, %v279
    %v281 = vrot.slane %v269, %v280
    %v282 = vsub.f32 %v65, %v281
    %v283 = vadd.f32 %v277, 1e-06
    %v284 = vrsqrt.pop %v283
    %v285 = vlaneseq
    %v286 = vshrl.u32 %v285, 7
    %v287 = vsub.s32 1, %v286
    %v288 = vrot.slane %v284, %v287
    %v289 = vmul.f32 %v282, %v288
    %v290 = vlaneseq
    %v291 = vshrl.u32 %v290, 7
    %v292 = vsub.s32 2, %v291
    %v293 = vrot.slane %v269, %v292
    %v294 = vsub.f32 %v66, %v293
    %v295 = vlaneseq
    %v296 = vshrl.u32 %v295, 7
    %v297 = vsub.s32 3, %v296
    %v298 = vrot.slane %v284, %v297
    %v299 = vmul.f32 %v294, %v298
    %v300 = vld [vmem:[%s3] sm:$0x1]
    %v301 = vlaneseq
    %v302 = vshrl.u32 %v301, 7
    %v303 = vsub.s32 0, %v302
    %v304 = vrot.slane %v300, %v303
    %v305 = vmul.f32 %v289, %v304
    %v306 = vmul.f32 %v299, %v304
    %v307 = vld [vmem:[%s3 + $0x1] sm:$0x1]
    %v308 = vlaneseq
    %v309 = vshrl.u32 %v308, 7
    %v310 = vsub.s32 0, %v309
    %v311 = vrot.slane %v307, %v310
    %v312 = vadd.f32 %v305, %v311
    %v313 = vadd.f32 %v306, %v311
    %v314 = vmax.f32 %v312, 0.0
    %v315 = vmax.f32 %v313, 0.0
    %v316 = vpack.c.bf16 %v315, %v314
    %v317 = vld [vmem:[#allocation2] sm:$0xf]
    %v318 = vld [vmem:[#allocation2 + $0x28] sm:$0xf]
    %v319 = vld [vmem:[#allocation2 + $0x50] sm:$0xf]
    %v320 = vld [vmem:[#allocation2 + $0x78] sm:$0xf]
    %v321 = vld [vmem:[#allocation2 + $0xa0] sm:$0xf]
    %v322 = vld [vmem:[#allocation2 + $0xc8] sm:$0xf]
    %v323 = vld [vmem:[#allocation2 + $0xf0] sm:$0xf]
    %v324 = vld [vmem:[#allocation2 + $0x118] sm:$0xf]
    %v325 = vld [vmem:[#allocation2 + $0x140] sm:$0xf]
    %v326 = vld [vmem:[#allocation2 + $0x168] sm:$0xf]
    %v327 = vld [vmem:[#allocation2 + $0x190] sm:$0xf]
    %v328 = vld [vmem:[#allocation2 + $0x1b8] sm:$0xf]
    %v329 = vld [vmem:[#allocation2 + $0x1e0] sm:$0xf]
    %v330 = vld [vmem:[#allocation2 + $0x208] sm:$0xf]
    %v331 = vld [vmem:[#allocation2 + $0x230] sm:$0xf]
    %v332 = vld [vmem:[#allocation2 + $0x258] sm:$0xf]
    %v333 = vld [vmem:[%s3 + $0x2] sm:$0x1]
    %v334 = vlaneseq
    %v335 = vshrl.u32 %v334, 7
    %v336 = vsub.s32 0, %v335
    %v337 = vrot.slane %v333, %v336
    %v354 = vunpack.c.l.b16 %v317
    %v355 = vunpack.c.l.b16 %v318
    %v356 = vunpack.c.l.b16 %v319
    %v357 = vunpack.c.l.b16 %v320
    %v358 = vunpack.c.l.b16 %v321
    %v359 = vunpack.c.l.b16 %v322
    %v360 = vunpack.c.l.b16 %v323
    %v361 = vunpack.c.l.b16 %v324
    %v362 = vunpack.c.l.b16 %v325
    %v363 = vunpack.c.l.b16 %v326
    %v364 = vunpack.c.l.b16 %v327
    %v365 = vunpack.c.l.b16 %v328
    %v366 = vunpack.c.l.b16 %v329
    %v367 = vunpack.c.l.b16 %v330
    %v368 = vunpack.c.l.b16 %v331
    %v369 = vunpack.c.l.b16 %v332
    %v370 = vpack.c.b16 %v355, %v354
    %v371 = vpack.c.b16 %v357, %v356
    %v372 = vpack.c.b16 %v359, %v358
    %v373 = vpack.c.b16 %v361, %v360
    %v374 = vpack.c.b16 %v363, %v362
    %v375 = vpack.c.b16 %v365, %v364
    %v376 = vpack.c.b16 %v367, %v366
    %v377 = vpack.c.b16 %v369, %v368
    %386 = vmatprep.subr.bf16.mxu0 0
    %387 = vmatpush1.bf16.msra.mxu0 %v370
    %388 = vmatprep.subr.bf16.mxu0 0
    %389 = vmatpush1.bf16.msra.mxu0 %v371
    %390 = vmatprep.subr.bf16.mxu0 0
    %391 = vmatpush1.bf16.msra.mxu0 %v372
    %392 = vmatprep.subr.bf16.mxu0 0
    %393 = vmatpush1.bf16.msra.mxu0 %v373
    %394 = vmatprep.subr.bf16.mxu0 0
    %395 = vmatpush1.bf16.msra.mxu0 %v374
    %396 = vmatprep.subr.bf16.mxu0 0
    %397 = vmatpush1.bf16.msra.mxu0 %v375
    %398 = vmatprep.subr.bf16.mxu0 0
    %399 = vmatpush1.bf16.msra.mxu0 %v376
    %400 = vmatprep.subr.bf16.mxu0 0
    %401 = vmatpush1.bf16.msra.mxu0 %v377
    %402 = vmatprep.subr.bf16.mxu0 0
    %403 = vmatpush1.bf16.msra.mxu0 0
    %404 = vmatprep.subr.bf16.mxu0 0
    %405 = vmatpush1.bf16.msra.mxu0 0
    %406 = vmatprep.subr.bf16.mxu0 0
    %407 = vmatpush1.bf16.msra.mxu0 0
    %408 = vmatprep.subr.bf16.mxu0 0
    %409 = vmatpush1.bf16.msra.mxu0 0
    %410 = vmatprep.subr.bf16.mxu0 0
    %411 = vmatpush1.bf16.msra.mxu0 0
    %412 = vmatprep.subr.bf16.mxu0 0
    %413 = vmatpush1.bf16.msra.mxu0 0
    %414 = vmatprep.subr.bf16.mxu0 0
    %415 = vmatpush1.bf16.msra.mxu0 0
    %416 = vmatprep.subr.bf16.mxu0 0
    %417 = vmatpush1.bf16.msra.mxu0 0
    %418 = vmatprep.mubr.bf16.mxu0 0
    %419 = vmatmul.mubr.bf16.gmra.mrb[0].mxu0 %v316
    %v420 = vpop.f32.mrb[0].mxu0
    %v421 = vadd.f32 %v337, %v420
    %v422 = vpop.f32.mrb[0].mxu0
    %v423 = vpop.f32.mrb[0].mxu0
    %v424 = vadd.f32 %v337, %v423
    %v425 = vpop.f32.mrb[0].mxu0
    %426 = vdwg.mxu0
    %v427 = vmul.f32 %v421, %v421
    %v428 = vmul.f32 %v424, %v424
    %v429 = vrot.slane %v421, 4
    %v430 = vadd.f32 %v421, %v429
    %v431 = vrot.slane %v430, 2
    %v432 = vadd.f32 %v430, %v431
    %v433 = vrot.slane %v432, 1
    %v434 = vadd.f32 %v432, %v433
    %v435 = vrot.slane %v427, 4
    %v436 = vadd.f32 %v427, %v435
    %v437 = vrot.slane %v436, 2
    %v438 = vadd.f32 %v436, %v437
    %v439 = vrot.slane %v438, 1
    %v440 = vadd.f32 %v438, %v439
    %v441 = vrot.slane %v424, 4
    %v442 = vadd.f32 %v424, %v441
    %v443 = vrot.slane %v442, 2
    %v444 = vadd.f32 %v442, %v443
    %v445 = vrot.slane %v444, 1
    %v446 = vadd.f32 %v444, %v445
    %v447 = vrot.slane %v428, 4
    %v448 = vadd.f32 %v428, %v447
    %v449 = vrot.slane %v448, 2
    %v450 = vadd.f32 %v448, %v449
    %v451 = vrot.slane %v450, 1
    %v452 = vadd.f32 %v450, %v451
    %v453 = vsel %vm125, %v434, %v440
    %v454 = vsel %vm127, %v453, %v446
    %v455 = vsel %vm129, %v454, %v452
    %456 = vmatprep.subr.mxu0 0.0
    %457 = vmatpush1.msra.mxu0 %v67
    %458 = vmatprep.subr.mxu0 0.0
    %459 = vmatpush1.msra.mxu0 %v68
    %460 = vmatprep.subr.mxu0 0.0
    %461 = vmatpush1.msra.mxu0 %v69
    %462 = vmatprep.subr.mxu0 0.0
    %463 = vmatpush1.msra.mxu0 %v70
    %464 = vmatprep.subr.mxu0 0.0
    %465 = vmatpush1.msra.mxu0 %v71
    %466 = vmatprep.subr.mxu0 0.0
    %467 = vmatpush1.msra.mxu0 %v72
    %468 = vmatprep.subr.mxu0 0.0
    %469 = vmatpush1.msra.mxu0 %v73
    %470 = vmatprep.subr.mxu0 0.0
    %471 = vmatpush1.msra.mxu0 %v74
    %472 = vmatprep.subr.mxu0 0.0
    %473 = vmatpush1.msra.mxu0 %v75
    %474 = vmatprep.subr.mxu0 0.0
    %475 = vmatpush1.msra.mxu0 %v76
    %476 = vmatprep.subr.mxu0 0.0
    %477 = vmatpush1.msra.mxu0 %v77
    %478 = vmatprep.subr.mxu0 0.0
    %479 = vmatpush1.msra.mxu0 %v78
    %480 = vmatprep.subr.mxu0 0.0
    %481 = vmatpush1.msra.mxu0 %v79
    %482 = vmatprep.subr.mxu0 0.0
    %483 = vmatpush1.msra.mxu0 %v80
    %484 = vmatprep.subr.mxu0 0.0
    %485 = vmatpush1.msra.mxu0 %v81
    %486 = vmatprep.subr.mxu0 0.0
    %487 = vmatpush1.msra.mxu0 %v82
    %488 = vmatprep.subr.mxu0 0.0
    %489 = vmatpush1.msra.mxu0 0.0
    %490 = vmatprep.subr.mxu0 0.0
    %491 = vmatpush1.msra.mxu0 0.0
    %492 = vmatprep.subr.mxu0 0.0
    %493 = vmatpush1.msra.mxu0 0.0
    %494 = vmatprep.subr.mxu0 0.0
    %495 = vmatpush1.msra.mxu0 0.0
    %496 = vmatprep.subr.mxu0 0.0
    %497 = vmatpush1.msra.mxu0 0.0
    %498 = vmatprep.subr.mxu0 0.0
    %499 = vmatpush1.msra.mxu0 0.0
    %500 = vmatprep.subr.mxu0 0.0
    %501 = vmatpush1.msra.mxu0 0.0
    %502 = vmatprep.subr.mxu0 0.0
    %503 = vmatpush1.msra.mxu0 0.0
    %504 = vmatprep.subr.mxu0 0.0
    %505 = vmatpush1.msra.mxu0 0.0
    %506 = vmatprep.subr.mxu0 0.0
    %507 = vmatpush1.msra.mxu0 0.0
    %508 = vmatprep.subr.mxu0 0.0
    %509 = vmatpush1.msra.mxu0 0.0
    %510 = vmatprep.subr.mxu0 0.0
    %511 = vmatpush1.msra.mxu0 0.0
    %512 = vmatprep.subr.mxu0 0.0
    %513 = vmatpush1.msra.mxu0 0.0
    %514 = vmatprep.subr.mxu0 0.0
    %515 = vmatpush1.msra.mxu0 0.0
    %516 = vmatprep.subr.mxu0 0.0
    %517 = vmatpush1.msra.mxu0 0.0
    %518 = vmatprep.subr.mxu0 0.0
    %519 = vmatpush1.msra.mxu0 0.0
    %520 = vmatprep.mubr.f32.mxu0 0.0
    %521 = vmatmul.mubr.f32.gmra.mrb[0].mxu0 %v455
    %v522 = vpop.f32.mrb[0].mxu0
    %v523 = vadd.f32 0.0, %v522
    %v524 = vpop.f32.mrb[0].mxu0
    %525 = vdwg.mxu0
    %v526 = vmul.f32 %v523, 0.03125
    %527 = vmatprep.subr.mxu0 0.0
    %528 = vmatpush1.msra.mxu0 %v83
    %529 = vmatprep.subr.mxu0 0.0
    %530 = vmatpush1.msra.mxu0 %v84
    %531 = vmatprep.subr.mxu0 0.0
    %532 = vmatpush1.msra.mxu0 %v85
    %533 = vmatprep.subr.mxu0 0.0
    %534 = vmatpush1.msra.mxu0 %v86
    %535 = vmatprep.subr.mxu0 0.0
    %536 = vmatpush1.msra.mxu0 %v87
    %537 = vmatprep.subr.mxu0 0.0
    %538 = vmatpush1.msra.mxu0 %v88
    %539 = vmatprep.subr.mxu0 0.0
    %540 = vmatpush1.msra.mxu0 %v89
    %541 = vmatprep.subr.mxu0 0.0
    %542 = vmatpush1.msra.mxu0 %v90
    %543 = vmatprep.subr.mxu0 0.0
    %544 = vmatpush1.msra.mxu0 %v91
    %545 = vmatprep.subr.mxu0 0.0
    %546 = vmatpush1.msra.mxu0 %v92
    %547 = vmatprep.subr.mxu0 0.0
    %548 = vmatpush1.msra.mxu0 %v93
    %549 = vmatprep.subr.mxu0 0.0
    %550 = vmatpush1.msra.mxu0 %v94
    %551 = vmatprep.subr.mxu0 0.0
    %552 = vmatpush1.msra.mxu0 %v95
    %553 = vmatprep.subr.mxu0 0.0
    %554 = vmatpush1.msra.mxu0 %v96
    %555 = vmatprep.subr.mxu0 0.0
    %556 = vmatpush1.msra.mxu0 %v97
    %557 = vmatprep.subr.mxu0 0.0
    %558 = vmatpush1.msra.mxu0 %v98
    %559 = vmatprep.subr.mxu0 0.0
    %560 = vmatpush1.msra.mxu0 0.0
    %561 = vmatprep.subr.mxu0 0.0
    %562 = vmatpush1.msra.mxu0 0.0
    %563 = vmatprep.subr.mxu0 0.0
    %564 = vmatpush1.msra.mxu0 0.0
    %565 = vmatprep.subr.mxu0 0.0
    %566 = vmatpush1.msra.mxu0 0.0
    %567 = vmatprep.subr.mxu0 0.0
    %568 = vmatpush1.msra.mxu0 0.0
    %569 = vmatprep.subr.mxu0 0.0
    %570 = vmatpush1.msra.mxu0 0.0
    %571 = vmatprep.subr.mxu0 0.0
    %572 = vmatpush1.msra.mxu0 0.0
    %573 = vmatprep.subr.mxu0 0.0
    %574 = vmatpush1.msra.mxu0 0.0
    %575 = vmatprep.subr.mxu0 0.0
    %576 = vmatpush1.msra.mxu0 0.0
    %577 = vmatprep.subr.mxu0 0.0
    %578 = vmatpush1.msra.mxu0 0.0
    %579 = vmatprep.subr.mxu0 0.0
    %580 = vmatpush1.msra.mxu0 0.0
    %581 = vmatprep.subr.mxu0 0.0
    %582 = vmatpush1.msra.mxu0 0.0
    %583 = vmatprep.subr.mxu0 0.0
    %584 = vmatpush1.msra.mxu0 0.0
    %585 = vmatprep.subr.mxu0 0.0
    %586 = vmatpush1.msra.mxu0 0.0
    %587 = vmatprep.subr.mxu0 0.0
    %588 = vmatpush1.msra.mxu0 0.0
    %589 = vmatprep.subr.mxu0 0.0
    %590 = vmatpush1.msra.mxu0 0.0
    %591 = vmatprep.mubr.f32.mxu0 0.0
    %592 = vmatmul.mubr.f32.gmra.mrb[0].mxu0 %v526
    %v593 = vpop.f32.mrb[0].mxu0
    %v594 = vadd.f32 0.0, %v593
    %v595 = vpop.f32.mrb[0].mxu0
    %596 = vdwg.mxu0
    %v597 = vmul.f32 %v594, %v594
    %v599 = vrot.slane %v597, 7
    %v601 = vsub.f32 %v594, %v599
    %v602 = vmax.f32 %v601, 0.0
    %v603 = vlaneseq
    %v604 = vshrl.u32 %v603, 7
    %v605 = vsub.s32 0, %v604
    %v606 = vrot.slane %v594, %v605
    %v607 = vsub.f32 %v421, %v606
    %v608 = vadd.f32 %v602, 1e-06
    %v609 = vrsqrt.pop %v608
    %v610 = vlaneseq
    %v611 = vshrl.u32 %v610, 7
    %v612 = vsub.s32 1, %v611
    %v613 = vrot.slane %v609, %v612
    %v614 = vmul.f32 %v607, %v613
    %v615 = vlaneseq
    %v616 = vshrl.u32 %v615, 7
    %v617 = vsub.s32 2, %v616
    %v618 = vrot.slane %v594, %v617
    %v619 = vsub.f32 %v424, %v618
    %v620 = vlaneseq
    %v621 = vshrl.u32 %v620, 7
    %v622 = vsub.s32 3, %v621
    %v623 = vrot.slane %v609, %v622
    %v624 = vmul.f32 %v619, %v623
    %v625 = vld [vmem:[%s3 + $0x3] sm:$0x1]
    %v626 = vlaneseq
    %v627 = vshrl.u32 %v626, 7
    %v628 = vsub.s32 0, %v627
    %v629 = vrot.slane %v625, %v628
    %v630 = vmul.f32 %v614, %v629
    %v631 = vmul.f32 %v624, %v629
    %v632 = vld [vmem:[%s3 + $0x4] sm:$0x1]
    %v633 = vlaneseq
    %v634 = vshrl.u32 %v633, 7
    %v635 = vsub.s32 0, %v634
    %v636 = vrot.slane %v632, %v635
    %v637 = vadd.f32 %v630, %v636
    %v638 = vadd.f32 %v631, %v636
    %v639 = vmax.f32 %v637, 0.0
    %v640 = vmax.f32 %v638, 0.0
    %v641 = vpack.c.bf16 %v640, %v639
    %v642 = vld [vmem:[#allocation2 + $0x4] sm:$0xf]
    %v643 = vld [vmem:[#allocation2 + $0x2c] sm:$0xf]
    %v644 = vld [vmem:[#allocation2 + $0x54] sm:$0xf]
    %v645 = vld [vmem:[#allocation2 + $0x7c] sm:$0xf]
    %v646 = vld [vmem:[#allocation2 + $0xa4] sm:$0xf]
    %v647 = vld [vmem:[#allocation2 + $0xcc] sm:$0xf]
    %v648 = vld [vmem:[#allocation2 + $0xf4] sm:$0xf]
    %v649 = vld [vmem:[#allocation2 + $0x11c] sm:$0xf]
    %v650 = vld [vmem:[#allocation2 + $0x144] sm:$0xf]
    %v651 = vld [vmem:[#allocation2 + $0x16c] sm:$0xf]
    %v652 = vld [vmem:[#allocation2 + $0x194] sm:$0xf]
    %v653 = vld [vmem:[#allocation2 + $0x1bc] sm:$0xf]
    %v654 = vld [vmem:[#allocation2 + $0x1e4] sm:$0xf]
    %v655 = vld [vmem:[#allocation2 + $0x20c] sm:$0xf]
    %v656 = vld [vmem:[#allocation2 + $0x234] sm:$0xf]
    %v657 = vld [vmem:[#allocation2 + $0x25c] sm:$0xf]
    %v658 = vld [vmem:[%s3 + $0x5] sm:$0x1]
    %v659 = vlaneseq
    %v660 = vshrl.u32 %v659, 7
    %v661 = vsub.s32 0, %v660
    %v662 = vrot.slane %v658, %v661
    %v679 = vunpack.c.l.b16 %v642
    %v680 = vunpack.c.l.b16 %v643
    %v681 = vunpack.c.l.b16 %v644
    %v682 = vunpack.c.l.b16 %v645
    %v683 = vunpack.c.l.b16 %v646
    %v684 = vunpack.c.l.b16 %v647
    %v685 = vunpack.c.l.b16 %v648
    %v686 = vunpack.c.l.b16 %v649
    %v687 = vunpack.c.l.b16 %v650
    %v688 = vunpack.c.l.b16 %v651
    %v689 = vunpack.c.l.b16 %v652
    %v690 = vunpack.c.l.b16 %v653
    %v691 = vunpack.c.l.b16 %v654
    %v692 = vunpack.c.l.b16 %v655
    %v693 = vunpack.c.l.b16 %v656
    %v694 = vunpack.c.l.b16 %v657
    %v695 = vpack.c.b16 %v680, %v679
    %v696 = vpack.c.b16 %v682, %v681
    %v697 = vpack.c.b16 %v684, %v683
    %v698 = vpack.c.b16 %v686, %v685
    %v699 = vpack.c.b16 %v688, %v687
    %v700 = vpack.c.b16 %v690, %v689
    %v701 = vpack.c.b16 %v692, %v691
    %v702 = vpack.c.b16 %v694, %v693
    %711 = vmatprep.subr.bf16.mxu0 0
    %712 = vmatpush1.bf16.msra.mxu0 %v695
    %713 = vmatprep.subr.bf16.mxu0 0
    %714 = vmatpush1.bf16.msra.mxu0 %v696
    %715 = vmatprep.subr.bf16.mxu0 0
    %716 = vmatpush1.bf16.msra.mxu0 %v697
    %717 = vmatprep.subr.bf16.mxu0 0
    %718 = vmatpush1.bf16.msra.mxu0 %v698
    %719 = vmatprep.subr.bf16.mxu0 0
    %720 = vmatpush1.bf16.msra.mxu0 %v699
    %721 = vmatprep.subr.bf16.mxu0 0
    %722 = vmatpush1.bf16.msra.mxu0 %v700
    %723 = vmatprep.subr.bf16.mxu0 0
    %724 = vmatpush1.bf16.msra.mxu0 %v701
    %725 = vmatprep.subr.bf16.mxu0 0
    %726 = vmatpush1.bf16.msra.mxu0 %v702
    %727 = vmatprep.subr.bf16.mxu0 0
    %728 = vmatpush1.bf16.msra.mxu0 0
    %729 = vmatprep.subr.bf16.mxu0 0
    %730 = vmatpush1.bf16.msra.mxu0 0
    %731 = vmatprep.subr.bf16.mxu0 0
    %732 = vmatpush1.bf16.msra.mxu0 0
    %733 = vmatprep.subr.bf16.mxu0 0
    %734 = vmatpush1.bf16.msra.mxu0 0
    %735 = vmatprep.subr.bf16.mxu0 0
    %736 = vmatpush1.bf16.msra.mxu0 0
    %737 = vmatprep.subr.bf16.mxu0 0
    %738 = vmatpush1.bf16.msra.mxu0 0
    %739 = vmatprep.subr.bf16.mxu0 0
    %740 = vmatpush1.bf16.msra.mxu0 0
    %741 = vmatprep.subr.bf16.mxu0 0
    %742 = vmatpush1.bf16.msra.mxu0 0
    %743 = vmatprep.mubr.bf16.mxu0 0
    %744 = vmatmul.mubr.bf16.gmra.mrb[0].mxu0 %v641
    %v745 = vpop.f32.mrb[0].mxu0
    %v746 = vadd.f32 %v662, %v745
    %v747 = vpop.f32.mrb[0].mxu0
    %v748 = vpop.f32.mrb[0].mxu0
    %v749 = vadd.f32 %v662, %v748
    %v750 = vpop.f32.mrb[0].mxu0
    %751 = vdwg.mxu0
    %v752 = vrot.slane %v746, 4
    %v753 = vmax.f32 %v746, %v752
    %v754 = vrot.slane %v753, 2
    %v755 = vmax.f32 %v753, %v754
    %v756 = vrot.slane %v755, 1
    %v757 = vmax.f32 %v755, %v756
    %v758 = vrot.slane %v749, 4
    %v759 = vmax.f32 %v749, %v758
    %v760 = vrot.slane %v759, 2
    %v761 = vmax.f32 %v759, %v760
    %v762 = vrot.slane %v761, 1
    %v763 = vmax.f32 %v761, %v762
    %v764 = vsel %vm125, %v757, %v763
    %v765 = vmul.f32 %v764, %v764
    %v766 = vadd.f32 %v764, 0.0
    %v767 = vadd.f32 %v765, 0.0
    %v769 = vrot.slane %v767, 7
    %v772 = vrot.slane %v766, 7
    %v774 = vrot.slane %v767, 6
    %v776 = vsel %vm125, %v766, %v769
    %v777 = vsel %vm127, %v776, %v772
    %v778 = vsel %vm129, %v777, %v774
    %779 = vmatprep.subr.mxu0 0.0
    %780 = vmatpush1.msra.mxu0 %v67
    %781 = vmatprep.subr.mxu0 0.0
    %782 = vmatpush1.msra.mxu0 %v68
    %783 = vmatprep.subr.mxu0 0.0
    %784 = vmatpush1.msra.mxu0 %v69
    %785 = vmatprep.subr.mxu0 0.0
    %786 = vmatpush1.msra.mxu0 %v70
    %787 = vmatprep.subr.mxu0 0.0
    %788 = vmatpush1.msra.mxu0 %v71
    %789 = vmatprep.subr.mxu0 0.0
    %790 = vmatpush1.msra.mxu0 %v72
    %791 = vmatprep.subr.mxu0 0.0
    %792 = vmatpush1.msra.mxu0 %v73
    %793 = vmatprep.subr.mxu0 0.0
    %794 = vmatpush1.msra.mxu0 %v74
    %795 = vmatprep.subr.mxu0 0.0
    %796 = vmatpush1.msra.mxu0 %v75
    %797 = vmatprep.subr.mxu0 0.0
    %798 = vmatpush1.msra.mxu0 %v76
    %799 = vmatprep.subr.mxu0 0.0
    %800 = vmatpush1.msra.mxu0 %v77
    %801 = vmatprep.subr.mxu0 0.0
    %802 = vmatpush1.msra.mxu0 %v78
    %803 = vmatprep.subr.mxu0 0.0
    %804 = vmatpush1.msra.mxu0 %v79
    %805 = vmatprep.subr.mxu0 0.0
    %806 = vmatpush1.msra.mxu0 %v80
    %807 = vmatprep.subr.mxu0 0.0
    %808 = vmatpush1.msra.mxu0 %v81
    %809 = vmatprep.subr.mxu0 0.0
    %810 = vmatpush1.msra.mxu0 %v82
    %811 = vmatprep.subr.mxu0 0.0
    %812 = vmatpush1.msra.mxu0 0.0
    %813 = vmatprep.subr.mxu0 0.0
    %814 = vmatpush1.msra.mxu0 0.0
    %815 = vmatprep.subr.mxu0 0.0
    %816 = vmatpush1.msra.mxu0 0.0
    %817 = vmatprep.subr.mxu0 0.0
    %818 = vmatpush1.msra.mxu0 0.0
    %819 = vmatprep.subr.mxu0 0.0
    %820 = vmatpush1.msra.mxu0 0.0
    %821 = vmatprep.subr.mxu0 0.0
    %822 = vmatpush1.msra.mxu0 0.0
    %823 = vmatprep.subr.mxu0 0.0
    %824 = vmatpush1.msra.mxu0 0.0
    %825 = vmatprep.subr.mxu0 0.0
    %826 = vmatpush1.msra.mxu0 0.0
    %827 = vmatprep.subr.mxu0 0.0
    %828 = vmatpush1.msra.mxu0 0.0
    %829 = vmatprep.subr.mxu0 0.0
    %830 = vmatpush1.msra.mxu0 0.0
    %831 = vmatprep.subr.mxu0 0.0
    %832 = vmatpush1.msra.mxu0 0.0
    %833 = vmatprep.subr.mxu0 0.0
    %834 = vmatpush1.msra.mxu0 0.0
    %835 = vmatprep.subr.mxu0 0.0
    %836 = vmatpush1.msra.mxu0 0.0
    %837 = vmatprep.subr.mxu0 0.0
    %838 = vmatpush1.msra.mxu0 0.0
    %839 = vmatprep.subr.mxu0 0.0
    %840 = vmatpush1.msra.mxu0 0.0
    %841 = vmatprep.subr.mxu0 0.0
    %842 = vmatpush1.msra.mxu0 0.0
    %843 = vmatprep.mubr.f32.mxu0 0.0
    %844 = vmatmul.mubr.f32.gmra.mrb[0].mxu0 %v778
    %v845 = vpop.f32.mrb[0].mxu0
    %v846 = vadd.f32 0.0, %v845
    %v847 = vpop.f32.mrb[0].mxu0
    %848 = vdwg.mxu0
    %v849 = vmul.f32 %v846, 0.25
    %850 = vmatprep.subr.mxu0 0.0
    %851 = vmatpush1.msra.mxu0 %v83
    %852 = vmatprep.subr.mxu0 0.0
    %853 = vmatpush1.msra.mxu0 %v84
    %854 = vmatprep.subr.mxu0 0.0
    %855 = vmatpush1.msra.mxu0 %v85
    %856 = vmatprep.subr.mxu0 0.0
    %857 = vmatpush1.msra.mxu0 %v86
    %858 = vmatprep.subr.mxu0 0.0
    %859 = vmatpush1.msra.mxu0 %v87
    %860 = vmatprep.subr.mxu0 0.0
    %861 = vmatpush1.msra.mxu0 %v88
    %862 = vmatprep.subr.mxu0 0.0
    %863 = vmatpush1.msra.mxu0 %v89
    %864 = vmatprep.subr.mxu0 0.0
    %865 = vmatpush1.msra.mxu0 %v90
    %866 = vmatprep.subr.mxu0 0.0
    %867 = vmatpush1.msra.mxu0 %v91
    %868 = vmatprep.subr.mxu0 0.0
    %869 = vmatpush1.msra.mxu0 %v92
    %870 = vmatprep.subr.mxu0 0.0
    %871 = vmatpush1.msra.mxu0 %v93
    %872 = vmatprep.subr.mxu0 0.0
    %873 = vmatpush1.msra.mxu0 %v94
    %874 = vmatprep.subr.mxu0 0.0
    %875 = vmatpush1.msra.mxu0 %v95
    %876 = vmatprep.subr.mxu0 0.0
    %877 = vmatpush1.msra.mxu0 %v96
    %878 = vmatprep.subr.mxu0 0.0
    %879 = vmatpush1.msra.mxu0 %v97
    %880 = vmatprep.subr.mxu0 0.0
    %881 = vmatpush1.msra.mxu0 %v98
    %882 = vmatprep.subr.mxu0 0.0
    %883 = vmatpush1.msra.mxu0 0.0
    %884 = vmatprep.subr.mxu0 0.0
    %885 = vmatpush1.msra.mxu0 0.0
    %886 = vmatprep.subr.mxu0 0.0
    %887 = vmatpush1.msra.mxu0 0.0
    %888 = vmatprep.subr.mxu0 0.0
    %889 = vmatpush1.msra.mxu0 0.0
    %890 = vmatprep.subr.mxu0 0.0
    %891 = vmatpush1.msra.mxu0 0.0
    %892 = vmatprep.subr.mxu0 0.0
    %893 = vmatpush1.msra.mxu0 0.0
    %894 = vmatprep.subr.mxu0 0.0
    %895 = vmatpush1.msra.mxu0 0.0
    %896 = vmatprep.subr.mxu0 0.0
    %897 = vmatpush1.msra.mxu0 0.0
    %898 = vmatprep.subr.mxu0 0.0
    %899 = vmatpush1.msra.mxu0 0.0
    %900 = vmatprep.subr.mxu0 0.0
    %901 = vmatpush1.msra.mxu0 0.0
    %902 = vmatprep.subr.mxu0 0.0
    %903 = vmatpush1.msra.mxu0 0.0
    %904 = vmatprep.subr.mxu0 0.0
    %905 = vmatpush1.msra.mxu0 0.0
    %906 = vmatprep.subr.mxu0 0.0
    %907 = vmatpush1.msra.mxu0 0.0
    %908 = vmatprep.subr.mxu0 0.0
    %909 = vmatpush1.msra.mxu0 0.0
    %910 = vmatprep.subr.mxu0 0.0
    %911 = vmatpush1.msra.mxu0 0.0
    %912 = vmatprep.subr.mxu0 0.0
    %913 = vmatpush1.msra.mxu0 0.0
    %914 = vmatprep.mubr.f32.mxu0 0.0
    %915 = vmatmul.mubr.f32.gmra.mrb[0].mxu0 %v849
    %v916 = vpop.f32.mrb[0].mxu0
    %v917 = vadd.f32 0.0, %v916
    %v918 = vpop.f32.mrb[0].mxu0
    %919 = vdwg.mxu0
    %v920 = vmul.f32 %v917, %v917
    %v922 = vrot.slane %v920, 7
    %v924 = vsub.f32 %v917, %v922
    %v925 = vmax.f32 %v924, 0.0
    %v926 = vsub.f32 %v764, %v917
    %v927 = vadd.f32 %v925, 1e-06
    %v928 = vrsqrt.pop %v927
    %v930 = vrot.slane %v928, 1
    %v932 = vmul.f32 %v926, %v930
    %v934 = vrot.slane %v917, 1
    %v936 = vsub.f32 %v764, %v934
    %v937 = vrot.slane %v928, 2
    %v939 = vmul.f32 %v936, %v937
    %v940 = vsel %vm125, %v932, %v939
    %v941 = vld [vmem:[%s3 + $0x6] sm:$0x1]
    %v942 = vlaneseq
    %v943 = vshrl.u32 %v942, 7
    %v944 = vsub.s32 0, %v943
    %v945 = vrot.slane %v941, %v944
    %v946 = vmul.f32 %v940, %v945
    %v947 = vld [vmem:[%s3 + $0x7] sm:$0x1]
    %v948 = vlaneseq
    %v949 = vshrl.u32 %v948, 7
    %v950 = vsub.s32 0, %v949
    %v951 = vrot.slane %v947, %v950
    %v952 = vadd.f32 %v946, %v951
    %v953 = vmax.f32 %v952, 0.0
    %v954 = vpack.c.bf16 %v953, %v953
    %v955 = vld [vmem:[#allocation2 + $0x8] sm:$0xf]
    %v956 = vld [vmem:[#allocation2 + $0x30] sm:$0xf]
    %v957 = vld [vmem:[#allocation2 + $0x58] sm:$0xf]
    %v958 = vld [vmem:[#allocation2 + $0x80] sm:$0xf]
    %v959 = vld [vmem:[#allocation2 + $0xa8] sm:$0xf]
    %v960 = vld [vmem:[#allocation2 + $0xd0] sm:$0xf]
    %v961 = vld [vmem:[#allocation2 + $0xf8] sm:$0xf]
    %v962 = vld [vmem:[#allocation2 + $0x120] sm:$0xf]
    %v963 = vld [vmem:[#allocation2 + $0x148] sm:$0xf]
    %v964 = vld [vmem:[#allocation2 + $0x170] sm:$0xf]
    %v965 = vld [vmem:[#allocation2 + $0x198] sm:$0xf]
    %v966 = vld [vmem:[#allocation2 + $0x1c0] sm:$0xf]
    %v967 = vld [vmem:[#allocation2 + $0x1e8] sm:$0xf]
    %v968 = vld [vmem:[#allocation2 + $0x210] sm:$0xf]
    %v969 = vld [vmem:[#allocation2 + $0x238] sm:$0xf]
    %v970 = vld [vmem:[#allocation2 + $0x260] sm:$0xf]
    %v971 = vld [vmem:[%s3 + $0x8] sm:$0x1]
    %v972 = vlaneseq
    %v973 = vshrl.u32 %v972, 7
    %v974 = vsub.s32 0, %v973
    %v975 = vrot.slane %v971, %v974
    %v992 = vunpack.c.l.b16 %v955
    %v993 = vunpack.c.l.b16 %v956
    %v994 = vunpack.c.l.b16 %v957
    %v995 = vunpack.c.l.b16 %v958
    %v996 = vunpack.c.l.b16 %v959
    %v997 = vunpack.c.l.b16 %v960
    %v998 = vunpack.c.l.b16 %v961
    %v999 = vunpack.c.l.b16 %v962
    %v1000 = vunpack.c.l.b16 %v963
    %v1001 = vunpack.c.l.b16 %v964
    %v1002 = vunpack.c.l.b16 %v965
    %v1003 = vunpack.c.l.b16 %v966
    %v1004 = vunpack.c.l.b16 %v967
    %v1005 = vunpack.c.l.b16 %v968
    %v1006 = vunpack.c.l.b16 %v969
    %v1007 = vunpack.c.l.b16 %v970
    %v1008 = vpack.c.b16 %v993, %v992
    %v1009 = vpack.c.b16 %v995, %v994
    %v1010 = vpack.c.b16 %v997, %v996
    %v1011 = vpack.c.b16 %v999, %v998
    %v1012 = vpack.c.b16 %v1001, %v1000
    %v1013 = vpack.c.b16 %v1003, %v1002
    %v1014 = vpack.c.b16 %v1005, %v1004
    %v1015 = vpack.c.b16 %v1007, %v1006
    %1024 = vmatprep.subr.bf16.mxu0 0
    %1025 = vmatpush1.bf16.msra.mxu0 %v1008
    %1026 = vmatprep.subr.bf16.mxu0 0
    %1027 = vmatpush1.bf16.msra.mxu0 %v1009
    %1028 = vmatprep.subr.bf16.mxu0 0
    %1029 = vmatpush1.bf16.msra.mxu0 %v1010
    %1030 = vmatprep.subr.bf16.mxu0 0
    %1031 = vmatpush1.bf16.msra.mxu0 %v1011
    %1032 = vmatprep.subr.bf16.mxu0 0
    %1033 = vmatpush1.bf16.msra.mxu0 %v1012
    %1034 = vmatprep.subr.bf16.mxu0 0
    %1035 = vmatpush1.bf16.msra.mxu0 %v1013
    %1036 = vmatprep.subr.bf16.mxu0 0
    %1037 = vmatpush1.bf16.msra.mxu0 %v1014
    %1038 = vmatprep.subr.bf16.mxu0 0
    %1039 = vmatpush1.bf16.msra.mxu0 %v1015
    %1040 = vmatprep.subr.bf16.mxu0 0
    %1041 = vmatpush1.bf16.msra.mxu0 0
    %1042 = vmatprep.subr.bf16.mxu0 0
    %1043 = vmatpush1.bf16.msra.mxu0 0
    %1044 = vmatprep.subr.bf16.mxu0 0
    %1045 = vmatpush1.bf16.msra.mxu0 0
    %1046 = vmatprep.subr.bf16.mxu0 0
    %1047 = vmatpush1.bf16.msra.mxu0 0
    %1048 = vmatprep.subr.bf16.mxu0 0
    %1049 = vmatpush1.bf16.msra.mxu0 0
    %1050 = vmatprep.subr.bf16.mxu0 0
    %1051 = vmatpush1.bf16.msra.mxu0 0
    %1052 = vmatprep.subr.bf16.mxu0 0
    %1053 = vmatpush1.bf16.msra.mxu0 0
    %1054 = vmatprep.subr.bf16.mxu0 0
    %1055 = vmatpush1.bf16.msra.mxu0 0
    %1056 = vmatprep.mubr.bf16.mxu0 0
    %1057 = vmatmul.mubr.bf16.gmra.mrb[0].mxu0 %v954
    %v1058 = vpop.f32.mrb[0].mxu0
    %v1059 = vadd.f32 %v975, %v1058
    %v1060 = vpop.f32.mrb[0].mxu0
    %v1061 = vpop.f32.mrb[0].mxu0
    %v1062 = vpop.f32.mrb[0].mxu0
    %1063 = vdwg.mxu0
    %v1064 = vmul.f32 %v1059, %v1059
    %v1065 = vadd.f32 %v1059, 0.0
    %v1066 = vadd.f32 %v1064, 0.0
    %v1068 = vrot.slane %v1066, 7
    %v1071 = vrot.slane %v1065, 7
    %v1073 = vrot.slane %v1066, 6
    %v1075 = vsel %vm125, %v1065, %v1068
    %v1076 = vsel %vm127, %v1075, %v1071
    %v1077 = vsel %vm129, %v1076, %v1073
    %1078 = vmatprep.subr.mxu0 0.0
    %1079 = vmatpush1.msra.mxu0 %v67
    %1080 = vmatprep.subr.mxu0 0.0
    %1081 = vmatpush1.msra.mxu0 %v68
    %1082 = vmatprep.subr.mxu0 0.0
    %1083 = vmatpush1.msra.mxu0 %v69
    %1084 = vmatprep.subr.mxu0 0.0
    %1085 = vmatpush1.msra.mxu0 %v70
    %1086 = vmatprep.subr.mxu0 0.0
    %1087 = vmatpush1.msra.mxu0 %v71
    %1088 = vmatprep.subr.mxu0 0.0
    %1089 = vmatpush1.msra.mxu0 %v72
    %1090 = vmatprep.subr.mxu0 0.0
    %1091 = vmatpush1.msra.mxu0 %v73
    %1092 = vmatprep.subr.mxu0 0.0
    %1093 = vmatpush1.msra.mxu0 %v74
    %1094 = vmatprep.subr.mxu0 0.0
    %1095 = vmatpush1.msra.mxu0 %v75
    %1096 = vmatprep.subr.mxu0 0.0
    %1097 = vmatpush1.msra.mxu0 %v76
    %1098 = vmatprep.subr.mxu0 0.0
    %1099 = vmatpush1.msra.mxu0 %v77
    %1100 = vmatprep.subr.mxu0 0.0
    %1101 = vmatpush1.msra.mxu0 %v78
    %1102 = vmatprep.subr.mxu0 0.0
    %1103 = vmatpush1.msra.mxu0 %v79
    %1104 = vmatprep.subr.mxu0 0.0
    %1105 = vmatpush1.msra.mxu0 %v80
    %1106 = vmatprep.subr.mxu0 0.0
    %1107 = vmatpush1.msra.mxu0 %v81
    %1108 = vmatprep.subr.mxu0 0.0
    %1109 = vmatpush1.msra.mxu0 %v82
    %1110 = vmatprep.subr.mxu0 0.0
    %1111 = vmatpush1.msra.mxu0 0.0
    %1112 = vmatprep.subr.mxu0 0.0
    %1113 = vmatpush1.msra.mxu0 0.0
    %1114 = vmatprep.subr.mxu0 0.0
    %1115 = vmatpush1.msra.mxu0 0.0
    %1116 = vmatprep.subr.mxu0 0.0
    %1117 = vmatpush1.msra.mxu0 0.0
    %1118 = vmatprep.subr.mxu0 0.0
    %1119 = vmatpush1.msra.mxu0 0.0
    %1120 = vmatprep.subr.mxu0 0.0
    %1121 = vmatpush1.msra.mxu0 0.0
    %1122 = vmatprep.subr.mxu0 0.0
    %1123 = vmatpush1.msra.mxu0 0.0
    %1124 = vmatprep.subr.mxu0 0.0
    %1125 = vmatpush1.msra.mxu0 0.0
    %1126 = vmatprep.subr.mxu0 0.0
    %1127 = vmatpush1.msra.mxu0 0.0
    %1128 = vmatprep.subr.mxu0 0.0
    %1129 = vmatpush1.msra.mxu0 0.0
    %1130 = vmatprep.subr.mxu0 0.0
    %1131 = vmatpush1.msra.mxu0 0.0
    %1132 = vmatprep.subr.mxu0 0.0
    %1133 = vmatpush1.msra.mxu0 0.0
    %1134 = vmatprep.subr.mxu0 0.0
    %1135 = vmatpush1.msra.mxu0 0.0
    %1136 = vmatprep.subr.mxu0 0.0
    %1137 = vmatpush1.msra.mxu0 0.0
    %1138 = vmatprep.subr.mxu0 0.0
    %1139 = vmatpush1.msra.mxu0 0.0
    %1140 = vmatprep.subr.mxu0 0.0
    %1141 = vmatpush1.msra.mxu0 0.0
    %1142 = vmatprep.mubr.f32.mxu0 0.0
    %1143 = vmatmul.mubr.f32.gmra.mrb[0].mxu0 %v1077
    %v1144 = vpop.f32.mrb[0].mxu0
    %v1145 = vadd.f32 0.0, %v1144
    %v1146 = vpop.f32.mrb[0].mxu0
    %1147 = vdwg.mxu0
    %v1148 = vmul.f32 %v1145, 0.25
    %1149 = vmatprep.subr.mxu0 0.0
    %1150 = vmatpush1.msra.mxu0 %v83
    %1151 = vmatprep.subr.mxu0 0.0
    %1152 = vmatpush1.msra.mxu0 %v84
    %1153 = vmatprep.subr.mxu0 0.0
    %1154 = vmatpush1.msra.mxu0 %v85
    %1155 = vmatprep.subr.mxu0 0.0
    %1156 = vmatpush1.msra.mxu0 %v86
    %1157 = vmatprep.subr.mxu0 0.0
    %1158 = vmatpush1.msra.mxu0 %v87
    %1159 = vmatprep.subr.mxu0 0.0
    %1160 = vmatpush1.msra.mxu0 %v88
    %1161 = vmatprep.subr.mxu0 0.0
    %1162 = vmatpush1.msra.mxu0 %v89
    %1163 = vmatprep.subr.mxu0 0.0
    %1164 = vmatpush1.msra.mxu0 %v90
    %1165 = vmatprep.subr.mxu0 0.0
    %1166 = vmatpush1.msra.mxu0 %v91
    %1167 = vmatprep.subr.mxu0 0.0
    %1168 = vmatpush1.msra.mxu0 %v92
    %1169 = vmatprep.subr.mxu0 0.0
    %1170 = vmatpush1.msra.mxu0 %v93
    %1171 = vmatprep.subr.mxu0 0.0
    %1172 = vmatpush1.msra.mxu0 %v94
    %1173 = vmatprep.subr.mxu0 0.0
    %1174 = vmatpush1.msra.mxu0 %v95
    %1175 = vmatprep.subr.mxu0 0.0
    %1176 = vmatpush1.msra.mxu0 %v96
    %1177 = vmatprep.subr.mxu0 0.0
    %1178 = vmatpush1.msra.mxu0 %v97
    %1179 = vmatprep.subr.mxu0 0.0
    %1180 = vmatpush1.msra.mxu0 %v98
    %1181 = vmatprep.subr.mxu0 0.0
    %1182 = vmatpush1.msra.mxu0 0.0
    %1183 = vmatprep.subr.mxu0 0.0
    %1184 = vmatpush1.msra.mxu0 0.0
    %1185 = vmatprep.subr.mxu0 0.0
    %1186 = vmatpush1.msra.mxu0 0.0
    %1187 = vmatprep.subr.mxu0 0.0
    %1188 = vmatpush1.msra.mxu0 0.0
    %1189 = vmatprep.subr.mxu0 0.0
    %1190 = vmatpush1.msra.mxu0 0.0
    %1191 = vmatprep.subr.mxu0 0.0
    %1192 = vmatpush1.msra.mxu0 0.0
    %1193 = vmatprep.subr.mxu0 0.0
    %1194 = vmatpush1.msra.mxu0 0.0
    %1195 = vmatprep.subr.mxu0 0.0
    %1196 = vmatpush1.msra.mxu0 0.0
    %1197 = vmatprep.subr.mxu0 0.0
    %1198 = vmatpush1.msra.mxu0 0.0
    %1199 = vmatprep.subr.mxu0 0.0
    %1200 = vmatpush1.msra.mxu0 0.0
    %1201 = vmatprep.subr.mxu0 0.0
    %1202 = vmatpush1.msra.mxu0 0.0
    %1203 = vmatprep.subr.mxu0 0.0
    %1204 = vmatpush1.msra.mxu0 0.0
    %1205 = vmatprep.subr.mxu0 0.0
    %1206 = vmatpush1.msra.mxu0 0.0
    %1207 = vmatprep.subr.mxu0 0.0
    %1208 = vmatpush1.msra.mxu0 0.0
    %1209 = vmatprep.subr.mxu0 0.0
    %1210 = vmatpush1.msra.mxu0 0.0
    %1211 = vmatprep.subr.mxu0 0.0
    %1212 = vmatpush1.msra.mxu0 0.0
    %1213 = vmatprep.mubr.f32.mxu0 0.0
    %1214 = vmatmul.mubr.f32.gmra.mrb[0].mxu0 %v1148
    %v1215 = vpop.f32.mrb[0].mxu0
    %v1216 = vadd.f32 0.0, %v1215
    %v1217 = vpop.f32.mrb[0].mxu0
    %1218 = vdwg.mxu0
    %v1219 = vmul.f32 %v1216, %v1216
    %v1221 = vrot.slane %v1219, 7
    %v1223 = vsub.f32 %v1216, %v1221
    %v1224 = vmax.f32 %v1223, 0.0
    %v1225 = vsub.f32 %v1059, %v1216
    %v1226 = vadd.f32 %v1224, 1e-06
    %v1227 = vrsqrt.pop %v1226
    %v1229 = vrot.slane %v1227, 1
    %v1231 = vmul.f32 %v1225, %v1229
    %v1233 = vrot.slane %v1216, 1
    %v1235 = vsub.f32 %v1059, %v1233
    %v1236 = vrot.slane %v1227, 2
    %v1238 = vmul.f32 %v1235, %v1236
    %v1239 = vsel %vm125, %v1231, %v1238
    %v1240 = vld [vmem:[%s3 + $0x9] sm:$0x1]
    %v1241 = vlaneseq
    %v1242 = vshrl.u32 %v1241, 7
    %v1243 = vsub.s32 0, %v1242
    %v1244 = vrot.slane %v1240, %v1243
    %v1245 = vmul.f32 %v1239, %v1244
    %v1246 = vld [vmem:[%s3 + $0xa] sm:$0x1]
    %v1247 = vlaneseq
    %v1248 = vshrl.u32 %v1247, 7
    %v1249 = vsub.s32 0, %v1248
    %v1250 = vrot.slane %v1246, %v1249
    %v1251 = vadd.f32 %v1245, %v1250
    %v1252 = vmax.f32 %v1251, 0.0
    %v1253 = vld [vmem:[#allocation5 + $0x10] sm:$0xff]
    %v1254 = vld [vmem:[#allocation5 + $0x70] sm:$0xff]
    %v1255 = vld [vmem:[#allocation5 + $0xd0] sm:$0xff]
    %v1256 = vld [vmem:[#allocation5 + $0x130] sm:$0xff]
    %v1257 = vld [vmem:[#allocation5 + $0x190] sm:$0xff]
    %v1258 = vld [vmem:[#allocation5 + $0x1f0] sm:$0xff]
    %v1259 = vld [vmem:[#allocation5 + $0x250] sm:$0xff]
    %v1260 = vld [vmem:[#allocation5 + $0x2b0] sm:$0xff]
    %v1261 = vld [vmem:[#allocation5 + $0x310] sm:$0xff]
    %v1262 = vld [vmem:[#allocation5 + $0x370] sm:$0xff]
    %v1263 = vld [vmem:[#allocation5 + $0x3d0] sm:$0xff]
    %v1264 = vld [vmem:[#allocation5 + $0x430] sm:$0xff]
    %v1265 = vld [vmem:[#allocation5 + $0x490] sm:$0xff]
    %v1266 = vld [vmem:[#allocation5 + $0x4f0] sm:$0xff]
    %v1267 = vld [vmem:[#allocation5 + $0x550] sm:$0xff]
    %v1268 = vld [vmem:[#allocation5 + $0x5b0] sm:$0xff]
    %v1269 = vld [vmem:[%s3 + $0xb] sm:$0x1]
    %v1270 = vlaneseq
    %v1271 = vshrl.u32 %v1270, 7
    %v1272 = vsub.s32 0, %v1271
    %v1273 = vrot.slane %v1269, %v1272
    %1274 = vmatprep.subr.mxu0 0.0
    %1275 = vmatpush1.msra.mxu0 %v1253
    %1276 = vmatprep.subr.mxu0 0.0
    %1277 = vmatpush1.msra.mxu0 %v1254
    %1278 = vmatprep.subr.mxu0 0.0
    %1279 = vmatpush1.msra.mxu0 %v1255
    %1280 = vmatprep.subr.mxu0 0.0
    %1281 = vmatpush1.msra.mxu0 %v1256
    %1282 = vmatprep.subr.mxu0 0.0
    %1283 = vmatpush1.msra.mxu0 %v1257
    %1284 = vmatprep.subr.mxu0 0.0
    %1285 = vmatpush1.msra.mxu0 %v1258
    %1286 = vmatprep.subr.mxu0 0.0
    %1287 = vmatpush1.msra.mxu0 %v1259
    %1288 = vmatprep.subr.mxu0 0.0
    %1289 = vmatpush1.msra.mxu0 %v1260
    %1290 = vmatprep.subr.mxu0 0.0
    %1291 = vmatpush1.msra.mxu0 %v1261
    %1292 = vmatprep.subr.mxu0 0.0
    %1293 = vmatpush1.msra.mxu0 %v1262
    %1294 = vmatprep.subr.mxu0 0.0
    %1295 = vmatpush1.msra.mxu0 %v1263
    %1296 = vmatprep.subr.mxu0 0.0
    %1297 = vmatpush1.msra.mxu0 %v1264
    %1298 = vmatprep.subr.mxu0 0.0
    %1299 = vmatpush1.msra.mxu0 %v1265
    %1300 = vmatprep.subr.mxu0 0.0
    %1301 = vmatpush1.msra.mxu0 %v1266
    %1302 = vmatprep.subr.mxu0 0.0
    %1303 = vmatpush1.msra.mxu0 %v1267
    %1304 = vmatprep.subr.mxu0 0.0
    %1305 = vmatpush1.msra.mxu0 %v1268
    %1306 = vmatprep.subr.mxu0 0.0
    %1307 = vmatpush1.msra.mxu0 0.0
    %1308 = vmatprep.subr.mxu0 0.0
    %1309 = vmatpush1.msra.mxu0 0.0
    %1310 = vmatprep.subr.mxu0 0.0
    %1311 = vmatpush1.msra.mxu0 0.0
    %1312 = vmatprep.subr.mxu0 0.0
    %1313 = vmatpush1.msra.mxu0 0.0
    %1314 = vmatprep.subr.mxu0 0.0
    %1315 = vmatpush1.msra.mxu0 0.0
    %1316 = vmatprep.subr.mxu0 0.0
    %1317 = vmatpush1.msra.mxu0 0.0
    %1318 = vmatprep.subr.mxu0 0.0
    %1319 = vmatpush1.msra.mxu0 0.0
    %1320 = vmatprep.subr.mxu0 0.0
    %1321 = vmatpush1.msra.mxu0 0.0
    %1322 = vmatprep.subr.mxu0 0.0
    %1323 = vmatpush1.msra.mxu0 0.0
    %1324 = vmatprep.subr.mxu0 0.0
    %1325 = vmatpush1.msra.mxu0 0.0
    %1326 = vmatprep.subr.mxu0 0.0
    %1327 = vmatpush1.msra.mxu0 0.0
    %1328 = vmatprep.subr.mxu0 0.0
    %1329 = vmatpush1.msra.mxu0 0.0
    %1330 = vmatprep.subr.mxu0 0.0
    %1331 = vmatpush1.msra.mxu0 0.0
    %1332 = vmatprep.subr.mxu0 0.0
    %1333 = vmatpush1.msra.mxu0 0.0
    %1334 = vmatprep.subr.mxu0 0.0
    %1335 = vmatpush1.msra.mxu0 0.0
    %1336 = vmatprep.subr.mxu0 0.0
    %1337 = vmatpush1.msra.mxu0 0.0
    %1338 = vmatprep.mubr.f32.mxu0 0.0
    %1339 = vmatmul.mubr.f32.gmra.mrb[0].mxu0 %v1252
    %v1340 = vpop.f32.mrb[0].mxu0
    %v1341 = vadd.f32 %v1273, %v1340
    %v1342 = vpop.f32.mrb[0].mxu0
    %1343 = vdwg.mxu0
    %v1344 = vld [vmem:[%s3 + $0x18] sm:$0xff]
    %v1345 = vlaneseq
    %v1346 = vshrl.u32 %v1345, 7
    %v1347 = vsub.s32 0, %v1346
    %v1348 = vrot.slane %v1341, %v1347
    %v1349 = vmul.f32 %v1348, %v1344
    %v1350 = vlaneseq
    %v1351 = vshrl.u32 %v1350, 7
    %v1352 = vsub.s32 1, %v1351
    %v1353 = vrot.slane %v1341, %v1352
    %v1354 = vmul.f32 %v1353, %v1344
    %v1355 = vld [vmem:[#allocation5 + $0x18] sm:$0xff]
    %v1356 = vld [vmem:[#allocation5 + $0x20] sm:$0xff]
    %v1357 = vld [vmem:[#allocation5 + $0x28] sm:$0xff]
    %v1358 = vld [vmem:[#allocation5 + $0x30] sm:$0xff]
    %v1359 = vld [vmem:[#allocation5 + $0x78] sm:$0xff]
    %v1360 = vld [vmem:[#allocation5 + $0x80] sm:$0xff]
    %v1361 = vld [vmem:[#allocation5 + $0x88] sm:$0xff]
    %v1362 = vld [vmem:[#allocation5 + $0x90] sm:$0xff]
    %v1363 = vld [vmem:[#allocation5 + $0xd8] sm:$0xff]
    %v1364 = vld [vmem:[#allocation5 + $0xe0] sm:$0xff]
    %v1365 = vld [vmem:[#allocation5 + $0xe8] sm:$0xff]
    %v1366 = vld [vmem:[#allocation5 + $0xf0] sm:$0xff]
    %v1367 = vld [vmem:[#allocation5 + $0x138] sm:$0xff]
    %v1368 = vld [vmem:[#allocation5 + $0x140] sm:$0xff]
    %v1369 = vld [vmem:[#allocation5 + $0x148] sm:$0xff]
    %v1370 = vld [vmem:[#allocation5 + $0x150] sm:$0xff]
    %v1371 = vld [vmem:[#allocation5 + $0x198] sm:$0xff]
    %v1372 = vld [vmem:[#allocation5 + $0x1a0] sm:$0xff]
    %v1373 = vld [vmem:[#allocation5 + $0x1a8] sm:$0xff]
    %v1374 = vld [vmem:[#allocation5 + $0x1b0] sm:$0xff]
    %v1375 = vld [vmem:[#allocation5 + $0x1f8] sm:$0xff]
    %v1376 = vld [vmem:[#allocation5 + $0x200] sm:$0xff]
    %v1377 = vld [vmem:[#allocation5 + $0x208] sm:$0xff]
    %v1378 = vld [vmem:[#allocation5 + $0x210] sm:$0xff]
    %v1379 = vld [vmem:[#allocation5 + $0x258] sm:$0xff]
    %v1380 = vld [vmem:[#allocation5 + $0x260] sm:$0xff]
    %v1381 = vld [vmem:[#allocation5 + $0x268] sm:$0xff]
    %v1382 = vld [vmem:[#allocation5 + $0x270] sm:$0xff]
    %v1383 = vld [vmem:[#allocation5 + $0x2b8] sm:$0xff]
    %v1384 = vld [vmem:[#allocation5 + $0x2c0] sm:$0xff]
    %v1385 = vld [vmem:[#allocation5 + $0x2c8] sm:$0xff]
    %v1386 = vld [vmem:[#allocation5 + $0x2d0] sm:$0xff]
    %v1387 = vld [vmem:[#allocation5 + $0x318] sm:$0xff]
    %v1388 = vld [vmem:[#allocation5 + $0x320] sm:$0xff]
    %v1389 = vld [vmem:[#allocation5 + $0x328] sm:$0xff]
    %v1390 = vld [vmem:[#allocation5 + $0x330] sm:$0xff]
    %v1391 = vld [vmem:[#allocation5 + $0x378] sm:$0xff]
    %v1392 = vld [vmem:[#allocation5 + $0x380] sm:$0xff]
    %v1393 = vld [vmem:[#allocation5 + $0x388] sm:$0xff]
    %v1394 = vld [vmem:[#allocation5 + $0x390] sm:$0xff]
    %v1395 = vld [vmem:[#allocation5 + $0x3d8] sm:$0xff]
    %v1396 = vld [vmem:[#allocation5 + $0x3e0] sm:$0xff]
    %v1397 = vld [vmem:[#allocation5 + $0x3e8] sm:$0xff]
    %v1398 = vld [vmem:[#allocation5 + $0x3f0] sm:$0xff]
    %v1399 = vld [vmem:[#allocation5 + $0x438] sm:$0xff]
    %v1400 = vld [vmem:[#allocation5 + $0x440] sm:$0xff]
    %v1401 = vld [vmem:[#allocation5 + $0x448] sm:$0xff]
    %v1402 = vld [vmem:[#allocation5 + $0x450] sm:$0xff]
    %v1403 = vld [vmem:[#allocation5 + $0x498] sm:$0xff]
    %v1404 = vld [vmem:[#allocation5 + $0x4a0] sm:$0xff]
    %v1405 = vld [vmem:[#allocation5 + $0x4a8] sm:$0xff]
    %v1406 = vld [vmem:[#allocation5 + $0x4b0] sm:$0xff]
    %v1407 = vld [vmem:[#allocation5 + $0x4f8] sm:$0xff]
    %v1408 = vld [vmem:[#allocation5 + $0x500] sm:$0xff]
    %v1409 = vld [vmem:[#allocation5 + $0x508] sm:$0xff]
    %v1410 = vld [vmem:[#allocation5 + $0x510] sm:$0xff]
    %v1411 = vld [vmem:[#allocation5 + $0x558] sm:$0xff]
    %v1412 = vld [vmem:[#allocation5 + $0x560] sm:$0xff]
    %v1413 = vld [vmem:[#allocation5 + $0x568] sm:$0xff]
    %v1414 = vld [vmem:[#allocation5 + $0x570] sm:$0xff]
    %v1415 = vld [vmem:[#allocation5 + $0x5b8] sm:$0xff]
    %v1416 = vld [vmem:[#allocation5 + $0x5c0] sm:$0xff]
    %v1417 = vld [vmem:[#allocation5 + $0x5c8] sm:$0xff]
    %v1418 = vld [vmem:[#allocation5 + $0x5d0] sm:$0xff]
    %1419 = vmatprep.subr.mxu0 %v1356
    %1420 = vmatpush1.msra.mxu0 %v1355
    %1421 = vmatprep.subr.mxu0 %v1360
    %1422 = vmatpush1.msra.mxu0 %v1359
    %1423 = vmatprep.subr.mxu0 %v1364
    %1424 = vmatpush1.msra.mxu0 %v1363
    %1425 = vmatprep.subr.mxu0 %v1368
    %1426 = vmatpush1.msra.mxu0 %v1367
    %1427 = vmatprep.subr.mxu0 %v1372
    %1428 = vmatpush1.msra.mxu0 %v1371
    %1429 = vmatprep.subr.mxu0 %v1376
    %1430 = vmatpush1.msra.mxu0 %v1375
    %1431 = vmatprep.subr.mxu0 %v1380
    %1432 = vmatpush1.msra.mxu0 %v1379
    %1433 = vmatprep.subr.mxu0 %v1384
    %1434 = vmatpush1.msra.mxu0 %v1383
    %1435 = vmatprep.subr.mxu0 %v1388
    %1436 = vmatpush1.msra.mxu0 %v1387
    %1437 = vmatprep.subr.mxu0 %v1392
    %1438 = vmatpush1.msra.mxu0 %v1391
    %1439 = vmatprep.subr.mxu0 %v1396
    %1440 = vmatpush1.msra.mxu0 %v1395
    %1441 = vmatprep.subr.mxu0 %v1400
    %1442 = vmatpush1.msra.mxu0 %v1399
    %1443 = vmatprep.subr.mxu0 %v1404
    %1444 = vmatpush1.msra.mxu0 %v1403
    %1445 = vmatprep.subr.mxu0 %v1408
    %1446 = vmatpush1.msra.mxu0 %v1407
    %1447 = vmatprep.subr.mxu0 %v1412
    %1448 = vmatpush1.msra.mxu0 %v1411
    %1449 = vmatprep.subr.mxu0 %v1416
    %1450 = vmatpush1.msra.mxu0 %v1415
    %1451 = vmatprep.subr.mxu0 0.0
    %1452 = vmatpush1.msra.mxu0 0.0
    %1453 = vmatprep.subr.mxu0 0.0
    %1454 = vmatpush1.msra.mxu0 0.0
    %1455 = vmatprep.subr.mxu0 0.0
    %1456 = vmatpush1.msra.mxu0 0.0
    %1457 = vmatprep.subr.mxu0 0.0
    %1458 = vmatpush1.msra.mxu0 0.0
    %1459 = vmatprep.subr.mxu0 0.0
    %1460 = vmatpush1.msra.mxu0 0.0
    %1461 = vmatprep.subr.mxu0 0.0
    %1462 = vmatpush1.msra.mxu0 0.0
    %1463 = vmatprep.subr.mxu0 0.0
    %1464 = vmatpush1.msra.mxu0 0.0
    %1465 = vmatprep.subr.mxu0 0.0
    %1466 = vmatpush1.msra.mxu0 0.0
    %1467 = vmatprep.subr.mxu0 0.0
    %1468 = vmatpush1.msra.mxu0 0.0
    %1469 = vmatprep.subr.mxu0 0.0
    %1470 = vmatpush1.msra.mxu0 0.0
    %1471 = vmatprep.subr.mxu0 0.0
    %1472 = vmatpush1.msra.mxu0 0.0
    %1473 = vmatprep.subr.mxu0 0.0
    %1474 = vmatpush1.msra.mxu0 0.0
    %1475 = vmatprep.subr.mxu0 0.0
    %1476 = vmatpush1.msra.mxu0 0.0
    %1477 = vmatprep.subr.mxu0 0.0
    %1478 = vmatpush1.msra.mxu0 0.0
    %1479 = vmatprep.subr.mxu0 0.0
    %1480 = vmatpush1.msra.mxu0 0.0
    %1481 = vmatprep.subr.mxu0 0.0
    %1482 = vmatpush1.msra.mxu0 0.0
    %1483 = vmatprep.mubr.f32.mxu0 0.0
    %1484 = vmatmul.mubr.f32.gmra.mrb[0].mxu0 %v1349
    %v1485 = vpop.f32.mrb[0].mxu0
    %v1486 = vadd.f32 0.0, %v1485
    %v1487 = vpop.f32.mrb[0].mxu0
    %v1488 = vadd.f32 0.0, %v1487
    %1489 = vmatprep.mubr.f32.mxu0 0.0
    %1490 = vmatmul.mubr.f32.gmra.mrb[0].mxu0 %v1354
    %v1491 = vpop.f32.mrb[0].mxu0
    %v1492 = vadd.f32 0.0, %v1491
    %v1493 = vpop.f32.mrb[0].mxu0
    %v1494 = vadd.f32 0.0, %v1493
    %1495 = vdwg.mxu0
    %1496 = vmatprep.subr.mxu0 %v1358
    %1497 = vmatpush1.msra.mxu0 %v1357
    %1498 = vmatprep.subr.mxu0 %v1362
    %1499 = vmatpush1.msra.mxu0 %v1361
    %1500 = vmatprep.subr.mxu0 %v1366
    %1501 = vmatpush1.msra.mxu0 %v1365
    %1502 = vmatprep.subr.mxu0 %v1370
    %1503 = vmatpush1.msra.mxu0 %v1369
    %1504 = vmatprep.subr.mxu0 %v1374
    %1505 = vmatpush1.msra.mxu0 %v1373
    %1506 = vmatprep.subr.mxu0 %v1378
    %1507 = vmatpush1.msra.mxu0 %v1377
    %1508 = vmatprep.subr.mxu0 %v1382
    %1509 = vmatpush1.msra.mxu0 %v1381
    %1510 = vmatprep.subr.mxu0 %v1386
    %1511 = vmatpush1.msra.mxu0 %v1385
    %1512 = vmatprep.subr.mxu0 %v1390
    %1513 = vmatpush1.msra.mxu0 %v1389
    %1514 = vmatprep.subr.mxu0 %v1394
    %1515 = vmatpush1.msra.mxu0 %v1393
    %1516 = vmatprep.subr.mxu0 %v1398
    %1517 = vmatpush1.msra.mxu0 %v1397
    %1518 = vmatprep.subr.mxu0 %v1402
    %1519 = vmatpush1.msra.mxu0 %v1401
    %1520 = vmatprep.subr.mxu0 %v1406
    %1521 = vmatpush1.msra.mxu0 %v1405
    %1522 = vmatprep.subr.mxu0 %v1410
    %1523 = vmatpush1.msra.mxu0 %v1409
    %1524 = vmatprep.subr.mxu0 %v1414
    %1525 = vmatpush1.msra.mxu0 %v1413
    %1526 = vmatprep.subr.mxu0 %v1418
    %1527 = vmatpush1.msra.mxu0 %v1417
    %1528 = vmatprep.subr.mxu0 0.0
    %1529 = vmatpush1.msra.mxu0 0.0
    %1530 = vmatprep.subr.mxu0 0.0
    %1531 = vmatpush1.msra.mxu0 0.0
    %1532 = vmatprep.subr.mxu0 0.0
    %1533 = vmatpush1.msra.mxu0 0.0
    %1534 = vmatprep.subr.mxu0 0.0
    %1535 = vmatpush1.msra.mxu0 0.0
    %1536 = vmatprep.subr.mxu0 0.0
    %1537 = vmatpush1.msra.mxu0 0.0
    %1538 = vmatprep.subr.mxu0 0.0
    %1539 = vmatpush1.msra.mxu0 0.0
    %1540 = vmatprep.subr.mxu0 0.0
    %1541 = vmatpush1.msra.mxu0 0.0
    %1542 = vmatprep.subr.mxu0 0.0
    %1543 = vmatpush1.msra.mxu0 0.0
    %1544 = vmatprep.subr.mxu0 0.0
    %1545 = vmatpush1.msra.mxu0 0.0
    %1546 = vmatprep.subr.mxu0 0.0
    %1547 = vmatpush1.msra.mxu0 0.0
    %1548 = vmatprep.subr.mxu0 0.0
    %1549 = vmatpush1.msra.mxu0 0.0
    %1550 = vmatprep.subr.mxu0 0.0
    %1551 = vmatpush1.msra.mxu0 0.0
    %1552 = vmatprep.subr.mxu0 0.0
    %1553 = vmatpush1.msra.mxu0 0.0
    %1554 = vmatprep.subr.mxu0 0.0
    %1555 = vmatpush1.msra.mxu0 0.0
    %1556 = vmatprep.subr.mxu0 0.0
    %1557 = vmatpush1.msra.mxu0 0.0
    %1558 = vmatprep.subr.mxu0 0.0
    %1559 = vmatpush1.msra.mxu0 0.0
    %1560 = vmatprep.mubr.f32.mxu0 0.0
    %1561 = vmatmul.mubr.f32.gmra.mrb[0].mxu0 %v1349
    %v1562 = vpop.f32.mrb[0].mxu0
    %v1563 = vadd.f32 0.0, %v1562
    %v1564 = vpop.f32.mrb[0].mxu0
    %v1565 = vadd.f32 0.0, %v1564
    %1566 = vmatprep.mubr.f32.mxu0 0.0
    %1567 = vmatmul.mubr.f32.gmra.mrb[0].mxu0 %v1354
    %v1568 = vpop.f32.mrb[0].mxu0
    %v1569 = vadd.f32 0.0, %v1568
    %v1570 = vpop.f32.mrb[0].mxu0
    %v1571 = vadd.f32 0.0, %v1570
    %1572 = vdwg.mxu0
    %v1573 = vld [vmem:[%s3 + $0x10] sm:$0x1]
    %v1574 = vlaneseq
    %v1575 = vshrl.u32 %v1574, 7
    %v1576 = vsub.s32 0, %v1575
    %v1577 = vrot.slane %v1573, %v1576
    %v1578 = vadd.f32 %v1486, %v1577
    %v1579 = vadd.f32 %v1492, %v1577
    %v1580 = vand.u32 2147483647, %v1578
    %vm1581 = vcmp.le.f32.partialorder %v1580, 0.7853982
    %vm1582 = vcmp.lt.s32.totalorder %v1578, 0
    %v1583 = vand.u32 %v1578, 2139095040
    %v1584 = vshrl.u32 %v1583, 23
    %v1585 = vsub.s32 %v1584, 127
    %v1586 = vand.u32 2147483647, %v1578
    %v1587 = vand.u32 %v1586, 8388607
    %v1588 = vor.u32 %v1587, 8388608
    %v1589 = vsub.s32 0, %v1588
    %v1590 = vadd.s32 %v1585, 1
    %vm1591 = vcmp.gt.s32.totalorder %v1590, 0
    %v1592 = vsel %vm1591, %v1590, 0
    %v1593 = vshrl.u32 %v1592, 5
    %v1594 = vand.u32 %v1592, 31
    %v1595 = vsub.s32 32, %v1594
    %v1596 = vshrl.u32 683565275, %v1595
    %v1597 = vshll.u32 683565275, %v1594
    %v1598 = vshrl.u32 2475754826, %v1595
    %v1599 = vor.u32 %v1597, %v1598
    %v1600 = vshll.u32 2475754826, %v1594
    %v1601 = vshrl.u32 2131351028, %v1595
    %v1602 = vor.u32 %v1600, %v1601
    %v1603 = vshll.u32 2131351028, %v1594
    %v1604 = vshrl.u32 2102212464, %v1595
    %v1605 = vor.u32 %v1603, %v1604
    %v1606 = vshll.u32 2102212464, %v1594
    %v1607 = vshrl.u32 920167782, %v1595
    %v1608 = vor.u32 %v1606, %v1607
    %v1609 = vshll.u32 920167782, %v1594
    %v1610 = vshrl.u32 1326507024, %v1595
    %v1611 = vor.u32 %v1609, %v1610
    %vm1612 = vcmp.lt.s32.totalorder %v1593, 1
    %vm1613 = vcmp.lt.s32.totalorder %v1593, 2
    %vm1614 = vcmp.lt.s32.totalorder %v1593, 3
    %vm1615 = vcmp.lt.s32.totalorder %v1593, 4
    %v1616 = vsel %vm1612, %v1596, %v1599
    %v1617 = vsel %vm1615, %v1605, 2102212464
    %v1618 = vsel %vm1614, %v1602, %v1617
    %v1619 = vsel %vm1613, %v1616, %v1618
    %v1620 = vsel %vm1612, %v1599, %v1602
    %v1621 = vsel %vm1615, %v1608, 920167782
    %v1622 = vsel %vm1614, %v1605, %v1621
    %v1623 = vsel %vm1613, %v1620, %v1622
    %v1624 = vsel %vm1612, %v1602, %v1605
    %v1625 = vsel %vm1615, %v1611, 1326507024
    %v1626 = vsel %vm1614, %v1608, %v1625
    %v1627 = vsel %vm1613, %v1624, %v1626
    %v1628 = vshll.u32 %v1588, 8
    %v1629 = vmul.u32.u64.compose %v1628, %v1627
    %v1630 = vextract.low.u32 %v1629
    %v1631 = vextract.high.u32 %v1629
    %v1632 = vmul.u32.u64.compose %v1628, %v1623
    %v1633 = vextract.low.u32 %v1632
    %v1634 = vextract.high.u32 %v1632
    %v1635 = vmul.u32 %v1628, %v1619
    %v1636 = vadd.s32 %v1631, %v1633
    %vm1637 = vc.u32 %v1631, %v1633
    %v1638 = vadd.s32 %v1634, 1
    %v1639 = vsel %vm1637, %v1638, %v1634
    %v1640 = vadd.s32 %v1635, %v1639
    %v1641 = vadd.s32 %v1640, 536870912
    %v1642 = vshrl.u32 %v1641, 30
    %v1643 = vshll.u32 %v1642, 30
    %v1644 = vsub.s32 %v1640, %v1643
    %vm1645 = vcmp.lt.s32.totalorder %v1644, 0
    %v1646 = vsub.s32 0, %v1644
    %v1647 = vsel %vm1645, %v1646, %v1644
    %v1648 = vclz %v1647
    %v1649 = vsub.s32 %v1648, 2
    %vm1650 = vcmp.gt.s32.totalorder 0, %v1649
    %v1651 = vsel %vm1650, 0, %v1649
    %v1652 = vsub.s32 32, %v1651
    %v1653 = vshll.u32 %v1644, %v1651
    %v1654 = vshrl.u32 %v1636, %v1652
    %v1655 = vor.u32 %v1653, %v1654
    %v1656 = vsub.s32 4294967266, %v1651
    %v1657 = vadd.s32 %v1656, 127
    %v1658 = vshll.u32 %v1657, 23
    %v1659 = vor.u32 4788187, %v1658
    %v1660 = vand.u32 2147483647, %v1659
    %v1662 = vcvt.s32.f32 %v1655
    %v1663 = vmul.f32 %v1662, %v1660
    %v1664 = vxor.u32 %v1663, 2147483648
    %v1665 = vsel %vm1582, %v1664, %v1663
    %v1666 = vsub.s32 4, %v1642
    %v1667 = vsel %vm1582, %v1666, %v1642
    %v1668 = vsel %vm1581, %v1578, %v1665
    %v1669 = vsel %vm1581, 0, %v1667
    %v1670 = vcosq.f32.pop %v1668
    %v1671 = vsinq.f32.pop %v1668
    %vm1672 = vweird.f32 %v1578
    %v1673 = vadd.s32 %v1669, 3
    %v1674 = vand.u32 %v1673, 3
    %vm1675 = vcmp.lt.s32.totalorder %v1674, 2
    %vm1676 = vcmp.eq.s32.totalorder %v1674, 0
    %v1677 = vxor.u32 %v1671, 2147483648
    %v1678 = vsel %vm1676, %v1670, %v1677
    %vm1679 = vcmp.eq.s32.totalorder %v1674, 2
    %v1680 = vxor.u32 %v1670, 2147483648
    %v1681 = vsel %vm1679, %v1680, %v1671
    %v1682 = vsel %vm1675, %v1678, %v1681
    %v1683 = vsel %vm1672, nan, %v1682
    %v1684 = vand.u32 2147483647, %v1579
    %vm1685 = vcmp.le.f32.partialorder %v1684, 0.7853982
    %vm1686 = vcmp.lt.s32.totalorder %v1579, 0
    %v1687 = vand.u32 %v1579, 2139095040
    %v1688 = vshrl.u32 %v1687, 23
    %v1689 = vsub.s32 %v1688, 127
    %v1690 = vand.u32 2147483647, %v1579
    %v1691 = vand.u32 %v1690, 8388607
    %v1692 = vor.u32 %v1691, 8388608
    %v1693 = vsub.s32 0, %v1692
    %v1694 = vadd.s32 %v1689, 1
    %vm1695 = vcmp.gt.s32.totalorder %v1694, 0
    %v1696 = vsel %vm1695, %v1694, 0
    %v1697 = vshrl.u32 %v1696, 5
    %v1698 = vand.u32 %v1696, 31
    %v1699 = vsub.s32 32, %v1698
    %v1700 = vshrl.u32 683565275, %v1699
    %v1701 = vshll.u32 683565275, %v1698
    %v1702 = vshrl.u32 2475754826, %v1699
    %v1703 = vor.u32 %v1701, %v1702
    %v1704 = vshll.u32 2475754826, %v1698
    %v1705 = vshrl.u32 2131351028, %v1699
    %v1706 = vor.u32 %v1704, %v1705
    %v1707 = vshll.u32 2131351028, %v1698
    %v1708 = vshrl.u32 2102212464, %v1699
    %v1709 = vor.u32 %v1707, %v1708
    %v1710 = vshll.u32 2102212464, %v1698
    %v1711 = vshrl.u32 920167782, %v1699
    %v1712 = vor.u32 %v1710, %v1711
    %v1713 = vshll.u32 920167782, %v1698
    %v1714 = vshrl.u32 1326507024, %v1699
    %v1715 = vor.u32 %v1713, %v1714
    %vm1716 = vcmp.lt.s32.totalorder %v1697, 1
    %vm1717 = vcmp.lt.s32.totalorder %v1697, 2
    %vm1718 = vcmp.lt.s32.totalorder %v1697, 3
    %vm1719 = vcmp.lt.s32.totalorder %v1697, 4
    %v1720 = vsel %vm1716, %v1700, %v1703
    %v1721 = vsel %vm1719, %v1709, 2102212464
    %v1722 = vsel %vm1718, %v1706, %v1721
    %v1723 = vsel %vm1717, %v1720, %v1722
    %v1724 = vsel %vm1716, %v1703, %v1706
    %v1725 = vsel %vm1719, %v1712, 920167782
    %v1726 = vsel %vm1718, %v1709, %v1725
    %v1727 = vsel %vm1717, %v1724, %v1726
    %v1728 = vsel %vm1716, %v1706, %v1709
    %v1729 = vsel %vm1719, %v1715, 1326507024
    %v1730 = vsel %vm1718, %v1712, %v1729
    %v1731 = vsel %vm1717, %v1728, %v1730
    %v1732 = vshll.u32 %v1692, 8
    %v1733 = vmul.u32.u64.compose %v1732, %v1731
    %v1734 = vextract.low.u32 %v1733
    %v1735 = vextract.high.u32 %v1733
    %v1736 = vmul.u32.u64.compose %v1732, %v1727
    %v1737 = vextract.low.u32 %v1736
    %v1738 = vextract.high.u32 %v1736
    %v1739 = vmul.u32 %v1732, %v1723
    %v1740 = vadd.s32 %v1735, %v1737
    %vm1741 = vc.u32 %v1735, %v1737
    %v1742 = vadd.s32 %v1738, 1
    %v1743 = vsel %vm1741, %v1742, %v1738
    %v1744 = vadd.s32 %v1739, %v1743
    %v1745 = vadd.s32 %v1744, 536870912
    %v1746 = vshrl.u32 %v1745, 30
    %v1747 = vshll.u32 %v1746, 30
    %v1748 = vsub.s32 %v1744, %v1747
    %vm1749 = vcmp.lt.s32.totalorder %v1748, 0
    %v1750 = vsub.s32 0, %v1748
    %v1751 = vsel %vm1749, %v1750, %v1748
    %v1752 = vclz %v1751
    %v1753 = vsub.s32 %v1752, 2
    %vm1754 = vcmp.gt.s32.totalorder 0, %v1753
    %v1755 = vsel %vm1754, 0, %v1753
    %v1756 = vsub.s32 32, %v1755
    %v1757 = vshll.u32 %v1748, %v1755
    %v1758 = vshrl.u32 %v1740, %v1756
    %v1759 = vor.u32 %v1757, %v1758
    %v1760 = vsub.s32 4294967266, %v1755
    %v1761 = vadd.s32 %v1760, 127
    %v1762 = vshll.u32 %v1761, 23
    %v1763 = vor.u32 4788187, %v1762
    %v1764 = vand.u32 2147483647, %v1763
    %v1766 = vcvt.s32.f32 %v1759
    %v1767 = vmul.f32 %v1766, %v1764
    %v1768 = vxor.u32 %v1767, 2147483648
    %v1769 = vsel %vm1686, %v1768, %v1767
    %v1770 = vsub.s32 4, %v1746
    %v1771 = vsel %vm1686, %v1770, %v1746
    %v1772 = vsel %vm1685, %v1579, %v1769
    %v1773 = vsel %vm1685, 0, %v1771
    %v1774 = vcosq.f32.pop %v1772
    %v1775 = vsinq.f32.pop %v1772
    %vm1776 = vweird.f32 %v1579
    %v1777 = vadd.s32 %v1773, 3
    %v1778 = vand.u32 %v1777, 3
    %vm1779 = vcmp.lt.s32.totalorder %v1778, 2
    %vm1780 = vcmp.eq.s32.totalorder %v1778, 0
    %v1781 = vxor.u32 %v1775, 2147483648
    %v1782 = vsel %vm1780, %v1774, %v1781
    %vm1783 = vcmp.eq.s32.totalorder %v1778, 2
    %v1784 = vxor.u32 %v1774, 2147483648
    %v1785 = vsel %vm1783, %v1784, %v1775
    %v1786 = vsel %vm1779, %v1782, %v1785
    %v1787 = vsel %vm1776, nan, %v1786
    %v1788 = vxor.u32 %v1683, 2147483648
    %v1789 = vxor.u32 %v1787, 2147483648
    %v1790 = vmul.f32 %v1788, 1.442695
    %v1791 = vpow.pop %v1790
    %v1792 = vmul.f32 %v1789, 1.442695
    %v1793 = vpow.pop %v1792
    %v1794 = vadd.f32 %v1791, 1.0
    %v1795 = vadd.f32 %v1793, 1.0
    %v1796 = vrcp.pop %v1794
    %v1797 = vmul.f32 1.0, %v1796
    %v1798 = vrcp.pop %v1795
    %v1799 = vmul.f32 1.0, %v1798
    %v1800 = vmul.f32 %v1683, %v1797
    %v1801 = vmul.f32 %v1787, %v1799
    %v1802 = vpack.c.bf16 %v1801, %v1800
    %v1803 = vld [vmem:[#allocation2 + $0x10] sm:$0xff]
    %v1804 = vld [vmem:[#allocation2 + $0x38] sm:$0xff]
    %v1805 = vld [vmem:[#allocation2 + $0x60] sm:$0xff]
    %v1806 = vld [vmem:[#allocation2 + $0x88] sm:$0xff]
    %v1807 = vld [vmem:[#allocation2 + $0xb0] sm:$0xff]
    %v1808 = vld [vmem:[#allocation2 + $0xd8] sm:$0xff]
    %v1809 = vld [vmem:[#allocation2 + $0x100] sm:$0xff]
    %v1810 = vld [vmem:[#allocation2 + $0x128] sm:$0xff]
    %v1811 = vld [vmem:[#allocation2 + $0x150] sm:$0xff]
    %v1812 = vld [vmem:[#allocation2 + $0x178] sm:$0xff]
    %v1813 = vld [vmem:[#allocation2 + $0x1a0] sm:$0xff]
    %v1814 = vld [vmem:[#allocation2 + $0x1c8] sm:$0xff]
    %v1815 = vld [vmem:[#allocation2 + $0x1f0] sm:$0xff]
    %v1816 = vld [vmem:[#allocation2 + $0x218] sm:$0xff]
    %v1817 = vld [vmem:[#allocation2 + $0x240] sm:$0xff]
    %v1818 = vld [vmem:[#allocation2 + $0x268] sm:$0xff]
    %v1835 = vunpack.c.l.b16 %v1803
    %v1836 = vunpack.c.h.b16 %v1803
    %v1837 = vunpack.c.l.b16 %v1804
    %v1838 = vunpack.c.h.b16 %v1804
    %v1839 = vunpack.c.l.b16 %v1805
    %v1840 = vunpack.c.h.b16 %v1805
    %v1841 = vunpack.c.l.b16 %v1806
    %v1842 = vunpack.c.h.b16 %v1806
    %v1843 = vunpack.c.l.b16 %v1807
    %v1844 = vunpack.c.h.b16 %v1807
    %v1845 = vunpack.c.l.b16 %v1808
    %v1846 = vunpack.c.h.b16 %v1808
    %v1847 = vunpack.c.l.b16 %v1809
    %v1848 = vunpack.c.h.b16 %v1809
    %v1849 = vunpack.c.l.b16 %v1810
    %v1850 = vunpack.c.h.b16 %v1810
    %v1851 = vunpack.c.l.b16 %v1811
    %v1852 = vunpack.c.h.b16 %v1811
    %v1853 = vunpack.c.l.b16 %v1812
    %v1854 = vunpack.c.h.b16 %v1812
    %v1855 = vunpack.c.l.b16 %v1813
    %v1856 = vunpack.c.h.b16 %v1813
    %v1857 = vunpack.c.l.b16 %v1814
    %v1858 = vunpack.c.h.b16 %v1814
    %v1859 = vunpack.c.l.b16 %v1815
    %v1860 = vunpack.c.h.b16 %v1815
    %v1861 = vunpack.c.l.b16 %v1816
    %v1862 = vunpack.c.h.b16 %v1816
    %v1863 = vunpack.c.l.b16 %v1817
    %v1864 = vunpack.c.h.b16 %v1817
    %v1865 = vunpack.c.l.b16 %v1818
    %v1866 = vunpack.c.h.b16 %v1818
    %v1867 = vpack.c.b16 %v1837, %v1835
    %v1868 = vpack.c.b16 %v1838, %v1836
    %v1869 = vpack.c.b16 %v1841, %v1839
    %v1870 = vpack.c.b16 %v1842, %v1840
    %v1871 = vpack.c.b16 %v1845, %v1843
    %v1872 = vpack.c.b16 %v1846, %v1844
    %v1873 = vpack.c.b16 %v1849, %v1847
    %v1874 = vpack.c.b16 %v1850, %v1848
    %v1875 = vpack.c.b16 %v1853, %v1851
    %v1876 = vpack.c.b16 %v1854, %v1852
    %v1877 = vpack.c.b16 %v1857, %v1855
    %v1878 = vpack.c.b16 %v1858, %v1856
    %v1879 = vpack.c.b16 %v1861, %v1859
    %v1880 = vpack.c.b16 %v1862, %v1860
    %v1881 = vpack.c.b16 %v1865, %v1863
    %v1882 = vpack.c.b16 %v1866, %v1864
    %1899 = vmatprep.subr.bf16.mxu0 %v1868
    %1900 = vmatpush1.bf16.msra.mxu0 %v1867
    %1901 = vmatprep.subr.bf16.mxu0 %v1870
    %1902 = vmatpush1.bf16.msra.mxu0 %v1869
    %1903 = vmatprep.subr.bf16.mxu0 %v1872
    %1904 = vmatpush1.bf16.msra.mxu0 %v1871
    %1905 = vmatprep.subr.bf16.mxu0 %v1874
    %1906 = vmatpush1.bf16.msra.mxu0 %v1873
    %1907 = vmatprep.subr.bf16.mxu0 %v1876
    %1908 = vmatpush1.bf16.msra.mxu0 %v1875
    %1909 = vmatprep.subr.bf16.mxu0 %v1878
    %1910 = vmatpush1.bf16.msra.mxu0 %v1877
    %1911 = vmatprep.subr.bf16.mxu0 %v1880
    %1912 = vmatpush1.bf16.msra.mxu0 %v1879
    %1913 = vmatprep.subr.bf16.mxu0 %v1882
    %1914 = vmatpush1.bf16.msra.mxu0 %v1881
    %1915 = vmatprep.subr.bf16.mxu0 0
    %1916 = vmatpush1.bf16.msra.mxu0 0
    %1917 = vmatprep.subr.bf16.mxu0 0
    %1918 = vmatpush1.bf16.msra.mxu0 0
    %1919 = vmatprep.subr.bf16.mxu0 0
    %1920 = vmatpush1.bf16.msra.mxu0 0
    %1921 = vmatprep.subr.bf16.mxu0 0
    %1922 = vmatpush1.bf16.msra.mxu0 0
    %1923 = vmatprep.subr.bf16.mxu0 0
    %1924 = vmatpush1.bf16.msra.mxu0 0
    %1925 = vmatprep.subr.bf16.mxu0 0
    %1926 = vmatpush1.bf16.msra.mxu0 0
    %1927 = vmatprep.subr.bf16.mxu0 0
    %1928 = vmatpush1.bf16.msra.mxu0 0
    %1929 = vmatprep.subr.bf16.mxu0 0
    %1930 = vmatpush1.bf16.msra.mxu0 0
    %1931 = vmatprep.mubr.bf16.mxu0 0
    %1932 = vmatmul.mubr.bf16.gmra.mrb[0].mxu0 %v1802
    %v1933 = vpop.f32.mrb[0].mxu0
    %v1934 = vadd.f32 0.0, %v1933
    %v1935 = vpop.f32.mrb[0].mxu0
    %v1936 = vadd.f32 0.0, %v1935
    %v1937 = vpop.f32.mrb[0].mxu0
    %v1938 = vadd.f32 0.0, %v1937
    %v1939 = vpop.f32.mrb[0].mxu0
    %v1940 = vadd.f32 0.0, %v1939
    %1941 = vdwg.mxu0
    %v1942 = vld [vmem:[%s3 + $0x11] sm:$0x1]
    %v1943 = vlaneseq
    %v1944 = vshrl.u32 %v1943, 7
    %v1945 = vsub.s32 0, %v1944
    %v1946 = vrot.slane %v1942, %v1945
    %v1947 = vadd.f32 %v1934, %v1946
    %v1948 = vadd.f32 %v1938, %v1946
    %v1949 = vld [vmem:[%s3 + $0x12] sm:$0x1]
    %v1950 = vlaneseq
    %v1951 = vshrl.u32 %v1950, 7
    %v1952 = vsub.s32 0, %v1951
    %v1953 = vrot.slane %v1949, %v1952
    %v1954 = vadd.f32 %v1936, %v1953
    %v1955 = vadd.f32 %v1940, %v1953
    %v1956 = vld [vmem:[%s3 + $0xc] sm:$0x1]
    %v1957 = vlaneseq
    %v1958 = vshrl.u32 %v1957, 7
    %v1959 = vsub.s32 0, %v1958
    %v1960 = vrot.slane %v1956, %v1959
    %v1961 = vmul.f32 %v289, %v1960
    %v1962 = vmul.f32 %v299, %v1960
    %v1963 = vld [vmem:[%s3 + $0xd] sm:$0x1]
    %v1964 = vlaneseq
    %v1965 = vshrl.u32 %v1964, 7
    %v1966 = vsub.s32 0, %v1965
    %v1967 = vrot.slane %v1963, %v1966
    %v1968 = vadd.f32 %v1961, %v1967
    %v1969 = vadd.f32 %v1962, %v1967
    %v1970 = vadd.f32 %v1947, 1.0
    %v1971 = vadd.f32 %v1948, 1.0
    %v1972 = vmul.f32 %v1968, %v1970
    %v1973 = vmul.f32 %v1969, %v1971
    %v1974 = vadd.f32 %v1972, %v1954
    %v1975 = vadd.f32 %v1973, %v1955
    %v1976 = vxor.u32 %v1974, 2147483648
    %v1977 = vxor.u32 %v1975, 2147483648
    %v1978 = vmul.f32 %v1976, 1.442695
    %v1979 = vpow.pop %v1978
    %v1980 = vmul.f32 %v1977, 1.442695
    %v1981 = vpow.pop %v1980
    %v1982 = vadd.f32 %v1979, 1.0
    %v1983 = vadd.f32 %v1981, 1.0
    %v1984 = vrcp.pop %v1982
    %v1985 = vmul.f32 1.0, %v1984
    %v1986 = vrcp.pop %v1983
    %v1987 = vmul.f32 1.0, %v1986
    %v1988 = vmul.f32 %v1974, %v1985
    %v1989 = vmul.f32 %v1975, %v1987
    %v1990 = vpack.c.bf16 %v1989, %v1988
    %v1991 = vld [vmem:[#allocation2 + $0xc] sm:$0xf]
    %v1992 = vld [vmem:[#allocation2 + $0x34] sm:$0xf]
    %v1993 = vld [vmem:[#allocation2 + $0x5c] sm:$0xf]
    %v1994 = vld [vmem:[#allocation2 + $0x84] sm:$0xf]
    %v1995 = vld [vmem:[#allocation2 + $0xac] sm:$0xf]
    %v1996 = vld [vmem:[#allocation2 + $0xd4] sm:$0xf]
    %v1997 = vld [vmem:[#allocation2 + $0xfc] sm:$0xf]
    %v1998 = vld [vmem:[#allocation2 + $0x124] sm:$0xf]
    %v1999 = vld [vmem:[#allocation2 + $0x14c] sm:$0xf]
    %v2000 = vld [vmem:[#allocation2 + $0x174] sm:$0xf]
    %v2001 = vld [vmem:[#allocation2 + $0x19c] sm:$0xf]
    %v2002 = vld [vmem:[#allocation2 + $0x1c4] sm:$0xf]
    %v2003 = vld [vmem:[#allocation2 + $0x1ec] sm:$0xf]
    %v2004 = vld [vmem:[#allocation2 + $0x214] sm:$0xf]
    %v2005 = vld [vmem:[#allocation2 + $0x23c] sm:$0xf]
    %v2006 = vld [vmem:[#allocation2 + $0x264] sm:$0xf]
    %v2007 = vld [vmem:[%s3 + $0xe] sm:$0x1]
    %v2008 = vlaneseq
    %v2009 = vshrl.u32 %v2008, 7
    %v2010 = vsub.s32 0, %v2009
    %v2011 = vrot.slane %v2007, %v2010
    %v2028 = vunpack.c.l.b16 %v1991
    %v2029 = vunpack.c.l.b16 %v1992
    %v2030 = vunpack.c.l.b16 %v1993
    %v2031 = vunpack.c.l.b16 %v1994
    %v2032 = vunpack.c.l.b16 %v1995
    %v2033 = vunpack.c.l.b16 %v1996
    %v2034 = vunpack.c.l.b16 %v1997
    %v2035 = vunpack.c.l.b16 %v1998
    %v2036 = vunpack.c.l.b16 %v1999
    %v2037 = vunpack.c.l.b16 %v2000
    %v2038 = vunpack.c.l.b16 %v2001
    %v2039 = vunpack.c.l.b16 %v2002
    %v2040 = vunpack.c.l.b16 %v2003
    %v2041 = vunpack.c.l.b16 %v2004
    %v2042 = vunpack.c.l.b16 %v2005
    %v2043 = vunpack.c.l.b16 %v2006
    %v2044 = vpack.c.b16 %v2029, %v2028
    %v2045 = vpack.c.b16 %v2031, %v2030
    %v2046 = vpack.c.b16 %v2033, %v2032
    %v2047 = vpack.c.b16 %v2035, %v2034
    %v2048 = vpack.c.b16 %v2037, %v2036
    %v2049 = vpack.c.b16 %v2039, %v2038
    %v2050 = vpack.c.b16 %v2041, %v2040
    %v2051 = vpack.c.b16 %v2043, %v2042
    %2060 = vmatprep.subr.bf16.mxu0 0
    %2061 = vmatpush1.bf16.msra.mxu0 %v2044
    %2062 = vmatprep.subr.bf16.mxu0 0
    %2063 = vmatpush1.bf16.msra.mxu0 %v2045
    %2064 = vmatprep.subr.bf16.mxu0 0
    %2065 = vmatpush1.bf16.msra.mxu0 %v2046
    %2066 = vmatprep.subr.bf16.mxu0 0
    %2067 = vmatpush1.bf16.msra.mxu0 %v2047
    %2068 = vmatprep.subr.bf16.mxu0 0
    %2069 = vmatpush1.bf16.msra.mxu0 %v2048
    %2070 = vmatprep.subr.bf16.mxu0 0
    %2071 = vmatpush1.bf16.msra.mxu0 %v2049
    %2072 = vmatprep.subr.bf16.mxu0 0
    %2073 = vmatpush1.bf16.msra.mxu0 %v2050
    %2074 = vmatprep.subr.bf16.mxu0 0
    %2075 = vmatpush1.bf16.msra.mxu0 %v2051
    %2076 = vmatprep.subr.bf16.mxu0 0
    %2077 = vmatpush1.bf16.msra.mxu0 0
    %2078 = vmatprep.subr.bf16.mxu0 0
    %2079 = vmatpush1.bf16.msra.mxu0 0
    %2080 = vmatprep.subr.bf16.mxu0 0
    %2081 = vmatpush1.bf16.msra.mxu0 0
    %2082 = vmatprep.subr.bf16.mxu0 0
    %2083 = vmatpush1.bf16.msra.mxu0 0
    %2084 = vmatprep.subr.bf16.mxu0 0
    %2085 = vmatpush1.bf16.msra.mxu0 0
    %2086 = vmatprep.subr.bf16.mxu0 0
    %2087 = vmatpush1.bf16.msra.mxu0 0
    %2088 = vmatprep.subr.bf16.mxu0 0
    %2089 = vmatpush1.bf16.msra.mxu0 0
    %2090 = vmatprep.subr.bf16.mxu0 0
    %2091 = vmatpush1.bf16.msra.mxu0 0
    %2092 = vmatprep.mubr.bf16.mxu0 0
    %2093 = vmatmul.mubr.bf16.gmra.mrb[0].mxu0 %v1990
    %v2094 = vpop.f32.mrb[0].mxu0
    %v2095 = vadd.f32 %v2011, %v2094
    %v2096 = vpop.f32.mrb[0].mxu0
    %v2097 = vpop.f32.mrb[0].mxu0
    %v2098 = vadd.f32 %v2011, %v2097
    %v2099 = vpop.f32.mrb[0].mxu0
    %2100 = vdwg.mxu0
    %v2101 = vadd.f32 %v65, %v2095
    %v2102 = vadd.f32 %v66, %v2098
    %2103 = vst [vmem:[#allocation8] sm:$0xff] %v2101
    %2104 = vst [vmem:[#allocation8 + $0x8] sm:$0xff] %v2102
    %v2105 = vpack.c.bf16 %v2102, %v2101
    %v2106 = vld [vmem:[#allocation2 + $0x18] sm:$0xff]
    %v2107 = vld [vmem:[#allocation2 + $0x20] sm:$0xff]
    %v2108 = vld [vmem:[#allocation2 + $0x40] sm:$0xff]
    %v2109 = vld [vmem:[#allocation2 + $0x48] sm:$0xff]
    %v2110 = vld [vmem:[#allocation2 + $0x68] sm:$0xff]
    %v2111 = vld [vmem:[#allocation2 + $0x70] sm:$0xff]
    %v2112 = vld [vmem:[#allocation2 + $0x90] sm:$0xff]
    %v2113 = vld [vmem:[#allocation2 + $0x98] sm:$0xff]
    %v2114 = vld [vmem:[#allocation2 + $0xb8] sm:$0xff]
    %v2115 = vld [vmem:[#allocation2 + $0xc0] sm:$0xff]
    %v2116 = vld [vmem:[#allocation2 + $0xe0] sm:$0xff]
    %v2117 = vld [vmem:[#allocation2 + $0xe8] sm:$0xff]
    %v2118 = vld [vmem:[#allocation2 + $0x108] sm:$0xff]
    %v2119 = vld [vmem:[#allocation2 + $0x110] sm:$0xff]
    %v2120 = vld [vmem:[#allocation2 + $0x130] sm:$0xff]
    %v2121 = vld [vmem:[#allocation2 + $0x138] sm:$0xff]
    %v2122 = vld [vmem:[#allocation2 + $0x158] sm:$0xff]
    %v2123 = vld [vmem:[#allocation2 + $0x160] sm:$0xff]
    %v2124 = vld [vmem:[#allocation2 + $0x180] sm:$0xff]
    %v2125 = vld [vmem:[#allocation2 + $0x188] sm:$0xff]
    %v2126 = vld [vmem:[#allocation2 + $0x1a8] sm:$0xff]
    %v2127 = vld [vmem:[#allocation2 + $0x1b0] sm:$0xff]
    %v2128 = vld [vmem:[#allocation2 + $0x1d0] sm:$0xff]
    %v2129 = vld [vmem:[#allocation2 + $0x1d8] sm:$0xff]
    %v2130 = vld [vmem:[#allocation2 + $0x1f8] sm:$0xff]
    %v2131 = vld [vmem:[#allocation2 + $0x200] sm:$0xff]
    %v2132 = vld [vmem:[#allocation2 + $0x220] sm:$0xff]
    %v2133 = vld [vmem:[#allocation2 + $0x228] sm:$0xff]
    %v2134 = vld [vmem:[#allocation2 + $0x248] sm:$0xff]
    %v2135 = vld [vmem:[#allocation2 + $0x250] sm:$0xff]
    %v2136 = vld [vmem:[#allocation2 + $0x270] sm:$0xff]
    %v2137 = vld [vmem:[#allocation2 + $0x278] sm:$0xff]
    %v2170 = vunpack.c.l.b16 %v2106
    %v2171 = vunpack.c.h.b16 %v2106
    %v2172 = vunpack.c.l.b16 %v2107
    %v2173 = vunpack.c.h.b16 %v2107
    %v2174 = vunpack.c.l.b16 %v2108
    %v2175 = vunpack.c.h.b16 %v2108
    %v2176 = vunpack.c.l.b16 %v2109
    %v2177 = vunpack.c.h.b16 %v2109
    %v2178 = vunpack.c.l.b16 %v2110
    %v2179 = vunpack.c.h.b16 %v2110
    %v2180 = vunpack.c.l.b16 %v2111
    %v2181 = vunpack.c.h.b16 %v2111
    %v2182 = vunpack.c.l.b16 %v2112
    %v2183 = vunpack.c.h.b16 %v2112
    %v2184 = vunpack.c.l.b16 %v2113
    %v2185 = vunpack.c.h.b16 %v2113
    %v2186 = vunpack.c.l.b16 %v2114
    %v2187 = vunpack.c.h.b16 %v2114
    %v2188 = vunpack.c.l.b16 %v2115
    %v2189 = vunpack.c.h.b16 %v2115
    %v2190 = vunpack.c.l.b16 %v2116
    %v2191 = vunpack.c.h.b16 %v2116
    %v2192 = vunpack.c.l.b16 %v2117
    %v2193 = vunpack.c.h.b16 %v2117
    %v2194 = vunpack.c.l.b16 %v2118
    %v2195 = vunpack.c.h.b16 %v2118
    %v2196 = vunpack.c.l.b16 %v2119
    %v2197 = vunpack.c.h.b16 %v2119
    %v2198 = vunpack.c.l.b16 %v2120
    %v2199 = vunpack.c.h.b16 %v2120
    %v2200 = vunpack.c.l.b16 %v2121
    %v2201 = vunpack.c.h.b16 %v2121
    %v2202 = vunpack.c.l.b16 %v2122
    %v2203 = vunpack.c.h.b16 %v2122
    %v2204 = vunpack.c.l.b16 %v2123
    %v2205 = vunpack.c.h.b16 %v2123
    %v2206 = vunpack.c.l.b16 %v2124
    %v2207 = vunpack.c.h.b16 %v2124
    %v2208 = vunpack.c.l.b16 %v2125
    %v2209 = vunpack.c.h.b16 %v2125
    %v2210 = vunpack.c.l.b16 %v2126
    %v2211 = vunpack.c.h.b16 %v2126
    %v2212 = vunpack.c.l.b16 %v2127
    %v2213 = vunpack.c.h.b16 %v2127
    %v2214 = vunpack.c.l.b16 %v2128
    %v2215 = vunpack.c.h.b16 %v2128
    %v2216 = vunpack.c.l.b16 %v2129
    %v2217 = vunpack.c.h.b16 %v2129
    %v2218 = vunpack.c.l.b16 %v2130
    %v2219 = vunpack.c.h.b16 %v2130
    %v2220 = vunpack.c.l.b16 %v2131
    %v2221 = vunpack.c.h.b16 %v2131
    %v2222 = vunpack.c.l.b16 %v2132
    %v2223 = vunpack.c.h.b16 %v2132
    %v2224 = vunpack.c.l.b16 %v2133
    %v2225 = vunpack.c.h.b16 %v2133
    %v2226 = vunpack.c.l.b16 %v2134
    %v2227 = vunpack.c.h.b16 %v2134
    %v2228 = vunpack.c.l.b16 %v2135
    %v2229 = vunpack.c.h.b16 %v2135
    %v2230 = vunpack.c.l.b16 %v2136
    %v2231 = vunpack.c.h.b16 %v2136
    %v2232 = vunpack.c.l.b16 %v2137
    %v2233 = vunpack.c.h.b16 %v2137
    %v2234 = vpack.c.b16 %v2174, %v2170
    %v2235 = vpack.c.b16 %v2175, %v2171
    %v2236 = vpack.c.b16 %v2176, %v2172
    %v2237 = vpack.c.b16 %v2177, %v2173
    %v2238 = vpack.c.b16 %v2182, %v2178
    %v2239 = vpack.c.b16 %v2183, %v2179
    %v2240 = vpack.c.b16 %v2184, %v2180
    %v2241 = vpack.c.b16 %v2185, %v2181
    %v2242 = vpack.c.b16 %v2190, %v2186
    %v2243 = vpack.c.b16 %v2191, %v2187
    %v2244 = vpack.c.b16 %v2192, %v2188
    %v2245 = vpack.c.b16 %v2193, %v2189
    %v2246 = vpack.c.b16 %v2198, %v2194
    %v2247 = vpack.c.b16 %v2199, %v2195
    %v2248 = vpack.c.b16 %v2200, %v2196
    %v2249 = vpack.c.b16 %v2201, %v2197
    %v2250 = vpack.c.b16 %v2206, %v2202
    %v2251 = vpack.c.b16 %v2207, %v2203
    %v2252 = vpack.c.b16 %v2208, %v2204
    %v2253 = vpack.c.b16 %v2209, %v2205
    %v2254 = vpack.c.b16 %v2214, %v2210
    %v2255 = vpack.c.b16 %v2215, %v2211
    %v2256 = vpack.c.b16 %v2216, %v2212
    %v2257 = vpack.c.b16 %v2217, %v2213
    %v2258 = vpack.c.b16 %v2222, %v2218
    %v2259 = vpack.c.b16 %v2223, %v2219
    %v2260 = vpack.c.b16 %v2224, %v2220
    %v2261 = vpack.c.b16 %v2225, %v2221
    %v2262 = vpack.c.b16 %v2230, %v2226
    %v2263 = vpack.c.b16 %v2231, %v2227
    %v2264 = vpack.c.b16 %v2232, %v2228
    %v2265 = vpack.c.b16 %v2233, %v2229
    %2298 = vmatprep.subr.bf16.mxu0 %v2235
    %2299 = vmatpush1.bf16.msra.mxu0 %v2234
    %2300 = vmatprep.subr.bf16.mxu0 %v2239
    %2301 = vmatpush1.bf16.msra.mxu0 %v2238
    %2302 = vmatprep.subr.bf16.mxu0 %v2243
    %2303 = vmatpush1.bf16.msra.mxu0 %v2242
    %2304 = vmatprep.subr.bf16.mxu0 %v2247
    %2305 = vmatpush1.bf16.msra.mxu0 %v2246
    %2306 = vmatprep.subr.bf16.mxu0 %v2251
    %2307 = vmatpush1.bf16.msra.mxu0 %v2250
    %2308 = vmatprep.subr.bf16.mxu0 %v2255
    %2309 = vmatpush1.bf16.msra.mxu0 %v2254
    %2310 = vmatprep.subr.bf16.mxu0 %v2259
    %2311 = vmatpush1.bf16.msra.mxu0 %v2258
    %2312 = vmatprep.subr.bf16.mxu0 %v2263
    %2313 = vmatpush1.bf16.msra.mxu0 %v2262
    %2314 = vmatprep.subr.bf16.mxu0 0
    %2315 = vmatpush1.bf16.msra.mxu0 0
    %2316 = vmatprep.subr.bf16.mxu0 0
    %2317 = vmatpush1.bf16.msra.mxu0 0
    %2318 = vmatprep.subr.bf16.mxu0 0
    %2319 = vmatpush1.bf16.msra.mxu0 0
    %2320 = vmatprep.subr.bf16.mxu0 0
    %2321 = vmatpush1.bf16.msra.mxu0 0
    %2322 = vmatprep.subr.bf16.mxu0 0
    %2323 = vmatpush1.bf16.msra.mxu0 0
    %2324 = vmatprep.subr.bf16.mxu0 0
    %2325 = vmatpush1.bf16.msra.mxu0 0
    %2326 = vmatprep.subr.bf16.mxu0 0
    %2327 = vmatpush1.bf16.msra.mxu0 0
    %2328 = vmatprep.subr.bf16.mxu0 0
    %2329 = vmatpush1.bf16.msra.mxu0 0
    %2330 = vmatprep.mubr.bf16.mxu0 0
    %2331 = vmatmul.mubr.bf16.gmra.mrb[0].mxu0 %v2105
    %v2332 = vpop.f32.mrb[0].mxu0
    %v2333 = vadd.f32 0.0, %v2332
    %v2334 = vpop.f32.mrb[0].mxu0
    %v2335 = vadd.f32 0.0, %v2334
    %v2336 = vpop.f32.mrb[0].mxu0
    %v2337 = vadd.f32 0.0, %v2336
    %v2338 = vpop.f32.mrb[0].mxu0
    %v2339 = vadd.f32 0.0, %v2338
    %2340 = vdwg.mxu0
    %2341 = vmatprep.subr.bf16.mxu0 %v2237
    %2342 = vmatpush1.bf16.msra.mxu0 %v2236
    %2343 = vmatprep.subr.bf16.mxu0 %v2241
    %2344 = vmatpush1.bf16.msra.mxu0 %v2240
    %2345 = vmatprep.subr.bf16.mxu0 %v2245
    %2346 = vmatpush1.bf16.msra.mxu0 %v2244
    %2347 = vmatprep.subr.bf16.mxu0 %v2249
    %2348 = vmatpush1.bf16.msra.mxu0 %v2248
    %2349 = vmatprep.subr.bf16.mxu0 %v2253
    %2350 = vmatpush1.bf16.msra.mxu0 %v2252
    %2351 = vmatprep.subr.bf16.mxu0 %v2257
    %2352 = vmatpush1.bf16.msra.mxu0 %v2256
    %2353 = vmatprep.subr.bf16.mxu0 %v2261
    %2354 = vmatpush1.bf16.msra.mxu0 %v2260
    %2355 = vmatprep.subr.bf16.mxu0 %v2265
    %2356 = vmatpush1.bf16.msra.mxu0 %v2264
    %2357 = vmatprep.subr.bf16.mxu0 0
    %2358 = vmatpush1.bf16.msra.mxu0 0
    %2359 = vmatprep.subr.bf16.mxu0 0
    %2360 = vmatpush1.bf16.msra.mxu0 0
    %2361 = vmatprep.subr.bf16.mxu0 0
    %2362 = vmatpush1.bf16.msra.mxu0 0
    %2363 = vmatprep.subr.bf16.mxu0 0
    %2364 = vmatpush1.bf16.msra.mxu0 0
    %2365 = vmatprep.subr.bf16.mxu0 0
    %2366 = vmatpush1.bf16.msra.mxu0 0
    %2367 = vmatprep.subr.bf16.mxu0 0
    %2368 = vmatpush1.bf16.msra.mxu0 0
    %2369 = vmatprep.subr.bf16.mxu0 0
    %2370 = vmatpush1.bf16.msra.mxu0 0
    %2371 = vmatprep.subr.bf16.mxu0 0
    %2372 = vmatpush1.bf16.msra.mxu0 0
    %2373 = vmatprep.mubr.bf16.mxu0 0
    %2374 = vmatmul.mubr.bf16.gmra.mrb[0].mxu0 %v2105
    %v2375 = vpop.f32.mrb[0].mxu0
    %v2376 = vadd.f32 0.0, %v2375
    %v2377 = vpop.f32.mrb[0].mxu0
    %v2378 = vadd.f32 0.0, %v2377
    %v2379 = vpop.f32.mrb[0].mxu0
    %v2380 = vadd.f32 0.0, %v2379
    %v2381 = vpop.f32.mrb[0].mxu0
    %v2382 = vadd.f32 0.0, %v2381
    %2383 = vdwg.mxu0
    %v2384 = vld [vmem:[#allocation5 + $0x38] sm:$0xff]
    %v2385 = vld [vmem:[#allocation5 + $0x40] sm:$0xff]
    %v2386 = vld [vmem:[#allocation5 + $0x48] sm:$0xff]
    %v2387 = vld [vmem:[#allocation5 + $0x50] sm:$0xff]
    %v2388 = vld [vmem:[#allocation5 + $0x98] sm:$0xff]
    %v2389 = vld [vmem:[#allocation5 + $0xa0] sm:$0xff]
    %v2390 = vld [vmem:[#allocation5 + $0xa8] sm:$0xff]
    %v2391 = vld [vmem:[#allocation5 + $0xb0] sm:$0xff]
    %v2392 = vld [vmem:[#allocation5 + $0xf8] sm:$0xff]
    %v2393 = vld [vmem:[#allocation5 + $0x100] sm:$0xff]
    %v2394 = vld [vmem:[#allocation5 + $0x108] sm:$0xff]
    %v2395 = vld [vmem:[#allocation5 + $0x110] sm:$0xff]
    %v2396 = vld [vmem:[#allocation5 + $0x158] sm:$0xff]
    %v2397 = vld [vmem:[#allocation5 + $0x160] sm:$0xff]
    %v2398 = vld [vmem:[#allocation5 + $0x168] sm:$0xff]
    %v2399 = vld [vmem:[#allocation5 + $0x170] sm:$0xff]
    %v2400 = vld [vmem:[#allocation5 + $0x1b8] sm:$0xff]
    %v2401 = vld [vmem:[#allocation5 + $0x1c0] sm:$0xff]
    %v2402 = vld [vmem:[#allocation5 + $0x1c8] sm:$0xff]
    %v2403 = vld [vmem:[#allocation5 + $0x1d0] sm:$0xff]
    %v2404 = vld [vmem:[#allocation5 + $0x218] sm:$0xff]
    %v2405 = vld [vmem:[#allocation5 + $0x220] sm:$0xff]
    %v2406 = vld [vmem:[#allocation5 + $0x228] sm:$0xff]
    %v2407 = vld [vmem:[#allocation5 + $0x230] sm:$0xff]
    %v2408 = vld [vmem:[#allocation5 + $0x278] sm:$0xff]
    %v2409 = vld [vmem:[#allocation5 + $0x280] sm:$0xff]
    %v2410 = vld [vmem:[#allocation5 + $0x288] sm:$0xff]
    %v2411 = vld [vmem:[#allocation5 + $0x290] sm:$0xff]
    %v2412 = vld [vmem:[#allocation5 + $0x2d8] sm:$0xff]
    %v2413 = vld [vmem:[#allocation5 + $0x2e0] sm:$0xff]
    %v2414 = vld [vmem:[#allocation5 + $0x2e8] sm:$0xff]
    %v2415 = vld [vmem:[#allocation5 + $0x2f0] sm:$0xff]
    %v2416 = vld [vmem:[#allocation5 + $0x58] sm:$0xff]
    %v2417 = vld [vmem:[#allocation5 + $0xb8] sm:$0xff]
    %v2418 = vld [vmem:[#allocation5 + $0x118] sm:$0xff]
    %v2419 = vld [vmem:[#allocation5 + $0x178] sm:$0xff]
    %v2420 = vld [vmem:[#allocation5 + $0x1d8] sm:$0xff]
    %v2421 = vld [vmem:[#allocation5 + $0x238] sm:$0xff]
    %v2422 = vld [vmem:[#allocation5 + $0x298] sm:$0xff]
    %v2423 = vld [vmem:[#allocation5 + $0x2f8] sm:$0xff]
    %v2424 = vmul.f32 %v2333, %v2384
    %v2425 = vmul.f32 %v2335, %v2385
    %v2426 = vmul.f32 %v2376, %v2386
    %v2427 = vmul.f32 %v2378, %v2387
    %v2428 = vmul.f32 %v2333, %v2388
    %v2429 = vmul.f32 %v2335, %v2389
    %v2430 = vmul.f32 %v2376, %v2390
    %v2431 = vmul.f32 %v2378, %v2391
    %v2432 = vmul.f32 %v2333, %v2392
    %v2433 = vmul.f32 %v2335, %v2393
    %v2434 = vmul.f32 %v2376, %v2394
    %v2435 = vmul.f32 %v2378, %v2395
    %v2436 = vmul.f32 %v2333, %v2396
    %v2437 = vmul.f32 %v2335, %v2397
    %v2438 = vmul.f32 %v2376, %v2398
    %v2439 = vmul.f32 %v2378, %v2399
    %v2440 = vmul.f32 %v2333, %v2400
    %v2441 = vmul.f32 %v2335, %v2401
    %v2442 = vmul.f32 %v2376, %v2402
    %v2443 = vmul.f32 %v2378, %v2403
    %v2444 = vmul.f32 %v2333, %v2404
    %v2445 = vmul.f32 %v2335, %v2405
    %v2446 = vmul.f32 %v2376, %v2406
    %v2447 = vmul.f32 %v2378, %v2407
    %v2448 = vmul.f32 %v2333, %v2408
    %v2449 = vmul.f32 %v2335, %v2409
    %v2450 = vmul.f32 %v2376, %v2410
    %v2451 = vmul.f32 %v2378, %v2411
    %v2452 = vmul.f32 %v2333, %v2412
    %v2453 = vmul.f32 %v2335, %v2413
    %v2454 = vmul.f32 %v2376, %v2414
    %v2455 = vmul.f32 %v2378, %v2415
    %2456 = vmatprep.subr.mxu0 %v2425
    %2457 = vmatpush1.xpose.msra.mxu0 %v2424
    %2458 = vmatprep.subr.mxu0 %v2429
    %2459 = vmatpush1.xpose.msra.mxu0 %v2428
    %2460 = vmatprep.subr.mxu0 %v2433
    %2461 = vmatpush1.xpose.msra.mxu0 %v2432
    %2462 = vmatprep.subr.mxu0 %v2437
    %2463 = vmatpush1.xpose.msra.mxu0 %v2436
    %2464 = vmatprep.subr.mxu0 %v2441
    %2465 = vmatpush1.xpose.msra.mxu0 %v2440
    %2466 = vmatprep.subr.mxu0 %v2445
    %2467 = vmatpush1.xpose.msra.mxu0 %v2444
    %2468 = vmatprep.subr.mxu0 %v2449
    %2469 = vmatpush1.xpose.msra.mxu0 %v2448
    %2470 = vmatprep.subr.mxu0 %v2453
    %2471 = vmatpush1.xpose.msra.mxu0 %v2452
    %2472 = vmatprep.subr.mxu0 0.0
    %2473 = vmatpush1.xpose.msra.mxu0 0.0
    %2474 = vmatprep.subr.mxu0 0.0
    %2475 = vmatpush1.xpose.msra.mxu0 0.0
    %2476 = vmatprep.subr.mxu0 0.0
    %2477 = vmatpush1.xpose.msra.mxu0 0.0
    %2478 = vmatprep.subr.mxu0 0.0
    %2479 = vmatpush1.xpose.msra.mxu0 0.0
    %2480 = vmatprep.subr.mxu0 0.0
    %2481 = vmatpush1.xpose.msra.mxu0 0.0
    %2482 = vmatprep.subr.mxu0 0.0
    %2483 = vmatpush1.xpose.msra.mxu0 0.0
    %2484 = vmatprep.subr.mxu0 0.0
    %2485 = vmatpush1.xpose.msra.mxu0 0.0
    %2486 = vmatprep.subr.mxu0 0.0
    %2487 = vmatpush1.xpose.msra.mxu0 0.0
    %2488 = vmatprep.subr.mxu0 0.0
    %2489 = vmatpush1.xpose.msra.mxu0 0.0
    %2490 = vmatprep.subr.mxu0 0.0
    %2491 = vmatpush1.xpose.msra.mxu0 0.0
    %2492 = vmatprep.subr.mxu0 0.0
    %2493 = vmatpush1.xpose.msra.mxu0 0.0
    %2494 = vmatprep.subr.mxu0 0.0
    %2495 = vmatpush1.xpose.msra.mxu0 0.0
    %2496 = vmatprep.subr.mxu0 0.0
    %2497 = vmatpush1.xpose.msra.mxu0 0.0
    %2498 = vmatprep.subr.mxu0 0.0
    %2499 = vmatpush1.xpose.msra.mxu0 0.0
    %2500 = vmatprep.subr.mxu0 0.0
    %2501 = vmatpush1.xpose.msra.mxu0 0.0
    %2502 = vmatprep.subr.mxu0 0.0
    %2503 = vmatpush1.xpose.msra.mxu0 0.0
    %2504 = vmatprep.subr.mxu0 0.0
    %2505 = vmatpush1.xpose.msra.mxu0 0.0
    %2506 = vmatprep.subr.mxu0 0.0
    %2507 = vmatpush1.xpose.msra.mxu0 0.0
    %2508 = vmatprep.subr.mxu0 0.0
    %2509 = vmatpush1.xpose.msra.mxu0 0.0
    %2510 = vmatprep.subr.mxu0 0.0
    %2511 = vmatpush1.xpose.msra.mxu0 0.0
    %2512 = vmatprep.subr.mxu0 0.0
    %2513 = vmatpush1.xpose.msra.mxu0 0.0
    %2514 = vmatprep.subr.mxu0 0.0
    %2515 = vmatpush1.xpose.msra.mxu0 0.0
    %2516 = vmatprep.subr.mxu0 0.0
    %2517 = vmatpush1.xpose.msra.mxu0 0.0
    %2518 = vmatprep.subr.mxu0 0.0
    %2519 = vmatpush1.xpose.msra.mxu0 0.0
    %2520 = vmatprep.mubr.f32.mxu0 %v1563
    %2521 = vmatmul.mubr.f32.gmra.mrb[0].mxu0 %v1488
    %v2522 = vpop.f32.mrb[0].mxu0
    %v2523 = vadd.f32 0.0, %v2522
    %v2524 = vpop.f32.mrb[0].mxu0
    %2525 = vdwg.mxu0
    %v2526 = vmul.f32 %v2523, 0.17677669
    %vm2527 = vcmask 523264
    %v2528 = vsel %vm2527, %v2526, -inf
    %2529 = vmax.xlane.f32.xlu0 %v2528
    %v2530 = vpop.xlane.xlu0 %2529
    %v2531 = vsub.f32 %v2526, %v2530
    %v2532 = vmul.f32 %v2531, 1.442695
    %v2533 = vpow.pop %v2532
    %v2535 = vsel %vm2527, %v2533, 0
    %2537 = vmatprep.subr.mxu0 0.0
    %2538 = vmatpush1.msra.mxu0 %v2416
    %2539 = vmatprep.subr.mxu0 0.0
    %2540 = vmatpush1.msra.mxu0 %v2417
    %2541 = vmatprep.subr.mxu0 0.0
    %2542 = vmatpush1.msra.mxu0 %v2418
    %2543 = vmatprep.subr.mxu0 0.0
    %2544 = vmatpush1.msra.mxu0 %v2419
    %2545 = vmatprep.subr.mxu0 0.0
    %2546 = vmatpush1.msra.mxu0 %v2420
    %2547 = vmatprep.subr.mxu0 0.0
    %2548 = vmatpush1.msra.mxu0 %v2421
    %2549 = vmatprep.subr.mxu0 0.0
    %2550 = vmatpush1.msra.mxu0 %v2422
    %2551 = vmatprep.subr.mxu0 0.0
    %2552 = vmatpush1.msra.mxu0 %v2423
    %2553 = vmatprep.subr.mxu0 0.0
    %2554 = vmatpush1.msra.mxu0 0.0
    %2555 = vmatprep.subr.mxu0 0.0
    %2556 = vmatpush1.msra.mxu0 0.0
    %2557 = vmatprep.subr.mxu0 0.0
    %2558 = vmatpush1.msra.mxu0 0.0
    %2559 = vmatprep.subr.mxu0 0.0
    %2560 = vmatpush1.msra.mxu0 0.0
    %2561 = vmatprep.subr.mxu0 0.0
    %2562 = vmatpush1.msra.mxu0 0.0
    %2563 = vmatprep.subr.mxu0 0.0
    %2564 = vmatpush1.msra.mxu0 0.0
    %2565 = vmatprep.subr.mxu0 0.0
    %2566 = vmatpush1.msra.mxu0 0.0
    %2567 = vmatprep.subr.mxu0 0.0
    %2568 = vmatpush1.msra.mxu0 0.0
    %2569 = vmatprep.subr.mxu0 0.0
    %2570 = vmatpush1.msra.mxu0 0.0
    %2571 = vmatprep.subr.mxu0 0.0
    %2572 = vmatpush1.msra.mxu0 0.0
    %2573 = vmatprep.subr.mxu0 0.0
    %2574 = vmatpush1.msra.mxu0 0.0
    %2575 = vmatprep.subr.mxu0 0.0
    %2576 = vmatpush1.msra.mxu0 0.0
    %2577 = vmatprep.subr.mxu0 0.0
    %2578 = vmatpush1.msra.mxu0 0.0
    %2579 = vmatprep.subr.mxu0 0.0
    %2580 = vmatpush1.msra.mxu0 0.0
    %2581 = vmatprep.subr.mxu0 0.0
    %2582 = vmatpush1.msra.mxu0 0.0
    %2583 = vmatprep.subr.mxu0 0.0
    %2584 = vmatpush1.msra.mxu0 0.0
    %2585 = vmatprep.subr.mxu0 0.0
    %2586 = vmatpush1.msra.mxu0 0.0
    %2587 = vmatprep.subr.mxu0 0.0
    %2588 = vmatpush1.msra.mxu0 0.0
    %2589 = vmatprep.subr.mxu0 0.0
    %2590 = vmatpush1.msra.mxu0 0.0
    %2591 = vmatprep.subr.mxu0 0.0
    %2592 = vmatpush1.msra.mxu0 0.0
    %2593 = vmatprep.subr.mxu0 0.0
    %2594 = vmatpush1.msra.mxu0 0.0
    %2595 = vmatprep.subr.mxu0 0.0
    %2596 = vmatpush1.msra.mxu0 0.0
    %2597 = vmatprep.subr.mxu0 0.0
    %2598 = vmatpush1.msra.mxu0 0.0
    %2599 = vmatprep.subr.mxu0 0.0
    %2600 = vmatpush1.msra.mxu0 0.0
    %2601 = vmatprep.mubr.f32.mxu0 0.0
    %2602 = vmatmul.mubr.f32.gmra.mrb[0].mxu0 %v2535
    %v2603 = vpop.f32.mrb[0].mxu0
    %v2604 = vadd.f32 0.0, %v2603
    %v2605 = vpop.f32.mrb[0].mxu0
    %2606 = vdwg.mxu0
    %v2607 = vrcp.pop %v2604
    %v2608 = vmul.f32 %v2533, %v2607
    %v2610 = vsel %vm2527, %v2608, 0
    %2612 = vmatprep.subr.mxu0 %v2427
    %2613 = vmatpush1.msra.mxu0 %v2426
    %2614 = vmatprep.subr.mxu0 %v2431
    %2615 = vmatpush1.msra.mxu0 %v2430
    %2616 = vmatprep.subr.mxu0 %v2435
    %2617 = vmatpush1.msra.mxu0 %v2434
    %2618 = vmatprep.subr.mxu0 %v2439
    %2619 = vmatpush1.msra.mxu0 %v2438
    %2620 = vmatprep.subr.mxu0 %v2443
    %2621 = vmatpush1.msra.mxu0 %v2442
    %2622 = vmatprep.subr.mxu0 %v2447
    %2623 = vmatpush1.msra.mxu0 %v2446
    %2624 = vmatprep.subr.mxu0 %v2451
    %2625 = vmatpush1.msra.mxu0 %v2450
    %2626 = vmatprep.subr.mxu0 %v2455
    %2627 = vmatpush1.msra.mxu0 %v2454
    %2628 = vmatprep.subr.mxu0 0.0
    %2629 = vmatpush1.msra.mxu0 0.0
    %2630 = vmatprep.subr.mxu0 0.0
    %2631 = vmatpush1.msra.mxu0 0.0
    %2632 = vmatprep.subr.mxu0 0.0
    %2633 = vmatpush1.msra.mxu0 0.0
    %2634 = vmatprep.subr.mxu0 0.0
    %2635 = vmatpush1.msra.mxu0 0.0
    %2636 = vmatprep.subr.mxu0 0.0
    %2637 = vmatpush1.msra.mxu0 0.0
    %2638 = vmatprep.subr.mxu0 0.0
    %2639 = vmatpush1.msra.mxu0 0.0
    %2640 = vmatprep.subr.mxu0 0.0
    %2641 = vmatpush1.msra.mxu0 0.0
    %2642 = vmatprep.subr.mxu0 0.0
    %2643 = vmatpush1.msra.mxu0 0.0
    %2644 = vmatprep.subr.mxu0 0.0
    %2645 = vmatpush1.msra.mxu0 0.0
    %2646 = vmatprep.subr.mxu0 0.0
    %2647 = vmatpush1.msra.mxu0 0.0
    %2648 = vmatprep.subr.mxu0 0.0
    %2649 = vmatpush1.msra.mxu0 0.0
    %2650 = vmatprep.subr.mxu0 0.0
    %2651 = vmatpush1.msra.mxu0 0.0
    %2652 = vmatprep.subr.mxu0 0.0
    %2653 = vmatpush1.msra.mxu0 0.0
    %2654 = vmatprep.subr.mxu0 0.0
    %2655 = vmatpush1.msra.mxu0 0.0
    %2656 = vmatprep.subr.mxu0 0.0
    %2657 = vmatpush1.msra.mxu0 0.0
    %2658 = vmatprep.subr.mxu0 0.0
    %2659 = vmatpush1.msra.mxu0 0.0
    %2660 = vmatprep.subr.mxu0 0.0
    %2661 = vmatpush1.msra.mxu0 0.0
    %2662 = vmatprep.subr.mxu0 0.0
    %2663 = vmatpush1.msra.mxu0 0.0
    %2664 = vmatprep.subr.mxu0 0.0
    %2665 = vmatpush1.msra.mxu0 0.0
    %2666 = vmatprep.subr.mxu0 0.0
    %2667 = vmatpush1.msra.mxu0 0.0
    %2668 = vmatprep.subr.mxu0 0.0
    %2669 = vmatpush1.msra.mxu0 0.0
    %2670 = vmatprep.subr.mxu0 0.0
    %2671 = vmatpush1.msra.mxu0 0.0
    %2672 = vmatprep.subr.mxu0 0.0
    %2673 = vmatpush1.msra.mxu0 0.0
    %2674 = vmatprep.subr.mxu0 0.0
    %2675 = vmatpush1.msra.mxu0 0.0
    %2676 = vmatprep.mubr.f32.mxu0 0.0
    %2677 = vmatmul.mubr.f32.gmra.mrb[0].mxu0 %v2610
    %v2678 = vpop.f32.mrb[0].mxu0
    %v2679 = vadd.f32 0.0, %v2678
    %v2680 = vpop.f32.mrb[0].mxu0
    %v2681 = vadd.f32 0.0, %v2680
    %2682 = vdwg.mxu0
    %v2683 = vmul.f32 %v2337, %v2384
    %v2684 = vmul.f32 %v2339, %v2385
    %v2685 = vmul.f32 %v2380, %v2386
    %v2686 = vmul.f32 %v2382, %v2387
    %v2687 = vmul.f32 %v2337, %v2388
    %v2688 = vmul.f32 %v2339, %v2389
    %v2689 = vmul.f32 %v2380, %v2390
    %v2690 = vmul.f32 %v2382, %v2391
    %v2691 = vmul.f32 %v2337, %v2392
    %v2692 = vmul.f32 %v2339, %v2393
    %v2693 = vmul.f32 %v2380, %v2394
    %v2694 = vmul.f32 %v2382, %v2395
    %v2695 = vmul.f32 %v2337, %v2396
    %v2696 = vmul.f32 %v2339, %v2397
    %v2697 = vmul.f32 %v2380, %v2398
    %v2698 = vmul.f32 %v2382, %v2399
    %v2699 = vmul.f32 %v2337, %v2400
    %v2700 = vmul.f32 %v2339, %v2401
    %v2701 = vmul.f32 %v2380, %v2402
    %v2702 = vmul.f32 %v2382, %v2403
    %v2703 = vmul.f32 %v2337, %v2404
    %v2704 = vmul.f32 %v2339, %v2405
    %v2705 = vmul.f32 %v2380, %v2406
    %v2706 = vmul.f32 %v2382, %v2407
    %v2707 = vmul.f32 %v2337, %v2408
    %v2708 = vmul.f32 %v2339, %v2409
    %v2709 = vmul.f32 %v2380, %v2410
    %v2710 = vmul.f32 %v2382, %v2411
    %v2711 = vmul.f32 %v2337, %v2412
    %v2712 = vmul.f32 %v2339, %v2413
    %v2713 = vmul.f32 %v2380, %v2414
    %v2714 = vmul.f32 %v2382, %v2415
    %2715 = vmatprep.subr.mxu0 %v2684
    %2716 = vmatpush1.xpose.msra.mxu0 %v2683
    %2717 = vmatprep.subr.mxu0 %v2688
    %2718 = vmatpush1.xpose.msra.mxu0 %v2687
    %2719 = vmatprep.subr.mxu0 %v2692
    %2720 = vmatpush1.xpose.msra.mxu0 %v2691
    %2721 = vmatprep.subr.mxu0 %v2696
    %2722 = vmatpush1.xpose.msra.mxu0 %v2695
    %2723 = vmatprep.subr.mxu0 %v2700
    %2724 = vmatpush1.xpose.msra.mxu0 %v2699
    %2725 = vmatprep.subr.mxu0 %v2704
    %2726 = vmatpush1.xpose.msra.mxu0 %v2703
    %2727 = vmatprep.subr.mxu0 %v2708
    %2728 = vmatpush1.xpose.msra.mxu0 %v2707
    %2729 = vmatprep.subr.mxu0 %v2712
    %2730 = vmatpush1.xpose.msra.mxu0 %v2711
    %2731 = vmatprep.subr.mxu0 0.0
    %2732 = vmatpush1.xpose.msra.mxu0 0.0
    %2733 = vmatprep.subr.mxu0 0.0
    %2734 = vmatpush1.xpose.msra.mxu0 0.0
    %2735 = vmatprep.subr.mxu0 0.0
    %2736 = vmatpush1.xpose.msra.mxu0 0.0
    %2737 = vmatprep.subr.mxu0 0.0
    %2738 = vmatpush1.xpose.msra.mxu0 0.0
    %2739 = vmatprep.subr.mxu0 0.0
    %2740 = vmatpush1.xpose.msra.mxu0 0.0
    %2741 = vmatprep.subr.mxu0 0.0
    %2742 = vmatpush1.xpose.msra.mxu0 0.0
    %2743 = vmatprep.subr.mxu0 0.0
    %2744 = vmatpush1.xpose.msra.mxu0 0.0
    %2745 = vmatprep.subr.mxu0 0.0
    %2746 = vmatpush1.xpose.msra.mxu0 0.0
    %2747 = vmatprep.subr.mxu0 0.0
    %2748 = vmatpush1.xpose.msra.mxu0 0.0
    %2749 = vmatprep.subr.mxu0 0.0
    %2750 = vmatpush1.xpose.msra.mxu0 0.0
    %2751 = vmatprep.subr.mxu0 0.0
    %2752 = vmatpush1.xpose.msra.mxu0 0.0
    %2753 = vmatprep.subr.mxu0 0.0
    %2754 = vmatpush1.xpose.msra.mxu0 0.0
    %2755 = vmatprep.subr.mxu0 0.0
    %2756 = vmatpush1.xpose.msra.mxu0 0.0
    %2757 = vmatprep.subr.mxu0 0.0
    %2758 = vmatpush1.xpose.msra.mxu0 0.0
    %2759 = vmatprep.subr.mxu0 0.0
    %2760 = vmatpush1.xpose.msra.mxu0 0.0
    %2761 = vmatprep.subr.mxu0 0.0
    %2762 = vmatpush1.xpose.msra.mxu0 0.0
    %2763 = vmatprep.subr.mxu0 0.0
    %2764 = vmatpush1.xpose.msra.mxu0 0.0
    %2765 = vmatprep.subr.mxu0 0.0
    %2766 = vmatpush1.xpose.msra.mxu0 0.0
    %2767 = vmatprep.subr.mxu0 0.0
    %2768 = vmatpush1.xpose.msra.mxu0 0.0
    %2769 = vmatprep.subr.mxu0 0.0
    %2770 = vmatpush1.xpose.msra.mxu0 0.0
    %2771 = vmatprep.subr.mxu0 0.0
    %2772 = vmatpush1.xpose.msra.mxu0 0.0
    %2773 = vmatprep.subr.mxu0 0.0
    %2774 = vmatpush1.xpose.msra.mxu0 0.0
    %2775 = vmatprep.subr.mxu0 0.0
    %2776 = vmatpush1.xpose.msra.mxu0 0.0
    %2777 = vmatprep.subr.mxu0 0.0
    %2778 = vmatpush1.xpose.msra.mxu0 0.0
    %2779 = vmatprep.mubr.f32.mxu0 %v1569
    %2780 = vmatmul.mubr.f32.gmra.mrb[0].mxu0 %v1494
    %v2781 = vpop.f32.mrb[0].mxu0
    %v2782 = vadd.f32 0.0, %v2781
    %v2783 = vpop.f32.mrb[0].mxu0
    %2784 = vdwg.mxu0
    %v2785 = vmul.f32 %v2782, 0.17677669
    %v2786 = vsel %vm2527, %v2785, -inf
    %2787 = vmax.xlane.f32.xlu0 %v2786
    %v2788 = vpop.xlane.xlu0 %2787
    %v2789 = vsub.f32 %v2785, %v2788
    %v2790 = vmul.f32 %v2789, 1.442695
    %v2791 = vpow.pop %v2790
    %v2793 = vsel %vm2527, %v2791, 0
    %2795 = vmatprep.subr.mxu0 0.0
    %2796 = vmatpush1.msra.mxu0 %v2416
    %2797 = vmatprep.subr.mxu0 0.0
    %2798 = vmatpush1.msra.mxu0 %v2417
    %2799 = vmatprep.subr.mxu0 0.0
    %2800 = vmatpush1.msra.mxu0 %v2418
    %2801 = vmatprep.subr.mxu0 0.0
    %2802 = vmatpush1.msra.mxu0 %v2419
    %2803 = vmatprep.subr.mxu0 0.0
    %2804 = vmatpush1.msra.mxu0 %v2420
    %2805 = vmatprep.subr.mxu0 0.0
    %2806 = vmatpush1.msra.mxu0 %v2421
    %2807 = vmatprep.subr.mxu0 0.0
    %2808 = vmatpush1.msra.mxu0 %v2422
    %2809 = vmatprep.subr.mxu0 0.0
    %2810 = vmatpush1.msra.mxu0 %v2423
    %2811 = vmatprep.subr.mxu0 0.0
    %2812 = vmatpush1.msra.mxu0 0.0
    %2813 = vmatprep.subr.mxu0 0.0
    %2814 = vmatpush1.msra.mxu0 0.0
    %2815 = vmatprep.subr.mxu0 0.0
    %2816 = vmatpush1.msra.mxu0 0.0
    %2817 = vmatprep.subr.mxu0 0.0
    %2818 = vmatpush1.msra.mxu0 0.0
    %2819 = vmatprep.subr.mxu0 0.0
    %2820 = vmatpush1.msra.mxu0 0.0
    %2821 = vmatprep.subr.mxu0 0.0
    %2822 = vmatpush1.msra.mxu0 0.0
    %2823 = vmatprep.subr.mxu0 0.0
    %2824 = vmatpush1.msra.mxu0 0.0
    %2825 = vmatprep.subr.mxu0 0.0
    %2826 = vmatpush1.msra.mxu0 0.0
    %2827 = vmatprep.subr.mxu0 0.0
    %2828 = vmatpush1.msra.mxu0 0.0
    %2829 = vmatprep.subr.mxu0 0.0
    %2830 = vmatpush1.msra.mxu0 0.0
    %2831 = vmatprep.subr.mxu0 0.0
    %2832 = vmatpush1.msra.mxu0 0.0
    %2833 = vmatprep.subr.mxu0 0.0
    %2834 = vmatpush1.msra.mxu0 0.0
    %2835 = vmatprep.subr.mxu0 0.0
    %2836 = vmatpush1.msra.mxu0 0.0
    %2837 = vmatprep.subr.mxu0 0.0
    %2838 = vmatpush1.msra.mxu0 0.0
    %2839 = vmatprep.subr.mxu0 0.0
    %2840 = vmatpush1.msra.mxu0 0.0
    %2841 = vmatprep.subr.mxu0 0.0
    %2842 = vmatpush1.msra.mxu0 0.0
    %2843 = vmatprep.subr.mxu0 0.0
    %2844 = vmatpush1.msra.mxu0 0.0
    %2845 = vmatprep.subr.mxu0 0.0
    %2846 = vmatpush1.msra.mxu0 0.0
    %2847 = vmatprep.subr.mxu0 0.0
    %2848 = vmatpush1.msra.mxu0 0.0
    %2849 = vmatprep.subr.mxu0 0.0
    %2850 = vmatpush1.msra.mxu0 0.0
    %2851 = vmatprep.subr.mxu0 0.0
    %2852 = vmatpush1.msra.mxu0 0.0
    %2853 = vmatprep.subr.mxu0 0.0
    %2854 = vmatpush1.msra.mxu0 0.0
    %2855 = vmatprep.subr.mxu0 0.0
    %2856 = vmatpush1.msra.mxu0 0.0
    %2857 = vmatprep.subr.mxu0 0.0
    %2858 = vmatpush1.msra.mxu0 0.0
    %2859 = vmatprep.mubr.f32.mxu0 0.0
    %2860 = vmatmul.mubr.f32.gmra.mrb[0].mxu0 %v2793
    %v2861 = vpop.f32.mrb[0].mxu0
    %v2862 = vadd.f32 0.0, %v2861
    %v2863 = vpop.f32.mrb[0].mxu0
    %2864 = vdwg.mxu0
    %v2865 = vrcp.pop %v2862
    %v2866 = vmul.f32 %v2791, %v2865
    %v2868 = vsel %vm2527, %v2866, 0
    %2870 = vmatprep.subr.mxu0 %v2686
    %2871 = vmatpush1.msra.mxu0 %v2685
    %2872 = vmatprep.subr.mxu0 %v2690
    %2873 = vmatpush1.msra.mxu0 %v2689
    %2874 = vmatprep.subr.mxu0 %v2694
    %2875 = vmatpush1.msra.mxu0 %v2693
    %2876 = vmatprep.subr.mxu0 %v2698
    %2877 = vmatpush1.msra.mxu0 %v2697
    %2878 = vmatprep.subr.mxu0 %v2702
    %2879 = vmatpush1.msra.mxu0 %v2701
    %2880 = vmatprep.subr.mxu0 %v2706
    %2881 = vmatpush1.msra.mxu0 %v2705
    %2882 = vmatprep.subr.mxu0 %v2710
    %2883 = vmatpush1.msra.mxu0 %v2709
    %2884 = vmatprep.subr.mxu0 %v2714
    %2885 = vmatpush1.msra.mxu0 %v2713
    %2886 = vmatprep.subr.mxu0 0.0
    %2887 = vmatpush1.msra.mxu0 0.0
    %2888 = vmatprep.subr.mxu0 0.0
    %2889 = vmatpush1.msra.mxu0 0.0
    %2890 = vmatprep.subr.mxu0 0.0
    %2891 = vmatpush1.msra.mxu0 0.0
    %2892 = vmatprep.subr.mxu0 0.0
    %2893 = vmatpush1.msra.mxu0 0.0
    %2894 = vmatprep.subr.mxu0 0.0
    %2895 = vmatpush1.msra.mxu0 0.0
    %2896 = vmatprep.subr.mxu0 0.0
    %2897 = vmatpush1.msra.mxu0 0.0
    %2898 = vmatprep.subr.mxu0 0.0
    %2899 = vmatpush1.msra.mxu0 0.0
    %2900 = vmatprep.subr.mxu0 0.0
    %2901 = vmatpush1.msra.mxu0 0.0
    %2902 = vmatprep.subr.mxu0 0.0
    %2903 = vmatpush1.msra.mxu0 0.0
    %2904 = vmatprep.subr.mxu0 0.0
    %2905 = vmatpush1.msra.mxu0 0.0
    %2906 = vmatprep.subr.mxu0 0.0
    %2907 = vmatpush1.msra.mxu0 0.0
    %2908 = vmatprep.subr.mxu0 0.0
    %2909 = vmatpush1.msra.mxu0 0.0
    %2910 = vmatprep.subr.mxu0 0.0
    %2911 = vmatpush1.msra.mxu0 0.0
    %2912 = vmatprep.subr.mxu0 0.0
    %2913 = vmatpush1.msra.mxu0 0.0
    %2914 = vmatprep.subr.mxu0 0.0
    %2915 = vmatpush1.msra.mxu0 0.0
    %2916 = vmatprep.subr.mxu0 0.0
    %2917 = vmatpush1.msra.mxu0 0.0
    %2918 = vmatprep.subr.mxu0 0.0
    %2919 = vmatpush1.msra.mxu0 0.0
    %2920 = vmatprep.subr.mxu0 0.0
    %2921 = vmatpush1.msra.mxu0 0.0
    %2922 = vmatprep.subr.mxu0 0.0
    %2923 = vmatpush1.msra.mxu0 0.0
    %2924 = vmatprep.subr.mxu0 0.0
    %2925 = vmatpush1.msra.mxu0 0.0
    %2926 = vmatprep.subr.mxu0 0.0
    %2927 = vmatpush1.msra.mxu0 0.0
    %2928 = vmatprep.subr.mxu0 0.0
    %2929 = vmatpush1.msra.mxu0 0.0
    %2930 = vmatprep.subr.mxu0 0.0
    %2931 = vmatpush1.msra.mxu0 0.0
    %2932 = vmatprep.subr.mxu0 0.0
    %2933 = vmatpush1.msra.mxu0 0.0
    %2934 = vmatprep.mubr.f32.mxu0 0.0
    %2935 = vmatmul.mubr.f32.gmra.mrb[0].mxu0 %v2868
    %v2936 = vpop.f32.mrb[0].mxu0
    %v2937 = vadd.f32 0.0, %v2936
    %v2938 = vpop.f32.mrb[0].mxu0
    %v2939 = vadd.f32 0.0, %v2938
    %2940 = vdwg.mxu0
    %v2941 = vpack.c.bf16 %v2937, %v2679
    %v2942 = vpack.c.bf16 %v2939, %v2681
    %v2943 = vld [vmem:[#allocation7] sm:$0xf]
    %v2944 = vld [vmem:[#allocation7 + $0x4] sm:$0xf]
    %v2945 = vld [vmem:[#allocation7 + $0x8] sm:$0xf]
    %v2946 = vld [vmem:[#allocation7 + $0xc] sm:$0xf]
    %v2947 = vld [vmem:[#allocation7 + $0x10] sm:$0xf]
    %v2948 = vld [vmem:[#allocation7 + $0x14] sm:$0xf]
    %v2949 = vld [vmem:[#allocation7 + $0x18] sm:$0xf]
    %v2950 = vld [vmem:[#allocation7 + $0x1c] sm:$0xf]
    %v2951 = vld [vmem:[#allocation7 + $0x20] sm:$0xf]
    %v2952 = vld [vmem:[#allocation7 + $0x24] sm:$0xf]
    %v2953 = vld [vmem:[#allocation7 + $0x28] sm:$0xf]
    %v2954 = vld [vmem:[#allocation7 + $0x2c] sm:$0xf]
    %v2955 = vld [vmem:[#allocation7 + $0x30] sm:$0xf]
    %v2956 = vld [vmem:[#allocation7 + $0x34] sm:$0xf]
    %v2957 = vld [vmem:[#allocation7 + $0x38] sm:$0xf]
    %v2958 = vld [vmem:[#allocation7 + $0x3c] sm:$0xf]
    %v2959 = vld [vmem:[#allocation7 + $0x40] sm:$0xf]
    %v2960 = vld [vmem:[#allocation7 + $0x44] sm:$0xf]
    %v2961 = vld [vmem:[#allocation7 + $0x48] sm:$0xf]
    %v2962 = vld [vmem:[#allocation7 + $0x4c] sm:$0xf]
    %v2963 = vld [vmem:[#allocation7 + $0x50] sm:$0xf]
    %v2964 = vld [vmem:[#allocation7 + $0x54] sm:$0xf]
    %v2965 = vld [vmem:[#allocation7 + $0x58] sm:$0xf]
    %v2966 = vld [vmem:[#allocation7 + $0x5c] sm:$0xf]
    %v2967 = vld [vmem:[#allocation7 + $0x60] sm:$0xf]
    %v2968 = vld [vmem:[#allocation7 + $0x64] sm:$0xf]
    %v2969 = vld [vmem:[#allocation7 + $0x68] sm:$0xf]
    %v2970 = vld [vmem:[#allocation7 + $0x6c] sm:$0xf]
    %v2971 = vld [vmem:[#allocation7 + $0x70] sm:$0xf]
    %v2972 = vld [vmem:[#allocation7 + $0x74] sm:$0xf]
    %v2973 = vld [vmem:[#allocation7 + $0x78] sm:$0xf]
    %v2974 = vld [vmem:[#allocation7 + $0x7c] sm:$0xf]
    %v2975 = vld [vmem:[%s3 + $0xf] sm:$0x1]
    %v2976 = vlaneseq
    %v2977 = vshrl.u32 %v2976, 7
    %v2978 = vsub.s32 0, %v2977
    %v2979 = vrot.slane %v2975, %v2978
    %v3012 = vunpack.c.l.b16 %v2943
    %v3013 = vunpack.c.l.b16 %v2944
    %v3014 = vunpack.c.l.b16 %v2945
    %v3015 = vunpack.c.l.b16 %v2946
    %v3016 = vunpack.c.l.b16 %v2947
    %v3017 = vunpack.c.l.b16 %v2948
    %v3018 = vunpack.c.l.b16 %v2949
    %v3019 = vunpack.c.l.b16 %v2950
    %v3020 = vunpack.c.l.b16 %v2951
    %v3021 = vunpack.c.l.b16 %v2952
    %v3022 = vunpack.c.l.b16 %v2953
    %v3023 = vunpack.c.l.b16 %v2954
    %v3024 = vunpack.c.l.b16 %v2955
    %v3025 = vunpack.c.l.b16 %v2956
    %v3026 = vunpack.c.l.b16 %v2957
    %v3027 = vunpack.c.l.b16 %v2958
    %v3028 = vunpack.c.l.b16 %v2959
    %v3029 = vunpack.c.l.b16 %v2960
    %v3030 = vunpack.c.l.b16 %v2961
    %v3031 = vunpack.c.l.b16 %v2962
    %v3032 = vunpack.c.l.b16 %v2963
    %v3033 = vunpack.c.l.b16 %v2964
    %v3034 = vunpack.c.l.b16 %v2965
    %v3035 = vunpack.c.l.b16 %v2966
    %v3036 = vunpack.c.l.b16 %v2967
    %v3037 = vunpack.c.l.b16 %v2968
    %v3038 = vunpack.c.l.b16 %v2969
    %v3039 = vunpack.c.l.b16 %v2970
    %v3040 = vunpack.c.l.b16 %v2971
    %v3041 = vunpack.c.l.b16 %v2972
    %v3042 = vunpack.c.l.b16 %v2973
    %v3043 = vunpack.c.l.b16 %v2974
    %v3044 = vpack.c.b16 %v3013, %v3012
    %v3045 = vpack.c.b16 %v3015, %v3014
    %v3046 = vpack.c.b16 %v3017, %v3016
    %v3047 = vpack.c.b16 %v3019, %v3018
    %v3048 = vpack.c.b16 %v3021, %v3020
    %v3049 = vpack.c.b16 %v3023, %v3022
    %v3050 = vpack.c.b16 %v3025, %v3024
    %v3051 = vpack.c.b16 %v3027, %v3026
    %v3052 = vpack.c.b16 %v3029, %v3028
    %v3053 = vpack.c.b16 %v3031, %v3030
    %v3054 = vpack.c.b16 %v3033, %v3032
    %v3055 = vpack.c.b16 %v3035, %v3034
    %v3056 = vpack.c.b16 %v3037, %v3036
    %v3057 = vpack.c.b16 %v3039, %v3038
    %v3058 = vpack.c.b16 %v3041, %v3040
    %v3059 = vpack.c.b16 %v3043, %v3042
    %3076 = vmatprep.subr.bf16.mxu0 0
    %3077 = vmatpush1.bf16.msra.mxu0 %v3044
    %3078 = vmatprep.subr.bf16.mxu0 0
    %3079 = vmatpush1.bf16.msra.mxu0 %v3045
    %3080 = vmatprep.subr.bf16.mxu0 0
    %3081 = vmatpush1.bf16.msra.mxu0 %v3046
    %3082 = vmatprep.subr.bf16.mxu0 0
    %3083 = vmatpush1.bf16.msra.mxu0 %v3047
    %3084 = vmatprep.subr.bf16.mxu0 0
    %3085 = vmatpush1.bf16.msra.mxu0 %v3048
    %3086 = vmatprep.subr.bf16.mxu0 0
    %3087 = vmatpush1.bf16.msra.mxu0 %v3049
    %3088 = vmatprep.subr.bf16.mxu0 0
    %3089 = vmatpush1.bf16.msra.mxu0 %v3050
    %3090 = vmatprep.subr.bf16.mxu0 0
    %3091 = vmatpush1.bf16.msra.mxu0 %v3051
    %3092 = vmatprep.subr.bf16.mxu0 0
    %3093 = vmatpush1.bf16.msra.mxu0 %v3052
    %3094 = vmatprep.subr.bf16.mxu0 0
    %3095 = vmatpush1.bf16.msra.mxu0 %v3053
    %3096 = vmatprep.subr.bf16.mxu0 0
    %3097 = vmatpush1.bf16.msra.mxu0 %v3054
    %3098 = vmatprep.subr.bf16.mxu0 0
    %3099 = vmatpush1.bf16.msra.mxu0 %v3055
    %3100 = vmatprep.subr.bf16.mxu0 0
    %3101 = vmatpush1.bf16.msra.mxu0 %v3056
    %3102 = vmatprep.subr.bf16.mxu0 0
    %3103 = vmatpush1.bf16.msra.mxu0 %v3057
    %3104 = vmatprep.subr.bf16.mxu0 0
    %3105 = vmatpush1.bf16.msra.mxu0 %v3058
    %3106 = vmatprep.subr.bf16.mxu0 0
    %3107 = vmatpush1.bf16.msra.mxu0 %v3059
    %3108 = vmatprep.mubr.bf16.mxu0 %v2942
    %3109 = vmatmul.mubr.bf16.gmra.mrb[0].mxu0 %v2941
    %v3110 = vpop.f32.mrb[0].mxu0
    %v3111 = vadd.f32 %v2979, %v3110
    %v3112 = vpop.f32.mrb[0].mxu0
    %v3113 = vpop.f32.mrb[0].mxu0
    %v3114 = vadd.f32 %v2979, %v3113
    %v3115 = vpop.f32.mrb[0].mxu0
    %3116 = vdwg.mxu0
    %v3117 = vadd.f32 %v1565, %v3111
    %v3118 = vadd.f32 %v1571, %v3114
    %3119 = vst [vmem:[%s6] sm:$0xff] %v3117
    %3120 = vst [vmem:[%s6 + $0x8] sm:$0xff] %v3118
    // Predicated region
    $region34: #{component_mixer_v2.1} parent=1 // pred_check
      _
    $region35: #{component_mixer_v2.1} parent=1 // pred_check_branch
      %3122 = sbr.rel (0) target = $region37
    $region36: #{component_mixer_v2.1} parent=1 // pred_region
      %s3124 = ssub.s32 256, 256
      %3125 = vsyncadd [#allocation4], %s3124
      %s3126 = sshll.u32 [#allocation8], 4
      %s3127 = int_to_ptr.vmem [resolvable:$true] %s3126
      %3132 = dma.vmem_to_hbm [thread:$0]  %s3127, 256, %s5, [#allocation4], 128, 128, 8
    $region37: #{component_mixer_v2.1} parent=1 // pred_fallthru
      _
    // Predicated region
    $region38: #{component_mixer_v2.1} parent=1 // pred_check
      _
    $region39: #{component_mixer_v2.1} parent=1 // pred_check_branch
      %3134 = sbr.rel (0) target = $region41
    $region40: #{component_mixer_v2.1} parent=1 // pred_region
      _
    $region41: #{component_mixer_v2.1} parent=1 // pred_fallthru
      _
    // Predicated region
    $region42: #{component_mixer_v2.1} parent=1 // pred_check
      _
    $region43: #{component_mixer_v2.1} parent=1 // pred_check_branch
      %3136 = sbr.rel (0) target = $region45
    $region44: #{component_mixer_v2.1} parent=1 // pred_region
      %3137 = dma.done [#allocation4], 256
    $region45: #{component_mixer_v2.1} parent=1 // pred_fallthru
      _
    // Predicated region
    $region46: #{component_mixer_v2.1} parent=1 // pred_check
      _
    $region47: #{component_mixer_v2.1} parent=1 // pred_check_branch
      %3139 = sbr.rel (0) target = $region49
    $region48: #{component_mixer_v2.1} parent=1 // pred_region
      _
    $region49: #{component_mixer_v2.1} parent=1 // pred_fallthru
      _
    %3140 = vsyncpa [#allocation3], 1
    %3141 = vsyncpa [#allocation6], 1
    %3142 = vsyncpa [#allocation4], 1

</llo_original>
